<compile_context>
chip_gen: v7x
topology: tpu7x:2x2x1
jax: 0.10.0
libtpu: 0.0.40
codegen_flags: <defaults>
</compile_context>

<pallas_src>
import functools
import math

import numpy as np
import jax
import jax.numpy as jnp
from jax import lax
from jax.experimental import pallas as pl
from jax.experimental.pallas import tpu as pltpu

# ---------------- configuration (small, consistent with the module) ----------
BS = 2
NVARS = 4            # c_in
M_PATCH_LEN = 16
M_PATCH_NUM = 8      # sequence length seen by Mamba
D_MODEL = 32
D_FF = 64
D_STATE = 8
D_CONV = 4
M_LAYERS = 2
EXPAND = 2                      # mamba_ssm default
D_INNER = EXPAND * D_MODEL      # 64
DT_RANK = math.ceil(D_MODEL / 16)  # 2
ACT = "relu"                    # Mamba_Encoder_Layer act

# ---------------- packed-slab layout (host packing & kernel offsets agree) ----
SD = D_STATE * D_INNER                       # 512
SLAB_ROWS = max(D_INNER, D_FF, M_PATCH_LEN)  # 64 rows in the weight slab
W_IN0_C = 2 * D_INNER                        # 128 cols for fused W_P@in_proj(l0)
OFF_BC = 0                                   # per-layer block column offsets:
OFF_DT = 2 * SD                              #   [B_rep|C_rep 1024 | Wdt 128 | Wof 128 | Wout 128]
OFF_OF = 2 * SD + 128
OFF_OUT = 2 * SD + 256
W_BLK = 2 * SD + 3 * 128                     # 1408 (= 11 * 128, keeps layer bases 128-aligned)
W_COLS = W_IN0_C + M_LAYERS * W_BLK          # 2944
V_COLS = SD                                  # 512 wide f32 vector slab
V_PER_LAYER = D_CONV + 6                     # conv_w(4), conv_b, dt_b, neg_a, D, l1_b, b_out
V_ROWS = 1 + M_LAYERS * V_PER_LAYER          # + global fused in-proj bias
V_ROWS_PAD = ((V_ROWS + 7) // 8) * 8


# ---------------- fused encoder kernel ----------------------------------------
def _encoder_kernel(
    x_ref, w_ref, v_ref,          # inputs: tokens (f32), weight slab (bf16), vector slab (f32)
    o_ref,                        # output: (n_tok, d_model) f32
    conv_ref, zs_ref, y_ref, bc_ref, da_ref,   # VMEM scratch
    *, seq_len, n_layers,
):
    f32 = jnp.float32
    bf16 = jnp.bfloat16
    n_tok = x_ref.shape[0]
    L = seq_len
    BN = n_tok // L                      # tokens per timestep (row = t*BN + b, time-major)
    d_inner = D_INNER
    sd = SD
    pad_rows = (D_CONV - 1) * BN         # causal-conv left padding rows (multiple of 8)

    def silu(v):
        # exact: x * sigmoid(x) = x * 0.5 * (1 + tanh(x/2))  -> one EUP push
        return v * (0.5 * (1.0 + jnp.tanh(0.5 * v)))

    def softplus(v):
        return jnp.maximum(v, 0.0) + jnp.log(1.0 + jnp.exp(-jnp.abs(v)))

    # zero the causal-conv left padding once; it is never overwritten afterwards.
    conv_ref[0:pad_rows, :] = jnp.zeros((pad_rows, d_inner), f32)

    # ---- fused W_P + in_proj(layer 0):  (n_tok, patch_len) @ (patch_len, 2*d_inner) ----
    x16 = x_ref[...].astype(bf16)
    xz = (
        jnp.dot(x16, w_ref[0:M_PATCH_LEN, 0:2 * d_inner], preferred_element_type=f32)
        + v_ref[0:1, 0:2 * d_inner]
    )                                                           # (n_tok, 128)

    for l in range(n_layers):                                   # static unroll (2 layers)
        wbase = W_IN0_C + l * W_BLK                             # 128-aligned
        vbase = 1 + l * V_PER_LAYER

        # split in_proj output; stash silu(z) (only needed after the scan) and xc for the conv.
        zs_ref[...] = silu(xz[:, d_inner:2 * d_inner])
        conv_ref[pad_rows:pad_rows + n_tok, :] = xz[:, 0:d_inner]

        # ---- causal depthwise conv: 4 sublane-aligned taps from the padded scratch ----
        acc = v_ref[vbase + D_CONV:vbase + D_CONV + 1, 0:d_inner]          # conv bias (1,64)
        for k in range(D_CONV):                                            # static unroll
            acc = acc + (
                conv_ref[k * BN:k * BN + n_tok, :]
                * v_ref[vbase + k:vbase + k + 1, 0:d_inner]
            )
        u = silu(acc)                                                      # (n_tok, d_inner)
        u16 = u.astype(bf16)

        # ---- dt = softplus(u @ Wdt + dt_b)  (dt_proj folded into x_proj host-side) ----
        dt_pre = jnp.dot(u16, w_ref[0:d_inner, wbase + OFF_DT:wbase + OFF_DT + 128],
                         preferred_element_type=f32)
        dt = softplus(dt_pre[:, 0:d_inner]
                      + v_ref[vbase + D_CONV + 1:vbase + D_CONV + 2, 0:d_inner])
        du = dt * u

        # D*u goes straight into the y accumulator (frees u before the scan).
        y_ref[...] = v_ref[vbase + D_CONV + 3:vbase + D_CONV + 4, 0:d_inner] * u

        dt2 = jnp.concatenate([dt, dt], axis=-1)                           # (n_tok, 128)
        du2 = jnp.concatenate([du, du], axis=-1)                           # (n_tok, 128)

        # ---- x_proj with B/C columns replicated host-side (MXU does the broadcast). ----
        # bc_ref[:, s*d_inner+d]      = B[:, s] * (dt*u)[:, d]   (du folded at store time)
        # bc_ref[:, sd+s*d_inner+d]   = C[:, s]
        # da_ref[:, s*d_inner+d]      = exp(dt[:, d] * (-exp(A_log))[s, d])
        # 128-lane chunks keep vreg pressure low and all slab/scratch slices 128-aligned.
        for c0 in range(0, 2 * sd, 128):                                   # 8 static chunks
            blk = jnp.dot(u16, w_ref[0:d_inner, wbase + c0:wbase + c0 + 128],
                          preferred_element_type=f32)
            if c0 < sd:
                bc_ref[:, c0:c0 + 128] = blk * du2
                da_ref[:, c0:c0 + 128] = jnp.exp(
                    dt2 * v_ref[vbase + D_CONV + 2:vbase + D_CONV + 3, c0:c0 + 128])
            else:
                bc_ref[:, c0:c0 + 128] = blk

        # ---- selective scan: lane-dense state (BN, d_state*d_inner) = (8, 512). ----
        # Per step: one 4-vreg FMA recurrence + one mul + a lane-halving tree reduction.
        h = jnp.zeros((BN, sd), f32)
        for t in range(L):                                                 # static unroll (L=8)
            r0 = t * BN
            h = da_ref[r0:r0 + BN, :] * h + bc_ref[r0:r0 + BN, 0:sd]
            r = bc_ref[r0:r0 + BN, sd:2 * sd] * h
            width = sd
            while width > d_inner:                                         # sum over d_state
                half = width // 2
                r = r[:, 0:half] + r[:, half:width]
                width = half
            y_ref[r0:r0 + BN, :] = y_ref[r0:r0 + BN, :] + r                # (BN, d_inner)

        # ---- gate + fused out_proj@lin1, relu, fused lin2@in_proj(next layer) ----
        yo = y_ref[...] * zs_ref[...]
        ff_pre = jnp.dot(yo.astype(bf16),
                         w_ref[0:d_inner, wbase + OFF_OF:wbase + OFF_OF + 128],
                         preferred_element_type=f32)
        ff = jnp.maximum(
            ff_pre[:, 0:D_FF] + v_ref[vbase + D_CONV + 4:vbase + D_CONV + 5, 0:D_FF], 0.0)
        xz = (
            jnp.dot(ff.astype(bf16),
                    w_ref[0:D_FF, wbase + OFF_OUT:wbase + OFF_OUT + 128],
                    preferred_element_type=f32)
            + v_ref[vbase + D_CONV + 5:vbase + D_CONV + 6, 0:2 * d_inner]
        )   # for l < last: next layer's in_proj input; for last: [output(32) | zero pad]

    o_ref[...] = xz[:, 0:D_MODEL]


def _encoder_pallas(x_tokens, w_slab, v_slab, seq_len):
    n_tok = x_tokens.shape[0]
    assert n_tok % seq_len == 0
    bn = n_tok // seq_len
    assert bn % 8 == 0, "time-major layout needs bs*nvars to be a multiple of 8 sublanes"
    pad_rows = (D_CONV - 1) * bn
    return pl.pallas_call(
        functools.partial(_encoder_kernel, seq_len=seq_len, n_layers=M_LAYERS),
        out_shape=jax.ShapeDtypeStruct((n_tok, D_MODEL), jnp.float32),
        scratch_shapes=[
            pltpu.VMEM((pad_rows + n_tok, D_INNER), jnp.float32),   # zero-padded conv input
            pltpu.VMEM((n_tok, D_INNER), jnp.float32),              # silu(z)
            pltpu.VMEM((n_tok, D_INNER), jnp.float32),              # y accumulator
            pltpu.VMEM((n_tok, 2 * SD), jnp.float32),               # [B*dt*u | C] replicated
            pltpu.VMEM((n_tok, SD), jnp.float32),                   # exp(dt ⊗ -exp(A_log))
        ],
    )(x_tokens, w_slab, v_slab)


# ---------------- full encoder forward (layout plumbing in plain JAX) ---------
def mamba_encoder_forward(x, w_slab, v_slab):
    bs, nvars, plen, pnum = x.shape
    bn = bs * nvars
    # time-major flat token layout: row = t*BN + (b*nvars + v), cols = patch_len
    xt = jnp.transpose(x, (3, 0, 1, 2)).reshape(pnum * bn, plen)
    out_flat = _encoder_pallas(xt, w_slab, v_slab, seq_len=pnum)     # (pnum*bn, d_model)
    h = out_flat.reshape(pnum, bs, nvars, D_MODEL)
    return jnp.transpose(h, (1, 2, 3, 0))                            # (bs, nvars, d_model, pnum)


# ---------------- deterministic parameter init --------------------------------
def init_params(key):
    keys = iter(jax.random.split(key, 128))

    def rnd(shape, scale=0.1):
        return scale * jax.random.normal(next(keys), shape, dtype=jnp.float32)

    params = {
        "wp_w": rnd((M_PATCH_LEN, D_MODEL)),
        "wp_b": rnd((1, D_MODEL)),
        "layers": [],
    }
    for _ in range(M_LAYERS):
        a = jnp.tile(
            jnp.arange(1, D_STATE + 1, dtype=jnp.float32)[:, None], (1, D_INNER)
        )  # standard S4/Mamba A init, stored transposed as (d_state, d_inner)
        lp = {
            "in_w": rnd((D_MODEL, 2 * D_INNER)),               # in_proj (bias=False)
            "conv_w": rnd((D_CONV, D_INNER)),                  # depthwise conv weight (k, c)
            "conv_b": rnd((1, D_INNER)),
            "xproj_w": rnd((D_INNER, DT_RANK + 2 * D_STATE)),  # bias=False
            "dt_w": rnd((DT_RANK, D_INNER)),
            "dt_b": rnd((1, D_INNER)),
            "a_log_t": jnp.log(a),                             # (d_state, d_inner)
            "d": jnp.ones((1, D_INNER), jnp.float32),
            "out_w": rnd((D_INNER, D_MODEL)),                  # out_proj (bias=False)
            "l1_w": rnd((D_MODEL, D_FF)),
            "l1_b": rnd((1, D_FF)),
            "l2_w": rnd((D_FF, D_MODEL)),
            "l2_b": rnd((1, D_MODEL)),
        }
        params["layers"].append(lp)
    return params


def prep_kernel_params(params):
    """Pack everything into one bf16 matmul-weight slab and one f32 vector slab.

    Host-side folds (exact up to fp associativity / bf16 weight rounding):
      * dt_proj into x_proj, B/C columns replicated d_inner times, -exp(A_log),
      * W_P @ in_proj(l0), out_proj @ lin1, lin2 @ in_proj(next layer) + matching biases.
    """
    layers = params["layers"]
    hi = lax.Precision.HIGHEST

    def vrow(vec):
        v = jnp.asarray(vec, jnp.float32).reshape(1, -1)
        return jnp.pad(v, ((0, 0), (0, V_COLS - v.shape[1])))

    def cpad(w, width):
        return jnp.pad(w, ((0, 0), (0, width - w.shape[1])))

    def rpad(w):
        return jnp.pad(w, ((0, SLAB_ROWS - w.shape[0]), (0, 0)))

    w_blocks = []
    v_rows = []

    w_in0 = jnp.dot(params["wp_w"], layers[0]["in_w"], precision=hi)       # (plen, 128)
    b_in0 = jnp.dot(params["wp_b"], layers[0]["in_w"], precision=hi)       # (1, 128)
    w_blocks.append(rpad(w_in0))
    v_rows.append(vrow(b_in0))

    for l, lp in enumerate(layers):
        wb = lp["xproj_w"][:, DT_RANK:DT_RANK + D_STATE]                   # (d_inner, d_state)
        wc = lp["xproj_w"][:, DT_RANK + D_STATE:]
        w_bc = jnp.concatenate(
            [jnp.repeat(wb, D_INNER, axis=1), jnp.repeat(wc, D_INNER, axis=1)], axis=1)
        w_dt = jnp.dot(lp["xproj_w"][:, :DT_RANK], lp["dt_w"], precision=hi)   # (64, 64)
        w_of = jnp.dot(lp["out_w"], lp["l1_w"], precision=hi)                  # (64, 64)
        if l + 1 < len(layers):
            w_out = jnp.dot(lp["l2_w"], layers[l + 1]["in_w"], precision=hi)   # (64, 128)
            b_out = jnp.dot(lp["l2_b"], layers[l + 1]["in_w"], precision=hi)   # (1, 128)
        else:
            w_out = cpad(lp["l2_w"], 2 * D_INNER)                              # (64, 128)
            b_out = cpad(lp["l2_b"], 2 * D_INNER)
        w_blocks += [rpad(w_bc), rpad(cpad(w_dt, 128)), rpad(cpad(w_of, 128)), rpad(w_out)]

        for k in range(D_CONV):
            v_rows.append(vrow(lp["conv_w"][k]))
        v_rows.append(vrow(lp["conv_b"]))
        v_rows.append(vrow(lp["dt_b"]))
        v_rows.append(vrow((-jnp.exp(lp["a_log_t"])).reshape(1, SD)))
        v_rows.append(vrow(lp["d"]))
        v_rows.append(vrow(lp["l1_b"]))
        v_rows.append(vrow(b_out))

    w_slab = jnp.concatenate(w_blocks, axis=1).astype(jnp.bfloat16)        # (64, W_COLS)
    assert w_slab.shape == (SLAB_ROWS, W_COLS), w_slab.shape
    v_slab = jnp.concatenate(v_rows, axis=0).astype(jnp.float32)           # (V_ROWS, 512)
    v_slab = jnp.pad(v_slab, ((0, V_ROWS_PAD - V_ROWS), (0, 0)))
    return w_slab, v_slab


# ---------------- pure-JAX reference (uses the UNFUSED params) ----------------
def _silu_ref(x):
    return x * (1.0 / (1.0 + jnp.exp(-x)))


def _softplus_ref(x):
    return jnp.maximum(x, 0.0) + jnp.log(1.0 + jnp.exp(-jnp.abs(x)))


def _ref_layer(h, lp):
    L = h.shape[1]

    def one(xs):
        xz = xs @ lp["in_w"]
        xc, z = xz[:, :D_INNER], xz[:, D_INNER:]
        pad = jnp.concatenate(
            [jnp.zeros((D_CONV - 1, D_INNER), jnp.float32), xc], axis=0
        )
        conv = lp["conv_b"]
        for k in range(D_CONV):
            conv = conv + pad[k:k + L] * lp["conv_w"][k:k + 1]
        u = _silu_ref(conv)
        x_dbl = u @ lp["xproj_w"]
        dt_lr = x_dbl[:, :DT_RANK]
        Bm = x_dbl[:, DT_RANK:DT_RANK + D_STATE]
        Cm = x_dbl[:, DT_RANK + D_STATE:]
        dt = _softplus_ref(dt_lr @ lp["dt_w"] + lp["dt_b"])
        neg_a = -jnp.exp(lp["a_log_t"])                  # (d_state, d_inner)

        def step(hst, inp):
            dt_t, u_t, b_t, c_t = inp
            dA = jnp.exp(dt_t[None, :] * neg_a)
            hst = dA * hst + b_t[:, None] * (dt_t * u_t)[None, :]
            y = jnp.sum(c_t[:, None] * hst, axis=0) + lp["d"][0] * u_t
            return hst, y

        _, ys = jax.lax.scan(
            step, jnp.zeros((D_STATE, D_INNER), jnp.float32), (dt, u, Bm, Cm)
        )
        y = ys * _silu_ref(z)
        mo = y @ lp["out_w"]
        ff = jnp.maximum(mo @ lp["l1_w"] + lp["l1_b"], 0.0)
        return ff @ lp["l2_w"] + lp["l2_b"]

    return jax.vmap(one)(h)


def ref_forward(x, params):
    bs, nvars, plen, pnum = x.shape
    h = jnp.transpose(x, (0, 1, 3, 2)).reshape(bs * nvars, pnum, plen)
    h = h @ params["wp_w"] + params["wp_b"]
    for lp in params["layers"]:
        h = _ref_layer(h, lp)
    h = h.reshape(bs, nvars, pnum, -1)
    return jnp.transpose(h, (0, 1, 3, 2))


# ---------------- main --------------------------------------------------------
if __name__ == "__main__":
    key = jax.random.PRNGKey(0)
    kx, kp_key = jax.random.split(key)
    x = jax.random.normal(kx, (BS, NVARS, M_PATCH_LEN, M_PATCH_NUM), dtype=jnp.float32)
    params = init_params(kp_key)
    w_slab, v_slab = prep_kernel_params(params)

    fwd = jax.jit(mamba_encoder_forward)
    out = jax.block_until_ready(fwd(x, w_slab, v_slab))
    assert out.shape == (BS, NVARS, D_MODEL, M_PATCH_NUM), out.shape

    with jax.default_matmul_precision("highest"):
        ref = jax.block_until_ready(ref_forward(x, params))
    # bf16 MXU inputs + host-side weight folds give ~1e-3-level deviations vs the f32 reference.
    np.testing.assert_allclose(np.asarray(out), np.asarray(ref), rtol=1e-2, atol=1e-2)

    print("KERNEL_OK")
</pallas_src>

<mosaic_0001>
module attributes {stable_mosaic.version = 11 : i64} {
  func.func @_encoder_kernel(%arg0: memref<64x16xf32, #tpu.memory_space<vmem>>, %arg1: memref<64x2944xbf16, #tpu.memory_space<vmem>>, %arg2: memref<24x512xf32, #tpu.memory_space<vmem>>, %arg3: memref<64x32xf32, #tpu.memory_space<vmem>>, %arg4: memref<88x64xf32, #tpu.memory_space<vmem>>, %arg5: memref<64x64xf32, #tpu.memory_space<vmem>>, %arg6: memref<64x64xf32, #tpu.memory_space<vmem>>, %arg7: memref<64x1024xf32, #tpu.memory_space<vmem>>, %arg8: memref<64x512xf32, #tpu.memory_space<vmem>>) attributes {dimension_semantics = [], scalar_prefetch = 0 : i64, scratch_operands = 5 : i64, tpu.core_type = #tpu.core_type<tc>} {
    %cst = arith.constant 0.000000e+00 : f32
    %0 = vector.broadcast %cst : f32 to vector<24x64xf32>
    %c0 = arith.constant 0 : index
    %c0_0 = arith.constant 0 : index
    %1 = vector.load %arg4[%c0, %c0_0] : memref<88x64xf32, #tpu.memory_space<vmem>>, vector<24x64xf32>
    tpu.vector_store %arg4[%c0, %c0_0], %0 {strides = array<i32>} : memref<88x64xf32, #tpu.memory_space<vmem>>, vector<24x64xf32>,
    %c0_1 = arith.constant 0 : index
    %c0_2 = arith.constant 0 : index
    %2 = vector.load %arg0[%c0_1, %c0_2] : memref<64x16xf32, #tpu.memory_space<vmem>>, vector<64x16xf32>
    %3 = arith.truncf %2 : vector<64x16xf32> to vector<64x16xbf16>
    %c0_3 = arith.constant 0 : index
    %c0_4 = arith.constant 0 : index
    %4 = vector.load %arg1[%c0_3, %c0_4] : memref<64x2944xbf16, #tpu.memory_space<vmem>>, vector<16x128xbf16>
    %cst_5 = arith.constant dense<0.000000e+00> : vector<64x128xf32>
    %5 = tpu.matmul %3, %4, %cst_5 {dimension_numbers = #tpu.dot_dimension_numbers<[1], [0], [0], [1], [0, 0, 1, 1], [], []>} : vector<64x16xbf16>, vector<16x128xbf16>, vector<64x128xf32> -> vector<64x128xf32>
    %c0_6 = arith.constant 0 : index
    %c0_7 = arith.constant 0 : index
    %6 = vector.load %arg2[%c0_6, %c0_7] : memref<24x512xf32, #tpu.memory_space<vmem>>, vector<1x128xf32>
    %7 = vector.broadcast %6 : vector<1x128xf32> to vector<64x128xf32>
    %8 = arith.addf %5, %7 : vector<64x128xf32>
    %9 = vector.extract_strided_slice %8 {offsets = [0, 64], sizes = [64, 64], strides = [1, 1]} : vector<64x128xf32> to vector<64x64xf32>
    %cst_8 = arith.constant 5.000000e-01 : f32
    %10 = vector.broadcast %cst_8 : f32 to vector<64x64xf32>
    %11 = arith.mulf %10, %9 : vector<64x64xf32>
    %12 = math.tanh %11 : vector<64x64xf32>
    %cst_9 = arith.constant 1.000000e+00 : f32
    %13 = vector.broadcast %cst_9 : f32 to vector<64x64xf32>
    %14 = arith.addf %13, %12 : vector<64x64xf32>
    %cst_10 = arith.constant 5.000000e-01 : f32
    %15 = vector.broadcast %cst_10 : f32 to vector<64x64xf32>
    %16 = arith.mulf %15, %14 : vector<64x64xf32>
    %17 = arith.mulf %9, %16 : vector<64x64xf32>
    %c0_11 = arith.constant 0 : index
    %c0_12 = arith.constant 0 : index
    %18 = vector.load %arg5[%c0_11, %c0_12] : memref<64x64xf32, #tpu.memory_space<vmem>>, vector<64x64xf32>
    tpu.vector_store %arg5[%c0_11, %c0_12], %17 {strides = array<i32>} : memref<64x64xf32, #tpu.memory_space<vmem>>, vector<64x64xf32>,
    %19 = vector.extract_strided_slice %8 {offsets = [0, 0], sizes = [64, 64], strides = [1, 1]} : vector<64x128xf32> to vector<64x64xf32>
    %c24 = arith.constant 24 : index
    %c0_13 = arith.constant 0 : index
    %20 = vector.load %arg4[%c24, %c0_13] : memref<88x64xf32, #tpu.memory_space<vmem>>, vector<64x64xf32>
    tpu.vector_store %arg4[%c24, %c0_13], %19 {strides = array<i32>} : memref<88x64xf32, #tpu.memory_space<vmem>>, vector<64x64xf32>,
    %c5 = arith.constant 5 : index
    %c0_14 = arith.constant 0 : index
    %21 = vector.load %arg2[%c5, %c0_14] : memref<24x512xf32, #tpu.memory_space<vmem>>, vector<1x64xf32>
    %c0_15 = arith.constant 0 : index
    %c0_16 = arith.constant 0 : index
    %22 = vector.load %arg4[%c0_15, %c0_16] : memref<88x64xf32, #tpu.memory_space<vmem>>, vector<64x64xf32>
    %c1 = arith.constant 1 : index
    %c0_17 = arith.constant 0 : index
    %23 = vector.load %arg2[%c1, %c0_17] : memref<24x512xf32, #tpu.memory_space<vmem>>, vector<1x64xf32>
    %24 = vector.broadcast %23 : vector<1x64xf32> to vector<64x64xf32>
    %25 = arith.mulf %22, %24 : vector<64x64xf32>
    %26 = vector.broadcast %21 : vector<1x64xf32> to vector<64x64xf32>
    %27 = arith.addf %26, %25 : vector<64x64xf32>
    %c8 = arith.constant 8 : index
    %c0_18 = arith.constant 0 : index
    %28 = vector.load %arg4[%c8, %c0_18] : memref<88x64xf32, #tpu.memory_space<vmem>>, vector<64x64xf32>
    %c2 = arith.constant 2 : index
    %c0_19 = arith.constant 0 : index
    %29 = vector.load %arg2[%c2, %c0_19] : memref<24x512xf32, #tpu.memory_space<vmem>>, vector<1x64xf32>
    %30 = vector.broadcast %29 : vector<1x64xf32> to vector<64x64xf32>
    %31 = arith.mulf %28, %30 : vector<64x64xf32>
    %32 = arith.addf %27, %31 : vector<64x64xf32>
    %c16 = arith.constant 16 : index
    %c0_20 = arith.constant 0 : index
    %33 = vector.load %arg4[%c16, %c0_20] : memref<88x64xf32, #tpu.memory_space<vmem>>, vector<64x64xf32>
    %c3 = arith.constant 3 : index
    %c0_21 = arith.constant 0 : index
    %34 = vector.load %arg2[%c3, %c0_21] : memref<24x512xf32, #tpu.memory_space<vmem>>, vector<1x64xf32>
    %35 = vector.broadcast %34 : vector<1x64xf32> to vector<64x64xf32>
    %36 = arith.mulf %33, %35 : vector<64x64xf32>
    %37 = arith.addf %32, %36 : vector<64x64xf32>
    %c24_22 = arith.constant 24 : index
    %c0_23 = arith.constant 0 : index
    %38 = vector.load %arg4[%c24_22, %c0_23] : memref<88x64xf32, #tpu.memory_space<vmem>>, vector<64x64xf32>
    %c4 = arith.constant 4 : index
    %c0_24 = arith.constant 0 : index
    %39 = vector.load %arg2[%c4, %c0_24] : memref<24x512xf32, #tpu.memory_space<vmem>>, vector<1x64xf32>
    %40 = vector.broadcast %39 : vector<1x64xf32> to vector<64x64xf32>
    %41 = arith.mulf %38, %40 : vector<64x64xf32>
    %42 = arith.addf %37, %41 : vector<64x64xf32>
    %cst_25 = arith.constant 5.000000e-01 : f32
    %43 = vector.broadcast %cst_25 : f32 to vector<64x64xf32>
    %44 = arith.mulf %43, %42 : vector<64x64xf32>
    %45 = math.tanh %44 : vector<64x64xf32>
    %cst_26 = arith.constant 1.000000e+00 : f32
    %46 = vector.broadcast %cst_26 : f32 to vector<64x64xf32>
    %47 = arith.addf %46, %45 : vector<64x64xf32>
    %cst_27 = arith.constant 5.000000e-01 : f32
    %48 = vector.broadcast %cst_27 : f32 to vector<64x64xf32>
    %49 = arith.mulf %48, %47 : vector<64x64xf32>
    %50 = arith.mulf %42, %49 : vector<64x64xf32>
    %51 = arith.truncf %50 : vector<64x64xf32> to vector<64x64xbf16>
    %c0_28 = arith.constant 0 : index
    %c1152 = arith.constant 1152 : index
    %52 = vector.load %arg1[%c0_28, %c1152] : memref<64x2944xbf16, #tpu.memory_space<vmem>>, vector<64x128xbf16>
    %cst_29 = arith.constant dense<0.000000e+00> : vector<64x128xf32>
    %53 = tpu.matmul %51, %52, %cst_29 {dimension_numbers = #tpu.dot_dimension_numbers<[1], [0], [0], [1], [0, 0, 1, 1], [], []>} : vector<64x64xbf16>, vector<64x128xbf16>, vector<64x128xf32> -> vector<64x128xf32>
    %54 = vector.extract_strided_slice %53 {offsets = [0, 0], sizes = [64, 64], strides = [1, 1]} : vector<64x128xf32> to vector<64x64xf32>
    %c6 = arith.constant 6 : index
    %c0_30 = arith.constant 0 : index
    %55 = vector.load %arg2[%c6, %c0_30] : memref<24x512xf32, #tpu.memory_space<vmem>>, vector<1x64xf32>
    %56 = vector.broadcast %55 : vector<1x64xf32> to vector<64x64xf32>
    %57 = arith.addf %54, %56 : vector<64x64xf32>
    %cst_31 = arith.constant 0.000000e+00 : f32
    %58 = vector.broadcast %cst_31 : f32 to vector<64x64xf32>
    %59 = arith.maximumf %57, %58 : vector<64x64xf32>
    %60 = math.absf %57 : vector<64x64xf32>
    %cst_32 = arith.constant 0.000000e+00 : f32
    %61 = vector.broadcast %cst_32 : f32 to vector<64x64xf32>
    %62 = arith.subf %61, %60 : vector<64x64xf32>
    %63 = math.exp %62 : vector<64x64xf32>
    %cst_33 = arith.constant 1.000000e+00 : f32
    %64 = vector.broadcast %cst_33 : f32 to vector<64x64xf32>
    %65 = arith.addf %64, %63 : vector<64x64xf32>
    %66 = math.log %65 : vector<64x64xf32>
    %67 = arith.addf %59, %66 : vector<64x64xf32>
    %68 = arith.mulf %67, %50 : vector<64x64xf32>
    %c8_34 = arith.constant 8 : index
    %c0_35 = arith.constant 0 : index
    %69 = vector.load %arg2[%c8_34, %c0_35] : memref<24x512xf32, #tpu.memory_space<vmem>>, vector<1x64xf32>
    %70 = vector.broadcast %69 : vector<1x64xf32> to vector<64x64xf32>
    %71 = arith.mulf %70, %50 : vector<64x64xf32>
    %c0_36 = arith.constant 0 : index
    %c0_37 = arith.constant 0 : index
    %72 = vector.load %arg6[%c0_36, %c0_37] : memref<64x64xf32, #tpu.memory_space<vmem>>, vector<64x64xf32>
    tpu.vector_store %arg6[%c0_36, %c0_37], %71 {strides = array<i32>} : memref<64x64xf32, #tpu.memory_space<vmem>>, vector<64x64xf32>,
    %73 = tpu.concatenate %67, %67 in 1 : vector<64x64xf32>, vector<64x64xf32> -> vector<64x128xf32>
    %74 = tpu.concatenate %68, %68 in 1 : vector<64x64xf32>, vector<64x64xf32> -> vector<64x128xf32>
    %c0_38 = arith.constant 0 : index
    %c128 = arith.constant 128 : index
    %75 = vector.load %arg1[%c0_38, %c128] : memref<64x2944xbf16, #tpu.memory_space<vmem>>, vector<64x128xbf16>
    %cst_39 = arith.constant dense<0.000000e+00> : vector<64x128xf32>
    %76 = tpu.matmul %51, %75, %cst_39 {dimension_numbers = #tpu.dot_dimension_numbers<[1], [0], [0], [1], [0, 0, 1, 1], [], []>} : vector<64x64xbf16>, vector<64x128xbf16>, vector<64x128xf32> -> vector<64x128xf32>
    %77 = arith.mulf %76, %74 : vector<64x128xf32>
    %c0_40 = arith.constant 0 : index
    %c0_41 = arith.constant 0 : index
    %78 = vector.load %arg7[%c0_40, %c0_41] : memref<64x1024xf32, #tpu.memory_space<vmem>>, vector<64x128xf32>
    tpu.vector_store %arg7[%c0_40, %c0_41], %77 {strides = array<i32>} : memref<64x1024xf32, #tpu.memory_space<vmem>>, vector<64x128xf32>,
    %c7 = arith.constant 7 : index
    %c0_42 = arith.constant 0 : index
    %79 = vector.load %arg2[%c7, %c0_42] : memref<24x512xf32, #tpu.memory_space<vmem>>, vector<1x128xf32>
    %80 = vector.broadcast %79 : vector<1x128xf32> to vector<64x128xf32>
    %81 = arith.mulf %73, %80 : vector<64x128xf32>
    %82 = math.exp %81 : vector<64x128xf32>
    %c0_43 = arith.constant 0 : index
    %c0_44 = arith.constant 0 : index
    %83 = vector.load %arg8[%c0_43, %c0_44] : memref<64x512xf32, #tpu.memory_space<vmem>>, vector<64x128xf32>
    tpu.vector_store %arg8[%c0_43, %c0_44], %82 {strides = array<i32>} : memref<64x512xf32, #tpu.memory_space<vmem>>, vector<64x128xf32>,
    %c0_45 = arith.constant 0 : index
    %c256 = arith.constant 256 : index
    %84 = vector.load %arg1[%c0_45, %c256] : memref<64x2944xbf16, #tpu.memory_space<vmem>>, vector<64x128xbf16>
    %cst_46 = arith.constant dense<0.000000e+00> : vector<64x128xf32>
    %85 = tpu.matmul %51, %84, %cst_46 {dimension_numbers = #tpu.dot_dimension_numbers<[1], [0], [0], [1], [0, 0, 1, 1], [], []>} : vector<64x64xbf16>, vector<64x128xbf16>, vector<64x128xf32> -> vector<64x128xf32>
    %86 = arith.mulf %85, %74 : vector<64x128xf32>
    %c0_47 = arith.constant 0 : index
    %c128_48 = arith.constant 128 : index
    %87 = vector.load %arg7[%c0_47, %c128_48] : memref<64x1024xf32, #tpu.memory_space<vmem>>, vector<64x128xf32>
    tpu.vector_store %arg7[%c0_47, %c128_48], %86 {strides = array<i32>} : memref<64x1024xf32, #tpu.memory_space<vmem>>, vector<64x128xf32>,
    %c7_49 = arith.constant 7 : index
    %c128_50 = arith.constant 128 : index
    %88 = vector.load %arg2[%c7_49, %c128_50] : memref<24x512xf32, #tpu.memory_space<vmem>>, vector<1x128xf32>
    %89 = vector.broadcast %88 : vector<1x128xf32> to vector<64x128xf32>
    %90 = arith.mulf %73, %89 : vector<64x128xf32>
    %91 = math.exp %90 : vector<64x128xf32>
    %c0_51 = arith.constant 0 : index
    %c128_52 = arith.constant 128 : index
    %92 = vector.load %arg8[%c0_51, %c128_52] : memref<64x512xf32, #tpu.memory_space<vmem>>, vector<64x128xf32>
    tpu.vector_store %arg8[%c0_51, %c128_52], %91 {strides = array<i32>} : memref<64x512xf32, #tpu.memory_space<vmem>>, vector<64x128xf32>,
    %c0_53 = arith.constant 0 : index
    %c384 = arith.constant 384 : index
    %93 = vector.load %arg1[%c0_53, %c384] : memref<64x2944xbf16, #tpu.memory_space<vmem>>, vector<64x128xbf16>
    %cst_54 = arith.constant dense<0.000000e+00> : vector<64x128xf32>
    %94 = tpu.matmul %51, %93, %cst_54 {dimension_numbers = #tpu.dot_dimension_numbers<[1], [0], [0], [1], [0, 0, 1, 1], [], []>} : vector<64x64xbf16>, vector<64x128xbf16>, vector<64x128xf32> -> vector<64x128xf32>
    %95 = arith.mulf %94, %74 : vector<64x128xf32>
    %c0_55 = arith.constant 0 : index
    %c256_56 = arith.constant 256 : index
    %96 = vector.load %arg7[%c0_55, %c256_56] : memref<64x1024xf32, #tpu.memory_space<vmem>>, vector<64x128xf32>
    tpu.vector_store %arg7[%c0_55, %c256_56], %95 {strides = array<i32>} : memref<64x1024xf32, #tpu.memory_space<vmem>>, vector<64x128xf32>,
    %c7_57 = arith.constant 7 : index
    %c256_58 = arith.constant 256 : index
    %97 = vector.load %arg2[%c7_57, %c256_58] : memref<24x512xf32, #tpu.memory_space<vmem>>, vector<1x128xf32>
    %98 = vector.broadcast %97 : vector<1x128xf32> to vector<64x128xf32>
    %99 = arith.mulf %73, %98 : vector<64x128xf32>
    %100 = math.exp %99 : vector<64x128xf32>
    %c0_59 = arith.constant 0 : index
    %c256_60 = arith.constant 256 : index
    %101 = vector.load %arg8[%c0_59, %c256_60] : memref<64x512xf32, #tpu.memory_space<vmem>>, vector<64x128xf32>
    tpu.vector_store %arg8[%c0_59, %c256_60], %100 {strides = array<i32>} : memref<64x512xf32, #tpu.memory_space<vmem>>, vector<64x128xf32>,
    %c0_61 = arith.constant 0 : index
    %c512 = arith.constant 512 : index
    %102 = vector.load %arg1[%c0_61, %c512] : memref<64x2944xbf16, #tpu.memory_space<vmem>>, vector<64x128xbf16>
    %cst_62 = arith.constant dense<0.000000e+00> : vector<64x128xf32>
    %103 = tpu.matmul %51, %102, %cst_62 {dimension_numbers = #tpu.dot_dimension_numbers<[1], [0], [0], [1], [0, 0, 1, 1], [], []>} : vector<64x64xbf16>, vector<64x128xbf16>, vector<64x128xf32> -> vector<64x128xf32>
    %104 = arith.mulf %103, %74 : vector<64x128xf32>
    %c0_63 = arith.constant 0 : index
    %c384_64 = arith.constant 384 : index
    %105 = vector.load %arg7[%c0_63, %c384_64] : memref<64x1024xf32, #tpu.memory_space<vmem>>, vector<64x128xf32>
    tpu.vector_store %arg7[%c0_63, %c384_64], %104 {strides = array<i32>} : memref<64x1024xf32, #tpu.memory_space<vmem>>, vector<64x128xf32>,
    %c7_65 = arith.constant 7 : index
    %c384_66 = arith.constant 384 : index
    %106 = vector.load %arg2[%c7_65, %c384_66] : memref<24x512xf32, #tpu.memory_space<vmem>>, vector<1x128xf32>
    %107 = vector.broadcast %106 : vector<1x128xf32> to vector<64x128xf32>
    %108 = arith.mulf %73, %107 : vector<64x128xf32>
    %109 = math.exp %108 : vector<64x128xf32>
    %c0_67 = arith.constant 0 : index
    %c384_68 = arith.constant 384 : index
    %110 = vector.load %arg8[%c0_67, %c384_68] : memref<64x512xf32, #tpu.memory_space<vmem>>, vector<64x128xf32>
    tpu.vector_store %arg8[%c0_67, %c384_68], %109 {strides = array<i32>} : memref<64x512xf32, #tpu.memory_space<vmem>>, vector<64x128xf32>,
    %c0_69 = arith.constant 0 : index
    %c640 = arith.constant 640 : index
    %111 = vector.load %arg1[%c0_69, %c640] : memref<64x2944xbf16, #tpu.memory_space<vmem>>, vector<64x128xbf16>
    %cst_70 = arith.constant dense<0.000000e+00> : vector<64x128xf32>
    %112 = tpu.matmul %51, %111, %cst_70 {dimension_numbers = #tpu.dot_dimension_numbers<[1], [0], [0], [1], [0, 0, 1, 1], [], []>} : vector<64x64xbf16>, vector<64x128xbf16>, vector<64x128xf32> -> vector<64x128xf32>
    %c0_71 = arith.constant 0 : index
    %c512_72 = arith.constant 512 : index
    %113 = vector.load %arg7[%c0_71, %c512_72] : memref<64x1024xf32, #tpu.memory_space<vmem>>, vector<64x128xf32>
    tpu.vector_store %arg7[%c0_71, %c512_72], %112 {strides = array<i32>} : memref<64x1024xf32, #tpu.memory_space<vmem>>, vector<64x128xf32>,
    %c0_73 = arith.constant 0 : index
    %c768 = arith.constant 768 : index
    %114 = vector.load %arg1[%c0_73, %c768] : memref<64x2944xbf16, #tpu.memory_space<vmem>>, vector<64x128xbf16>
    %cst_74 = arith.constant dense<0.000000e+00> : vector<64x128xf32>
    %115 = tpu.matmul %51, %114, %cst_74 {dimension_numbers = #tpu.dot_dimension_numbers<[1], [0], [0], [1], [0, 0, 1, 1], [], []>} : vector<64x64xbf16>, vector<64x128xbf16>, vector<64x128xf32> -> vector<64x128xf32>
    %c0_75 = arith.constant 0 : index
    %c640_76 = arith.constant 640 : index
    %116 = vector.load %arg7[%c0_75, %c640_76] : memref<64x1024xf32, #tpu.memory_space<vmem>>, vector<64x128xf32>
    tpu.vector_store %arg7[%c0_75, %c640_76], %115 {strides = array<i32>} : memref<64x1024xf32, #tpu.memory_space<vmem>>, vector<64x128xf32>,
    %c0_77 = arith.constant 0 : index
    %c896 = arith.constant 896 : index
    %117 = vector.load %arg1[%c0_77, %c896] : memref<64x2944xbf16, #tpu.memory_space<vmem>>, vector<64x128xbf16>
    %cst_78 = arith.constant dense<0.000000e+00> : vector<64x128xf32>
    %118 = tpu.matmul %51, %117, %cst_78 {dimension_numbers = #tpu.dot_dimension_numbers<[1], [0], [0], [1], [0, 0, 1, 1], [], []>} : vector<64x64xbf16>, vector<64x128xbf16>, vector<64x128xf32> -> vector<64x128xf32>
    %c0_79 = arith.constant 0 : index
    %c768_80 = arith.constant 768 : index
    %119 = vector.load %arg7[%c0_79, %c768_80] : memref<64x1024xf32, #tpu.memory_space<vmem>>, vector<64x128xf32>
    tpu.vector_store %arg7[%c0_79, %c768_80], %118 {strides = array<i32>} : memref<64x1024xf32, #tpu.memory_space<vmem>>, vector<64x128xf32>,
    %c0_81 = arith.constant 0 : index
    %c1024 = arith.constant 1024 : index
    %120 = vector.load %arg1[%c0_81, %c1024] : memref<64x2944xbf16, #tpu.memory_space<vmem>>, vector<64x128xbf16>
    %cst_82 = arith.constant dense<0.000000e+00> : vector<64x128xf32>
    %121 = tpu.matmul %51, %120, %cst_82 {dimension_numbers = #tpu.dot_dimension_numbers<[1], [0], [0], [1], [0, 0, 1, 1], [], []>} : vector<64x64xbf16>, vector<64x128xbf16>, vector<64x128xf32> -> vector<64x128xf32>
    %c0_83 = arith.constant 0 : index
    %c896_84 = arith.constant 896 : index
    %122 = vector.load %arg7[%c0_83, %c896_84] : memref<64x1024xf32, #tpu.memory_space<vmem>>, vector<64x128xf32>
    tpu.vector_store %arg7[%c0_83, %c896_84], %121 {strides = array<i32>} : memref<64x1024xf32, #tpu.memory_space<vmem>>, vector<64x128xf32>,
    %cst_85 = arith.constant 0.000000e+00 : f32
    %123 = vector.broadcast %cst_85 : f32 to vector<8x512xf32>
    %c0_86 = arith.constant 0 : index
    %c0_87 = arith.constant 0 : index
    %124 = vector.load %arg8[%c0_86, %c0_87] : memref<64x512xf32, #tpu.memory_space<vmem>>, vector<8x512xf32>
    %125 = arith.mulf %124, %123 : vector<8x512xf32>
    %c0_88 = arith.constant 0 : index
    %c0_89 = arith.constant 0 : index
    %126 = vector.load %arg7[%c0_88, %c0_89] : memref<64x1024xf32, #tpu.memory_space<vmem>>, vector<8x512xf32>
    %127 = arith.addf %125, %126 : vector<8x512xf32>
    %c0_90 = arith.constant 0 : index
    %c512_91 = arith.constant 512 : index
    %128 = vector.load %arg7[%c0_90, %c512_91] : memref<64x1024xf32, #tpu.memory_space<vmem>>, vector<8x512xf32>
    %129 = arith.mulf %128, %127 : vector<8x512xf32>
    %130 = vector.extract_strided_slice %129 {offsets = [0, 0], sizes = [8, 256], strides = [1, 1]} : vector<8x512xf32> to vector<8x256xf32>
    %131 = vector.extract_strided_slice %129 {offsets = [0, 256], sizes = [8, 256], strides = [1, 1]} : vector<8x512xf32> to vector<8x256xf32>
    %132 = arith.addf %130, %131 : vector<8x256xf32>
    %133 = vector.extract_strided_slice %132 {offsets = [0, 0], sizes = [8, 128], strides = [1, 1]} : vector<8x256xf32> to vector<8x128xf32>
    %134 = vector.extract_strided_slice %132 {offsets = [0, 128], sizes = [8, 128], strides = [1, 1]} : vector<8x256xf32> to vector<8x128xf32>
    %135 = arith.addf %133, %134 : vector<8x128xf32>
    %136 = vector.extract_strided_slice %135 {offsets = [0, 0], sizes = [8, 64], strides = [1, 1]} : vector<8x128xf32> to vector<8x64xf32>
    %137 = vector.extract_strided_slice %135 {offsets = [0, 64], sizes = [8, 64], strides = [1, 1]} : vector<8x128xf32> to vector<8x64xf32>
    %138 = arith.addf %136, %137 : vector<8x64xf32>
    %c0_92 = arith.constant 0 : index
    %c0_93 = arith.constant 0 : index
    %139 = vector.load %arg6[%c0_92, %c0_93] : memref<64x64xf32, #tpu.memory_space<vmem>>, vector<8x64xf32>
    %140 = arith.addf %139, %138 : vector<8x64xf32>
    %c0_94 = arith.constant 0 : index
    %c0_95 = arith.constant 0 : index
    %141 = vector.load %arg6[%c0_94, %c0_95] : memref<64x64xf32, #tpu.memory_space<vmem>>, vector<8x64xf32>
    tpu.vector_store %arg6[%c0_94, %c0_95], %140 {strides = array<i32>} : memref<64x64xf32, #tpu.memory_space<vmem>>, vector<8x64xf32>,
    %c8_96 = arith.constant 8 : index
    %c0_97 = arith.constant 0 : index
    %142 = vector.load %arg8[%c8_96, %c0_97] : memref<64x512xf32, #tpu.memory_space<vmem>>, vector<8x512xf32>
    %143 = arith.mulf %142, %127 : vector<8x512xf32>
    %c8_98 = arith.constant 8 : index
    %c0_99 = arith.constant 0 : index
    %144 = vector.load %arg7[%c8_98, %c0_99] : memref<64x1024xf32, #tpu.memory_space<vmem>>, vector<8x512xf32>
    %145 = arith.addf %143, %144 : vector<8x512xf32>
    %c8_100 = arith.constant 8 : index
    %c512_101 = arith.constant 512 : index
    %146 = vector.load %arg7[%c8_100, %c512_101] : memref<64x1024xf32, #tpu.memory_space<vmem>>, vector<8x512xf32>
    %147 = arith.mulf %146, %145 : vector<8x512xf32>
    %148 = vector.extract_strided_slice %147 {offsets = [0, 0], sizes = [8, 256], strides = [1, 1]} : vector<8x512xf32> to vector<8x256xf32>
    %149 = vector.extract_strided_slice %147 {offsets = [0, 256], sizes = [8, 256], strides = [1, 1]} : vector<8x512xf32> to vector<8x256xf32>
    %150 = arith.addf %148, %149 : vector<8x256xf32>
    %151 = vector.extract_strided_slice %150 {offsets = [0, 0], sizes = [8, 128], strides = [1, 1]} : vector<8x256xf32> to vector<8x128xf32>
    %152 = vector.extract_strided_slice %150 {offsets = [0, 128], sizes = [8, 128], strides = [1, 1]} : vector<8x256xf32> to vector<8x128xf32>
    %153 = arith.addf %151, %152 : vector<8x128xf32>
    %154 = vector.extract_strided_slice %153 {offsets = [0, 0], sizes = [8, 64], strides = [1, 1]} : vector<8x128xf32> to vector<8x64xf32>
    %155 = vector.extract_strided_slice %153 {offsets = [0, 64], sizes = [8, 64], strides = [1, 1]} : vector<8x128xf32> to vector<8x64xf32>
    %156 = arith.addf %154, %155 : vector<8x64xf32>
    %c8_102 = arith.constant 8 : index
    %c0_103 = arith.constant 0 : index
    %157 = vector.load %arg6[%c8_102, %c0_103] : memref<64x64xf32, #tpu.memory_space<vmem>>, vector<8x64xf32>
    %158 = arith.addf %157, %156 : vector<8x64xf32>
    %c8_104 = arith.constant 8 : index
    %c0_105 = arith.constant 0 : index
    %159 = vector.load %arg6[%c8_104, %c0_105] : memref<64x64xf32, #tpu.memory_space<vmem>>, vector<8x64xf32>
    tpu.vector_store %arg6[%c8_104, %c0_105], %158 {strides = array<i32>} : memref<64x64xf32, #tpu.memory_space<vmem>>, vector<8x64xf32>,
    %c16_106 = arith.constant 16 : index
    %c0_107 = arith.constant 0 : index
    %160 = vector.load %arg8[%c16_106, %c0_107] : memref<64x512xf32, #tpu.memory_space<vmem>>, vector<8x512xf32>
    %161 = arith.mulf %160, %145 : vector<8x512xf32>
    %c16_108 = arith.constant 16 : index
    %c0_109 = arith.constant 0 : index
    %162 = vector.load %arg7[%c16_108, %c0_109] : memref<64x1024xf32, #tpu.memory_space<vmem>>, vector<8x512xf32>
    %163 = arith.addf %161, %162 : vector<8x512xf32>
    %c16_110 = arith.constant 16 : index
    %c512_111 = arith.constant 512 : index
    %164 = vector.load %arg7[%c16_110, %c512_111] : memref<64x1024xf32, #tpu.memory_space<vmem>>, vector<8x512xf32>
    %165 = arith.mulf %164, %163 : vector<8x512xf32>
    %166 = vector.extract_strided_slice %165 {offsets = [0, 0], sizes = [8, 256], strides = [1, 1]} : vector<8x512xf32> to vector<8x256xf32>
    %167 = vector.extract_strided_slice %165 {offsets = [0, 256], sizes = [8, 256], strides = [1, 1]} : vector<8x512xf32> to vector<8x256xf32>
    %168 = arith.addf %166, %167 : vector<8x256xf32>
    %169 = vector.extract_strided_slice %168 {offsets = [0, 0], sizes = [8, 128], strides = [1, 1]} : vector<8x256xf32> to vector<8x128xf32>
    %170 = vector.extract_strided_slice %168 {offsets = [0, 128], sizes = [8, 128], strides = [1, 1]} : vector<8x256xf32> to vector<8x128xf32>
    %171 = arith.addf %169, %170 : vector<8x128xf32>
    %172 = vector.extract_strided_slice %171 {offsets = [0, 0], sizes = [8, 64], strides = [1, 1]} : vector<8x128xf32> to vector<8x64xf32>
    %173 = vector.extract_strided_slice %171 {offsets = [0, 64], sizes = [8, 64], strides = [1, 1]} : vector<8x128xf32> to vector<8x64xf32>
    %174 = arith.addf %172, %173 : vector<8x64xf32>
    %c16_112 = arith.constant 16 : index
    %c0_113 = arith.constant 0 : index
    %175 = vector.load %arg6[%c16_112, %c0_113] : memref<64x64xf32, #tpu.memory_space<vmem>>, vector<8x64xf32>
    %176 = arith.addf %175, %174 : vector<8x64xf32>
    %c16_114 = arith.constant 16 : index
    %c0_115 = arith.constant 0 : index
    %177 = vector.load %arg6[%c16_114, %c0_115] : memref<64x64xf32, #tpu.memory_space<vmem>>, vector<8x64xf32>
    tpu.vector_store %arg6[%c16_114, %c0_115], %176 {strides = array<i32>} : memref<64x64xf32, #tpu.memory_space<vmem>>, vector<8x64xf32>,
    %c24_116 = arith.constant 24 : index
    %c0_117 = arith.constant 0 : index
    %178 = vector.load %arg8[%c24_116, %c0_117] : memref<64x512xf32, #tpu.memory_space<vmem>>, vector<8x512xf32>
    %179 = arith.mulf %178, %163 : vector<8x512xf32>
    %c24_118 = arith.constant 24 : index
    %c0_119 = arith.constant 0 : index
    %180 = vector.load %arg7[%c24_118, %c0_119] : memref<64x1024xf32, #tpu.memory_space<vmem>>, vector<8x512xf32>
    %181 = arith.addf %179, %180 : vector<8x512xf32>
    %c24_120 = arith.constant 24 : index
    %c512_121 = arith.constant 512 : index
    %182 = vector.load %arg7[%c24_120, %c512_121] : memref<64x1024xf32, #tpu.memory_space<vmem>>, vector<8x512xf32>
    %183 = arith.mulf %182, %181 : vector<8x512xf32>
    %184 = vector.extract_strided_slice %183 {offsets = [0, 0], sizes = [8, 256], strides = [1, 1]} : vector<8x512xf32> to vector<8x256xf32>
    %185 = vector.extract_strided_slice %183 {offsets = [0, 256], sizes = [8, 256], strides = [1, 1]} : vector<8x512xf32> to vector<8x256xf32>
    %186 = arith.addf %184, %185 : vector<8x256xf32>
    %187 = vector.extract_strided_slice %186 {offsets = [0, 0], sizes = [8, 128], strides = [1, 1]} : vector<8x256xf32> to vector<8x128xf32>
    %188 = vector.extract_strided_slice %186 {offsets = [0, 128], sizes = [8, 128], strides = [1, 1]} : vector<8x256xf32> to vector<8x128xf32>
    %189 = arith.addf %187, %188 : vector<8x128xf32>
    %190 = vector.extract_strided_slice %189 {offsets = [0, 0], sizes = [8, 64], strides = [1, 1]} : vector<8x128xf32> to vector<8x64xf32>
    %191 = vector.extract_strided_slice %189 {offsets = [0, 64], sizes = [8, 64], strides = [1, 1]} : vector<8x128xf32> to vector<8x64xf32>
    %192 = arith.addf %190, %191 : vector<8x64xf32>
    %c24_122 = arith.constant 24 : index
    %c0_123 = arith.constant 0 : index
    %193 = vector.load %arg6[%c24_122, %c0_123] : memref<64x64xf32, #tpu.memory_space<vmem>>, vector<8x64xf32>
    %194 = arith.addf %193, %192 : vector<8x64xf32>
    %c24_124 = arith.constant 24 : index
    %c0_125 = arith.constant 0 : index
    %195 = vector.load %arg6[%c24_124, %c0_125] : memref<64x64xf32, #tpu.memory_space<vmem>>, vector<8x64xf32>
    tpu.vector_store %arg6[%c24_124, %c0_125], %194 {strides = array<i32>} : memref<64x64xf32, #tpu.memory_space<vmem>>, vector<8x64xf32>,
    %c32 = arith.constant 32 : index
    %c0_126 = arith.constant 0 : index
    %196 = vector.load %arg8[%c32, %c0_126] : memref<64x512xf32, #tpu.memory_space<vmem>>, vector<8x512xf32>
    %197 = arith.mulf %196, %181 : vector<8x512xf32>
    %c32_127 = arith.constant 32 : index
    %c0_128 = arith.constant 0 : index
    %198 = vector.load %arg7[%c32_127, %c0_128] : memref<64x1024xf32, #tpu.memory_space<vmem>>, vector<8x512xf32>
    %199 = arith.addf %197, %198 : vector<8x512xf32>
    %c32_129 = arith.constant 32 : index
    %c512_130 = arith.constant 512 : index
    %200 = vector.load %arg7[%c32_129, %c512_130] : memref<64x1024xf32, #tpu.memory_space<vmem>>, vector<8x512xf32>
    %201 = arith.mulf %200, %199 : vector<8x512xf32>
    %202 = vector.extract_strided_slice %201 {offsets = [0, 0], sizes = [8, 256], strides = [1, 1]} : vector<8x512xf32> to vector<8x256xf32>
    %203 = vector.extract_strided_slice %201 {offsets = [0, 256], sizes = [8, 256], strides = [1, 1]} : vector<8x512xf32> to vector<8x256xf32>
    %204 = arith.addf %202, %203 : vector<8x256xf32>
    %205 = vector.extract_strided_slice %204 {offsets = [0, 0], sizes = [8, 128], strides = [1, 1]} : vector<8x256xf32> to vector<8x128xf32>
    %206 = vector.extract_strided_slice %204 {offsets = [0, 128], sizes = [8, 128], strides = [1, 1]} : vector<8x256xf32> to vector<8x128xf32>
    %207 = arith.addf %205, %206 : vector<8x128xf32>
    %208 = vector.extract_strided_slice %207 {offsets = [0, 0], sizes = [8, 64], strides = [1, 1]} : vector<8x128xf32> to vector<8x64xf32>
    %209 = vector.extract_strided_slice %207 {offsets = [0, 64], sizes = [8, 64], strides = [1, 1]} : vector<8x128xf32> to vector<8x64xf32>
    %210 = arith.addf %208, %209 : vector<8x64xf32>
    %c32_131 = arith.constant 32 : index
    %c0_132 = arith.constant 0 : index
    %211 = vector.load %arg6[%c32_131, %c0_132] : memref<64x64xf32, #tpu.memory_space<vmem>>, vector<8x64xf32>
    %212 = arith.addf %211, %210 : vector<8x64xf32>
    %c32_133 = arith.constant 32 : index
    %c0_134 = arith.constant 0 : index
    %213 = vector.load %arg6[%c32_133, %c0_134] : memref<64x64xf32, #tpu.memory_space<vmem>>, vector<8x64xf32>
    tpu.vector_store %arg6[%c32_133, %c0_134], %212 {strides = array<i32>} : memref<64x64xf32, #tpu.memory_space<vmem>>, vector<8x64xf32>,
    %c40 = arith.constant 40 : index
    %c0_135 = arith.constant 0 : index
    %214 = vector.load %arg8[%c40, %c0_135] : memref<64x512xf32, #tpu.memory_space<vmem>>, vector<8x512xf32>
    %215 = arith.mulf %214, %199 : vector<8x512xf32>
    %c40_136 = arith.constant 40 : index
    %c0_137 = arith.constant 0 : index
    %216 = vector.load %arg7[%c40_136, %c0_137] : memref<64x1024xf32, #tpu.memory_space<vmem>>, vector<8x512xf32>
    %217 = arith.addf %215, %216 : vector<8x512xf32>
    %c40_138 = arith.constant 40 : index
    %c512_139 = arith.constant 512 : index
    %218 = vector.load %arg7[%c40_138, %c512_139] : memref<64x1024xf32, #tpu.memory_space<vmem>>, vector<8x512xf32>
    %219 = arith.mulf %218, %217 : vector<8x512xf32>
    %220 = vector.extract_strided_slice %219 {offsets = [0, 0], sizes = [8, 256], strides = [1, 1]} : vector<8x512xf32> to vector<8x256xf32>
    %221 = vector.extract_strided_slice %219 {offsets = [0, 256], sizes = [8, 256], strides = [1, 1]} : vector<8x512xf32> to vector<8x256xf32>
    %222 = arith.addf %220, %221 : vector<8x256xf32>
    %223 = vector.extract_strided_slice %222 {offsets = [0, 0], sizes = [8, 128], strides = [1, 1]} : vector<8x256xf32> to vector<8x128xf32>
    %224 = vector.extract_strided_slice %222 {offsets = [0, 128], sizes = [8, 128], strides = [1, 1]} : vector<8x256xf32> to vector<8x128xf32>
    %225 = arith.addf %223, %224 : vector<8x128xf32>
    %226 = vector.extract_strided_slice %225 {offsets = [0, 0], sizes = [8, 64], strides = [1, 1]} : vector<8x128xf32> to vector<8x64xf32>
    %227 = vector.extract_strided_slice %225 {offsets = [0, 64], sizes = [8, 64], strides = [1, 1]} : vector<8x128xf32> to vector<8x64xf32>
    %228 = arith.addf %226, %227 : vector<8x64xf32>
    %c40_140 = arith.constant 40 : index
    %c0_141 = arith.constant 0 : index
    %229 = vector.load %arg6[%c40_140, %c0_141] : memref<64x64xf32, #tpu.memory_space<vmem>>, vector<8x64xf32>
    %230 = arith.addf %229, %228 : vector<8x64xf32>
    %c40_142 = arith.constant 40 : index
    %c0_143 = arith.constant 0 : index
    %231 = vector.load %arg6[%c40_142, %c0_143] : memref<64x64xf32, #tpu.memory_space<vmem>>, vector<8x64xf32>
    tpu.vector_store %arg6[%c40_142, %c0_143], %230 {strides = array<i32>} : memref<64x64xf32, #tpu.memory_space<vmem>>, vector<8x64xf32>,
    %c48 = arith.constant 48 : index
    %c0_144 = arith.constant 0 : index
    %232 = vector.load %arg8[%c48, %c0_144] : memref<64x512xf32, #tpu.memory_space<vmem>>, vector<8x512xf32>
    %233 = arith.mulf %232, %217 : vector<8x512xf32>
    %c48_145 = arith.constant 48 : index
    %c0_146 = arith.constant 0 : index
    %234 = vector.load %arg7[%c48_145, %c0_146] : memref<64x1024xf32, #tpu.memory_space<vmem>>, vector<8x512xf32>
    %235 = arith.addf %233, %234 : vector<8x512xf32>
    %c48_147 = arith.constant 48 : index
    %c512_148 = arith.constant 512 : index
    %236 = vector.load %arg7[%c48_147, %c512_148] : memref<64x1024xf32, #tpu.memory_space<vmem>>, vector<8x512xf32>
    %237 = arith.mulf %236, %235 : vector<8x512xf32>
    %238 = vector.extract_strided_slice %237 {offsets = [0, 0], sizes = [8, 256], strides = [1, 1]} : vector<8x512xf32> to vector<8x256xf32>
    %239 = vector.extract_strided_slice %237 {offsets = [0, 256], sizes = [8, 256], strides = [1, 1]} : vector<8x512xf32> to vector<8x256xf32>
    %240 = arith.addf %238, %239 : vector<8x256xf32>
    %241 = vector.extract_strided_slice %240 {offsets = [0, 0], sizes = [8, 128], strides = [1, 1]} : vector<8x256xf32> to vector<8x128xf32>
    %242 = vector.extract_strided_slice %240 {offsets = [0, 128], sizes = [8, 128], strides = [1, 1]} : vector<8x256xf32> to vector<8x128xf32>
    %243 = arith.addf %241, %242 : vector<8x128xf32>
    %244 = vector.extract_strided_slice %243 {offsets = [0, 0], sizes = [8, 64], strides = [1, 1]} : vector<8x128xf32> to vector<8x64xf32>
    %245 = vector.extract_strided_slice %243 {offsets = [0, 64], sizes = [8, 64], strides = [1, 1]} : vector<8x128xf32> to vector<8x64xf32>
    %246 = arith.addf %244, %245 : vector<8x64xf32>
    %c48_149 = arith.constant 48 : index
    %c0_150 = arith.constant 0 : index
    %247 = vector.load %arg6[%c48_149, %c0_150] : memref<64x64xf32, #tpu.memory_space<vmem>>, vector<8x64xf32>
    %248 = arith.addf %247, %246 : vector<8x64xf32>
    %c48_151 = arith.constant 48 : index
    %c0_152 = arith.constant 0 : index
    %249 = vector.load %arg6[%c48_151, %c0_152] : memref<64x64xf32, #tpu.memory_space<vmem>>, vector<8x64xf32>
    tpu.vector_store %arg6[%c48_151, %c0_152], %248 {strides = array<i32>} : memref<64x64xf32, #tpu.memory_space<vmem>>, vector<8x64xf32>,
    %c56 = arith.constant 56 : index
    %c0_153 = arith.constant 0 : index
    %250 = vector.load %arg8[%c56, %c0_153] : memref<64x512xf32, #tpu.memory_space<vmem>>, vector<8x512xf32>
    %251 = arith.mulf %250, %235 : vector<8x512xf32>
    %c56_154 = arith.constant 56 : index
    %c0_155 = arith.constant 0 : index
    %252 = vector.load %arg7[%c56_154, %c0_155] : memref<64x1024xf32, #tpu.memory_space<vmem>>, vector<8x512xf32>
    %253 = arith.addf %251, %252 : vector<8x512xf32>
    %c56_156 = arith.constant 56 : index
    %c512_157 = arith.constant 512 : index
    %254 = vector.load %arg7[%c56_156, %c512_157] : memref<64x1024xf32, #tpu.memory_space<vmem>>, vector<8x512xf32>
    %255 = arith.mulf %254, %253 : vector<8x512xf32>
    %256 = vector.extract_strided_slice %255 {offsets = [0, 0], sizes = [8, 256], strides = [1, 1]} : vector<8x512xf32> to vector<8x256xf32>
    %257 = vector.extract_strided_slice %255 {offsets = [0, 256], sizes = [8, 256], strides = [1, 1]} : vector<8x512xf32> to vector<8x256xf32>
    %258 = arith.addf %256, %257 : vector<8x256xf32>
    %259 = vector.extract_strided_slice %258 {offsets = [0, 0], sizes = [8, 128], strides = [1, 1]} : vector<8x256xf32> to vector<8x128xf32>
    %260 = vector.extract_strided_slice %258 {offsets = [0, 128], sizes = [8, 128], strides = [1, 1]} : vector<8x256xf32> to vector<8x128xf32>
    %261 = arith.addf %259, %260 : vector<8x128xf32>
    %262 = vector.extract_strided_slice %261 {offsets = [0, 0], sizes = [8, 64], strides = [1, 1]} : vector<8x128xf32> to vector<8x64xf32>
    %263 = vector.extract_strided_slice %261 {offsets = [0, 64], sizes = [8, 64], strides = [1, 1]} : vector<8x128xf32> to vector<8x64xf32>
    %264 = arith.addf %262, %263 : vector<8x64xf32>
    %c56_158 = arith.constant 56 : index
    %c0_159 = arith.constant 0 : index
    %265 = vector.load %arg6[%c56_158, %c0_159] : memref<64x64xf32, #tpu.memory_space<vmem>>, vector<8x64xf32>
    %266 = arith.addf %265, %264 : vector<8x64xf32>
    %c56_160 = arith.constant 56 : index
    %c0_161 = arith.constant 0 : index
    %267 = vector.load %arg6[%c56_160, %c0_161] : memref<64x64xf32, #tpu.memory_space<vmem>>, vector<8x64xf32>
    tpu.vector_store %arg6[%c56_160, %c0_161], %266 {strides = array<i32>} : memref<64x64xf32, #tpu.memory_space<vmem>>, vector<8x64xf32>,
    %c0_162 = arith.constant 0 : index
    %c0_163 = arith.constant 0 : index
    %268 = vector.load %arg6[%c0_162, %c0_163] : memref<64x64xf32, #tpu.memory_space<vmem>>, vector<64x64xf32>
    %c0_164 = arith.constant 0 : index
    %c0_165 = arith.constant 0 : index
    %269 = vector.load %arg5[%c0_164, %c0_165] : memref<64x64xf32, #tpu.memory_space<vmem>>, vector<64x64xf32>
    %270 = arith.mulf %268, %269 : vector<64x64xf32>
    %271 = arith.truncf %270 : vector<64x64xf32> to vector<64x64xbf16>
    %c0_166 = arith.constant 0 : index
    %c1280 = arith.constant 1280 : index
    %272 = vector.load %arg1[%c0_166, %c1280] : memref<64x2944xbf16, #tpu.memory_space<vmem>>, vector<64x128xbf16>
    %cst_167 = arith.constant dense<0.000000e+00> : vector<64x128xf32>
    %273 = tpu.matmul %271, %272, %cst_167 {dimension_numbers = #tpu.dot_dimension_numbers<[1], [0], [0], [1], [0, 0, 1, 1], [], []>} : vector<64x64xbf16>, vector<64x128xbf16>, vector<64x128xf32> -> vector<64x128xf32>
    %274 = vector.extract_strided_slice %273 {offsets = [0, 0], sizes = [64, 64], strides = [1, 1]} : vector<64x128xf32> to vector<64x64xf32>
    %c9 = arith.constant 9 : index
    %c0_168 = arith.constant 0 : index
    %275 = vector.load %arg2[%c9, %c0_168] : memref<24x512xf32, #tpu.memory_space<vmem>>, vector<1x64xf32>
    %276 = vector.broadcast %275 : vector<1x64xf32> to vector<64x64xf32>
    %277 = arith.addf %274, %276 : vector<64x64xf32>
    %cst_169 = arith.constant 0.000000e+00 : f32
    %278 = vector.broadcast %cst_169 : f32 to vector<64x64xf32>
    %279 = arith.maximumf %277, %278 : vector<64x64xf32>
    %280 = arith.truncf %279 : vector<64x64xf32> to vector<64x64xbf16>
    %c0_170 = arith.constant 0 : index
    %c1408 = arith.constant 1408 : index
    %281 = vector.load %arg1[%c0_170, %c1408] : memref<64x2944xbf16, #tpu.memory_space<vmem>>, vector<64x128xbf16>
    %cst_171 = arith.constant dense<0.000000e+00> : vector<64x128xf32>
    %282 = tpu.matmul %280, %281, %cst_171 {dimension_numbers = #tpu.dot_dimension_numbers<[1], [0], [0], [1], [0, 0, 1, 1], [], []>} : vector<64x64xbf16>, vector<64x128xbf16>, vector<64x128xf32> -> vector<64x128xf32>
    %c10 = arith.constant 10 : index
    %c0_172 = arith.constant 0 : index
    %283 = vector.load %arg2[%c10, %c0_172] : memref<24x512xf32, #tpu.memory_space<vmem>>, vector<1x128xf32>
    %284 = vector.broadcast %283 : vector<1x128xf32> to vector<64x128xf32>
    %285 = arith.addf %282, %284 : vector<64x128xf32>
    %286 = vector.extract_strided_slice %285 {offsets = [0, 64], sizes = [64, 64], strides = [1, 1]} : vector<64x128xf32> to vector<64x64xf32>
    %cst_173 = arith.constant 5.000000e-01 : f32
    %287 = vector.broadcast %cst_173 : f32 to vector<64x64xf32>
    %288 = arith.mulf %287, %286 : vector<64x64xf32>
    %289 = math.tanh %288 : vector<64x64xf32>
    %cst_174 = arith.constant 1.000000e+00 : f32
    %290 = vector.broadcast %cst_174 : f32 to vector<64x64xf32>
    %291 = arith.addf %290, %289 : vector<64x64xf32>
    %cst_175 = arith.constant 5.000000e-01 : f32
    %292 = vector.broadcast %cst_175 : f32 to vector<64x64xf32>
    %293 = arith.mulf %292, %291 : vector<64x64xf32>
    %294 = arith.mulf %286, %293 : vector<64x64xf32>
    %c0_176 = arith.constant 0 : index
    %c0_177 = arith.constant 0 : index
    %295 = vector.load %arg5[%c0_176, %c0_177] : memref<64x64xf32, #tpu.memory_space<vmem>>, vector<64x64xf32>
    tpu.vector_store %arg5[%c0_176, %c0_177], %294 {strides = array<i32>} : memref<64x64xf32, #tpu.memory_space<vmem>>, vector<64x64xf32>,
    %296 = vector.extract_strided_slice %285 {offsets = [0, 0], sizes = [64, 64], strides = [1, 1]} : vector<64x128xf32> to vector<64x64xf32>
    %c24_178 = arith.constant 24 : index
    %c0_179 = arith.constant 0 : index
    %297 = vector.load %arg4[%c24_178, %c0_179] : memref<88x64xf32, #tpu.memory_space<vmem>>, vector<64x64xf32>
    tpu.vector_store %arg4[%c24_178, %c0_179], %296 {strides = array<i32>} : memref<88x64xf32, #tpu.memory_space<vmem>>, vector<64x64xf32>,
    %c15 = arith.constant 15 : index
    %c0_180 = arith.constant 0 : index
    %298 = vector.load %arg2[%c15, %c0_180] : memref<24x512xf32, #tpu.memory_space<vmem>>, vector<1x64xf32>
    %c0_181 = arith.constant 0 : index
    %c0_182 = arith.constant 0 : index
    %299 = vector.load %arg4[%c0_181, %c0_182] : memref<88x64xf32, #tpu.memory_space<vmem>>, vector<64x64xf32>
    %c11 = arith.constant 11 : index
    %c0_183 = arith.constant 0 : index
    %300 = vector.load %arg2[%c11, %c0_183] : memref<24x512xf32, #tpu.memory_space<vmem>>, vector<1x64xf32>
    %301 = vector.broadcast %300 : vector<1x64xf32> to vector<64x64xf32>
    %302 = arith.mulf %299, %301 : vector<64x64xf32>
    %303 = vector.broadcast %298 : vector<1x64xf32> to vector<64x64xf32>
    %304 = arith.addf %303, %302 : vector<64x64xf32>
    %c8_184 = arith.constant 8 : index
    %c0_185 = arith.constant 0 : index
    %305 = vector.load %arg4[%c8_184, %c0_185] : memref<88x64xf32, #tpu.memory_space<vmem>>, vector<64x64xf32>
    %c12 = arith.constant 12 : index
    %c0_186 = arith.constant 0 : index
    %306 = vector.load %arg2[%c12, %c0_186] : memref<24x512xf32, #tpu.memory_space<vmem>>, vector<1x64xf32>
    %307 = vector.broadcast %306 : vector<1x64xf32> to vector<64x64xf32>
    %308 = arith.mulf %305, %307 : vector<64x64xf32>
    %309 = arith.addf %304, %308 : vector<64x64xf32>
    %c16_187 = arith.constant 16 : index
    %c0_188 = arith.constant 0 : index
    %310 = vector.load %arg4[%c16_187, %c0_188] : memref<88x64xf32, #tpu.memory_space<vmem>>, vector<64x64xf32>
    %c13 = arith.constant 13 : index
    %c0_189 = arith.constant 0 : index
    %311 = vector.load %arg2[%c13, %c0_189] : memref<24x512xf32, #tpu.memory_space<vmem>>, vector<1x64xf32>
    %312 = vector.broadcast %311 : vector<1x64xf32> to vector<64x64xf32>
    %313 = arith.mulf %310, %312 : vector<64x64xf32>
    %314 = arith.addf %309, %313 : vector<64x64xf32>
    %c24_190 = arith.constant 24 : index
    %c0_191 = arith.constant 0 : index
    %315 = vector.load %arg4[%c24_190, %c0_191] : memref<88x64xf32, #tpu.memory_space<vmem>>, vector<64x64xf32>
    %c14 = arith.constant 14 : index
    %c0_192 = arith.constant 0 : index
    %316 = vector.load %arg2[%c14, %c0_192] : memref<24x512xf32, #tpu.memory_space<vmem>>, vector<1x64xf32>
    %317 = vector.broadcast %316 : vector<1x64xf32> to vector<64x64xf32>
    %318 = arith.mulf %315, %317 : vector<64x64xf32>
    %319 = arith.addf %314, %318 : vector<64x64xf32>
    %cst_193 = arith.constant 5.000000e-01 : f32
    %320 = vector.broadcast %cst_193 : f32 to vector<64x64xf32>
    %321 = arith.mulf %320, %319 : vector<64x64xf32>
    %322 = math.tanh %321 : vector<64x64xf32>
    %cst_194 = arith.constant 1.000000e+00 : f32
    %323 = vector.broadcast %cst_194 : f32 to vector<64x64xf32>
    %324 = arith.addf %323, %322 : vector<64x64xf32>
    %cst_195 = arith.constant 5.000000e-01 : f32
    %325 = vector.broadcast %cst_195 : f32 to vector<64x64xf32>
    %326 = arith.mulf %325, %324 : vector<64x64xf32>
    %327 = arith.mulf %319, %326 : vector<64x64xf32>
    %328 = arith.truncf %327 : vector<64x64xf32> to vector<64x64xbf16>
    %c0_196 = arith.constant 0 : index
    %c2560 = arith.constant 2560 : index
    %329 = vector.load %arg1[%c0_196, %c2560] : memref<64x2944xbf16, #tpu.memory_space<vmem>>, vector<64x128xbf16>
    %cst_197 = arith.constant dense<0.000000e+00> : vector<64x128xf32>
    %330 = tpu.matmul %328, %329, %cst_197 {dimension_numbers = #tpu.dot_dimension_numbers<[1], [0], [0], [1], [0, 0, 1, 1], [], []>} : vector<64x64xbf16>, vector<64x128xbf16>, vector<64x128xf32> -> vector<64x128xf32>
    %331 = vector.extract_strided_slice %330 {offsets = [0, 0], sizes = [64, 64], strides = [1, 1]} : vector<64x128xf32> to vector<64x64xf32>
    %c16_198 = arith.constant 16 : index
    %c0_199 = arith.constant 0 : index
    %332 = vector.load %arg2[%c16_198, %c0_199] : memref<24x512xf32, #tpu.memory_space<vmem>>, vector<1x64xf32>
    %333 = vector.broadcast %332 : vector<1x64xf32> to vector<64x64xf32>
    %334 = arith.addf %331, %333 : vector<64x64xf32>
    %cst_200 = arith.constant 0.000000e+00 : f32
    %335 = vector.broadcast %cst_200 : f32 to vector<64x64xf32>
    %336 = arith.maximumf %334, %335 : vector<64x64xf32>
    %337 = math.absf %334 : vector<64x64xf32>
    %cst_201 = arith.constant 0.000000e+00 : f32
    %338 = vector.broadcast %cst_201 : f32 to vector<64x64xf32>
    %339 = arith.subf %338, %337 : vector<64x64xf32>
    %340 = math.exp %339 : vector<64x64xf32>
    %cst_202 = arith.constant 1.000000e+00 : f32
    %341 = vector.broadcast %cst_202 : f32 to vector<64x64xf32>
    %342 = arith.addf %341, %340 : vector<64x64xf32>
    %343 = math.log %342 : vector<64x64xf32>
    %344 = arith.addf %336, %343 : vector<64x64xf32>
    %345 = arith.mulf %344, %327 : vector<64x64xf32>
    %c18 = arith.constant 18 : index
    %c0_203 = arith.constant 0 : index
    %346 = vector.load %arg2[%c18, %c0_203] : memref<24x512xf32, #tpu.memory_space<vmem>>, vector<1x64xf32>
    %347 = vector.broadcast %346 : vector<1x64xf32> to vector<64x64xf32>
    %348 = arith.mulf %347, %327 : vector<64x64xf32>
    %c0_204 = arith.constant 0 : index
    %c0_205 = arith.constant 0 : index
    %349 = vector.load %arg6[%c0_204, %c0_205] : memref<64x64xf32, #tpu.memory_space<vmem>>, vector<64x64xf32>
    tpu.vector_store %arg6[%c0_204, %c0_205], %348 {strides = array<i32>} : memref<64x64xf32, #tpu.memory_space<vmem>>, vector<64x64xf32>,
    %350 = tpu.concatenate %344, %344 in 1 : vector<64x64xf32>, vector<64x64xf32> -> vector<64x128xf32>
    %351 = tpu.concatenate %345, %345 in 1 : vector<64x64xf32>, vector<64x64xf32> -> vector<64x128xf32>
    %c0_206 = arith.constant 0 : index
    %c1536 = arith.constant 1536 : index
    %352 = vector.load %arg1[%c0_206, %c1536] : memref<64x2944xbf16, #tpu.memory_space<vmem>>, vector<64x128xbf16>
    %cst_207 = arith.constant dense<0.000000e+00> : vector<64x128xf32>
    %353 = tpu.matmul %328, %352, %cst_207 {dimension_numbers = #tpu.dot_dimension_numbers<[1], [0], [0], [1], [0, 0, 1, 1], [], []>} : vector<64x64xbf16>, vector<64x128xbf16>, vector<64x128xf32> -> vector<64x128xf32>
    %354 = arith.mulf %353, %351 : vector<64x128xf32>
    %c0_208 = arith.constant 0 : index
    %c0_209 = arith.constant 0 : index
    %355 = vector.load %arg7[%c0_208, %c0_209] : memref<64x1024xf32, #tpu.memory_space<vmem>>, vector<64x128xf32>
    tpu.vector_store %arg7[%c0_208, %c0_209], %354 {strides = array<i32>} : memref<64x1024xf32, #tpu.memory_space<vmem>>, vector<64x128xf32>,
    %c17 = arith.constant 17 : index
    %c0_210 = arith.constant 0 : index
    %356 = vector.load %arg2[%c17, %c0_210] : memref<24x512xf32, #tpu.memory_space<vmem>>, vector<1x128xf32>
    %357 = vector.broadcast %356 : vector<1x128xf32> to vector<64x128xf32>
    %358 = arith.mulf %350, %357 : vector<64x128xf32>
    %359 = math.exp %358 : vector<64x128xf32>
    %c0_211 = arith.constant 0 : index
    %c0_212 = arith.constant 0 : index
    %360 = vector.load %arg8[%c0_211, %c0_212] : memref<64x512xf32, #tpu.memory_space<vmem>>, vector<64x128xf32>
    tpu.vector_store %arg8[%c0_211, %c0_212], %359 {strides = array<i32>} : memref<64x512xf32, #tpu.memory_space<vmem>>, vector<64x128xf32>,
    %c0_213 = arith.constant 0 : index
    %c1664 = arith.constant 1664 : index
    %361 = vector.load %arg1[%c0_213, %c1664] : memref<64x2944xbf16, #tpu.memory_space<vmem>>, vector<64x128xbf16>
    %cst_214 = arith.constant dense<0.000000e+00> : vector<64x128xf32>
    %362 = tpu.matmul %328, %361, %cst_214 {dimension_numbers = #tpu.dot_dimension_numbers<[1], [0], [0], [1], [0, 0, 1, 1], [], []>} : vector<64x64xbf16>, vector<64x128xbf16>, vector<64x128xf32> -> vector<64x128xf32>
    %363 = arith.mulf %362, %351 : vector<64x128xf32>
    %c0_215 = arith.constant 0 : index
    %c128_216 = arith.constant 128 : index
    %364 = vector.load %arg7[%c0_215, %c128_216] : memref<64x1024xf32, #tpu.memory_space<vmem>>, vector<64x128xf32>
    tpu.vector_store %arg7[%c0_215, %c128_216], %363 {strides = array<i32>} : memref<64x1024xf32, #tpu.memory_space<vmem>>, vector<64x128xf32>,
    %c17_217 = arith.constant 17 : index
    %c128_218 = arith.constant 128 : index
    %365 = vector.load %arg2[%c17_217, %c128_218] : memref<24x512xf32, #tpu.memory_space<vmem>>, vector<1x128xf32>
    %366 = vector.broadcast %365 : vector<1x128xf32> to vector<64x128xf32>
    %367 = arith.mulf %350, %366 : vector<64x128xf32>
    %368 = math.exp %367 : vector<64x128xf32>
    %c0_219 = arith.constant 0 : index
    %c128_220 = arith.constant 128 : index
    %369 = vector.load %arg8[%c0_219, %c128_220] : memref<64x512xf32, #tpu.memory_space<vmem>>, vector<64x128xf32>
    tpu.vector_store %arg8[%c0_219, %c128_220], %368 {strides = array<i32>} : memref<64x512xf32, #tpu.memory_space<vmem>>, vector<64x128xf32>,
    %c0_221 = arith.constant 0 : index
    %c1792 = arith.constant 1792 : index
    %370 = vector.load %arg1[%c0_221, %c1792] : memref<64x2944xbf16, #tpu.memory_space<vmem>>, vector<64x128xbf16>
    %cst_222 = arith.constant dense<0.000000e+00> : vector<64x128xf32>
    %371 = tpu.matmul %328, %370, %cst_222 {dimension_numbers = #tpu.dot_dimension_numbers<[1], [0], [0], [1], [0, 0, 1, 1], [], []>} : vector<64x64xbf16>, vector<64x128xbf16>, vector<64x128xf32> -> vector<64x128xf32>
    %372 = arith.mulf %371, %351 : vector<64x128xf32>
    %c0_223 = arith.constant 0 : index
    %c256_224 = arith.constant 256 : index
    %373 = vector.load %arg7[%c0_223, %c256_224] : memref<64x1024xf32, #tpu.memory_space<vmem>>, vector<64x128xf32>
    tpu.vector_store %arg7[%c0_223, %c256_224], %372 {strides = array<i32>} : memref<64x1024xf32, #tpu.memory_space<vmem>>, vector<64x128xf32>,
    %c17_225 = arith.constant 17 : index
    %c256_226 = arith.constant 256 : index
    %374 = vector.load %arg2[%c17_225, %c256_226] : memref<24x512xf32, #tpu.memory_space<vmem>>, vector<1x128xf32>
    %375 = vector.broadcast %374 : vector<1x128xf32> to vector<64x128xf32>
    %376 = arith.mulf %350, %375 : vector<64x128xf32>
    %377 = math.exp %376 : vector<64x128xf32>
    %c0_227 = arith.constant 0 : index
    %c256_228 = arith.constant 256 : index
    %378 = vector.load %arg8[%c0_227, %c256_228] : memref<64x512xf32, #tpu.memory_space<vmem>>, vector<64x128xf32>
    tpu.vector_store %arg8[%c0_227, %c256_228], %377 {strides = array<i32>} : memref<64x512xf32, #tpu.memory_space<vmem>>, vector<64x128xf32>,
    %c0_229 = arith.constant 0 : index
    %c1920 = arith.constant 1920 : index
    %379 = vector.load %arg1[%c0_229, %c1920] : memref<64x2944xbf16, #tpu.memory_space<vmem>>, vector<64x128xbf16>
    %cst_230 = arith.constant dense<0.000000e+00> : vector<64x128xf32>
    %380 = tpu.matmul %328, %379, %cst_230 {dimension_numbers = #tpu.dot_dimension_numbers<[1], [0], [0], [1], [0, 0, 1, 1], [], []>} : vector<64x64xbf16>, vector<64x128xbf16>, vector<64x128xf32> -> vector<64x128xf32>
    %381 = arith.mulf %380, %351 : vector<64x128xf32>
    %c0_231 = arith.constant 0 : index
    %c384_232 = arith.constant 384 : index
    %382 = vector.load %arg7[%c0_231, %c384_232] : memref<64x1024xf32, #tpu.memory_space<vmem>>, vector<64x128xf32>
    tpu.vector_store %arg7[%c0_231, %c384_232], %381 {strides = array<i32>} : memref<64x1024xf32, #tpu.memory_space<vmem>>, vector<64x128xf32>,
    %c17_233 = arith.constant 17 : index
    %c384_234 = arith.constant 384 : index
    %383 = vector.load %arg2[%c17_233, %c384_234] : memref<24x512xf32, #tpu.memory_space<vmem>>, vector<1x128xf32>
    %384 = vector.broadcast %383 : vector<1x128xf32> to vector<64x128xf32>
    %385 = arith.mulf %350, %384 : vector<64x128xf32>
    %386 = math.exp %385 : vector<64x128xf32>
    %c0_235 = arith.constant 0 : index
    %c384_236 = arith.constant 384 : index
    %387 = vector.load %arg8[%c0_235, %c384_236] : memref<64x512xf32, #tpu.memory_space<vmem>>, vector<64x128xf32>
    tpu.vector_store %arg8[%c0_235, %c384_236], %386 {strides = array<i32>} : memref<64x512xf32, #tpu.memory_space<vmem>>, vector<64x128xf32>,
    %c0_237 = arith.constant 0 : index
    %c2048 = arith.constant 2048 : index
    %388 = vector.load %arg1[%c0_237, %c2048] : memref<64x2944xbf16, #tpu.memory_space<vmem>>, vector<64x128xbf16>
    %cst_238 = arith.constant dense<0.000000e+00> : vector<64x128xf32>
    %389 = tpu.matmul %328, %388, %cst_238 {dimension_numbers = #tpu.dot_dimension_numbers<[1], [0], [0], [1], [0, 0, 1, 1], [], []>} : vector<64x64xbf16>, vector<64x128xbf16>, vector<64x128xf32> -> vector<64x128xf32>
    %c0_239 = arith.constant 0 : index
    %c512_240 = arith.constant 512 : index
    %390 = vector.load %arg7[%c0_239, %c512_240] : memref<64x1024xf32, #tpu.memory_space<vmem>>, vector<64x128xf32>
    tpu.vector_store %arg7[%c0_239, %c512_240], %389 {strides = array<i32>} : memref<64x1024xf32, #tpu.memory_space<vmem>>, vector<64x128xf32>,
    %c0_241 = arith.constant 0 : index
    %c2176 = arith.constant 2176 : index
    %391 = vector.load %arg1[%c0_241, %c2176] : memref<64x2944xbf16, #tpu.memory_space<vmem>>, vector<64x128xbf16>
    %cst_242 = arith.constant dense<0.000000e+00> : vector<64x128xf32>
    %392 = tpu.matmul %328, %391, %cst_242 {dimension_numbers = #tpu.dot_dimension_numbers<[1], [0], [0], [1], [0, 0, 1, 1], [], []>} : vector<64x64xbf16>, vector<64x128xbf16>, vector<64x128xf32> -> vector<64x128xf32>
    %c0_243 = arith.constant 0 : index
    %c640_244 = arith.constant 640 : index
    %393 = vector.load %arg7[%c0_243, %c640_244] : memref<64x1024xf32, #tpu.memory_space<vmem>>, vector<64x128xf32>
    tpu.vector_store %arg7[%c0_243, %c640_244], %392 {strides = array<i32>} : memref<64x1024xf32, #tpu.memory_space<vmem>>, vector<64x128xf32>,
    %c0_245 = arith.constant 0 : index
    %c2304 = arith.constant 2304 : index
    %394 = vector.load %arg1[%c0_245, %c2304] : memref<64x2944xbf16, #tpu.memory_space<vmem>>, vector<64x128xbf16>
    %cst_246 = arith.constant dense<0.000000e+00> : vector<64x128xf32>
    %395 = tpu.matmul %328, %394, %cst_246 {dimension_numbers = #tpu.dot_dimension_numbers<[1], [0], [0], [1], [0, 0, 1, 1], [], []>} : vector<64x64xbf16>, vector<64x128xbf16>, vector<64x128xf32> -> vector<64x128xf32>
    %c0_247 = arith.constant 0 : index
    %c768_248 = arith.constant 768 : index
    %396 = vector.load %arg7[%c0_247, %c768_248] : memref<64x1024xf32, #tpu.memory_space<vmem>>, vector<64x128xf32>
    tpu.vector_store %arg7[%c0_247, %c768_248], %395 {strides = array<i32>} : memref<64x1024xf32, #tpu.memory_space<vmem>>, vector<64x128xf32>,
    %c0_249 = arith.constant 0 : index
    %c2432 = arith.constant 2432 : index
    %397 = vector.load %arg1[%c0_249, %c2432] : memref<64x2944xbf16, #tpu.memory_space<vmem>>, vector<64x128xbf16>
    %cst_250 = arith.constant dense<0.000000e+00> : vector<64x128xf32>
    %398 = tpu.matmul %328, %397, %cst_250 {dimension_numbers = #tpu.dot_dimension_numbers<[1], [0], [0], [1], [0, 0, 1, 1], [], []>} : vector<64x64xbf16>, vector<64x128xbf16>, vector<64x128xf32> -> vector<64x128xf32>
    %c0_251 = arith.constant 0 : index
    %c896_252 = arith.constant 896 : index
    %399 = vector.load %arg7[%c0_251, %c896_252] : memref<64x1024xf32, #tpu.memory_space<vmem>>, vector<64x128xf32>
    tpu.vector_store %arg7[%c0_251, %c896_252], %398 {strides = array<i32>} : memref<64x1024xf32, #tpu.memory_space<vmem>>, vector<64x128xf32>,
    %cst_253 = arith.constant 0.000000e+00 : f32
    %400 = vector.broadcast %cst_253 : f32 to vector<8x512xf32>
    %c0_254 = arith.constant 0 : index
    %c0_255 = arith.constant 0 : index
    %401 = vector.load %arg8[%c0_254, %c0_255] : memref<64x512xf32, #tpu.memory_space<vmem>>, vector<8x512xf32>
    %402 = arith.mulf %401, %400 : vector<8x512xf32>
    %c0_256 = arith.constant 0 : index
    %c0_257 = arith.constant 0 : index
    %403 = vector.load %arg7[%c0_256, %c0_257] : memref<64x1024xf32, #tpu.memory_space<vmem>>, vector<8x512xf32>
    %404 = arith.addf %402, %403 : vector<8x512xf32>
    %c0_258 = arith.constant 0 : index
    %c512_259 = arith.constant 512 : index
    %405 = vector.load %arg7[%c0_258, %c512_259] : memref<64x1024xf32, #tpu.memory_space<vmem>>, vector<8x512xf32>
    %406 = arith.mulf %405, %404 : vector<8x512xf32>
    %407 = vector.extract_strided_slice %406 {offsets = [0, 0], sizes = [8, 256], strides = [1, 1]} : vector<8x512xf32> to vector<8x256xf32>
    %408 = vector.extract_strided_slice %406 {offsets = [0, 256], sizes = [8, 256], strides = [1, 1]} : vector<8x512xf32> to vector<8x256xf32>
    %409 = arith.addf %407, %408 : vector<8x256xf32>
    %410 = vector.extract_strided_slice %409 {offsets = [0, 0], sizes = [8, 128], strides = [1, 1]} : vector<8x256xf32> to vector<8x128xf32>
    %411 = vector.extract_strided_slice %409 {offsets = [0, 128], sizes = [8, 128], strides = [1, 1]} : vector<8x256xf32> to vector<8x128xf32>
    %412 = arith.addf %410, %411 : vector<8x128xf32>
    %413 = vector.extract_strided_slice %412 {offsets = [0, 0], sizes = [8, 64], strides = [1, 1]} : vector<8x128xf32> to vector<8x64xf32>
    %414 = vector.extract_strided_slice %412 {offsets = [0, 64], sizes = [8, 64], strides = [1, 1]} : vector<8x128xf32> to vector<8x64xf32>
    %415 = arith.addf %413, %414 : vector<8x64xf32>
    %c0_260 = arith.constant 0 : index
    %c0_261 = arith.constant 0 : index
    %416 = vector.load %arg6[%c0_260, %c0_261] : memref<64x64xf32, #tpu.memory_space<vmem>>, vector<8x64xf32>
    %417 = arith.addf %416, %415 : vector<8x64xf32>
    %c0_262 = arith.constant 0 : index
    %c0_263 = arith.constant 0 : index
    %418 = vector.load %arg6[%c0_262, %c0_263] : memref<64x64xf32, #tpu.memory_space<vmem>>, vector<8x64xf32>
    tpu.vector_store %arg6[%c0_262, %c0_263], %417 {strides = array<i32>} : memref<64x64xf32, #tpu.memory_space<vmem>>, vector<8x64xf32>,
    %c8_264 = arith.constant 8 : index
    %c0_265 = arith.constant 0 : index
    %419 = vector.load %arg8[%c8_264, %c0_265] : memref<64x512xf32, #tpu.memory_space<vmem>>, vector<8x512xf32>
    %420 = arith.mulf %419, %404 : vector<8x512xf32>
    %c8_266 = arith.constant 8 : index
    %c0_267 = arith.constant 0 : index
    %421 = vector.load %arg7[%c8_266, %c0_267] : memref<64x1024xf32, #tpu.memory_space<vmem>>, vector<8x512xf32>
    %422 = arith.addf %420, %421 : vector<8x512xf32>
    %c8_268 = arith.constant 8 : index
    %c512_269 = arith.constant 512 : index
    %423 = vector.load %arg7[%c8_268, %c512_269] : memref<64x1024xf32, #tpu.memory_space<vmem>>, vector<8x512xf32>
    %424 = arith.mulf %423, %422 : vector<8x512xf32>
    %425 = vector.extract_strided_slice %424 {offsets = [0, 0], sizes = [8, 256], strides = [1, 1]} : vector<8x512xf32> to vector<8x256xf32>
    %426 = vector.extract_strided_slice %424 {offsets = [0, 256], sizes = [8, 256], strides = [1, 1]} : vector<8x512xf32> to vector<8x256xf32>
    %427 = arith.addf %425, %426 : vector<8x256xf32>
    %428 = vector.extract_strided_slice %427 {offsets = [0, 0], sizes = [8, 128], strides = [1, 1]} : vector<8x256xf32> to vector<8x128xf32>
    %429 = vector.extract_strided_slice %427 {offsets = [0, 128], sizes = [8, 128], strides = [1, 1]} : vector<8x256xf32> to vector<8x128xf32>
    %430 = arith.addf %428, %429 : vector<8x128xf32>
    %431 = vector.extract_strided_slice %430 {offsets = [0, 0], sizes = [8, 64], strides = [1, 1]} : vector<8x128xf32> to vector<8x64xf32>
    %432 = vector.extract_strided_slice %430 {offsets = [0, 64], sizes = [8, 64], strides = [1, 1]} : vector<8x128xf32> to vector<8x64xf32>
    %433 = arith.addf %431, %432 : vector<8x64xf32>
    %c8_270 = arith.constant 8 : index
    %c0_271 = arith.constant 0 : index
    %434 = vector.load %arg6[%c8_270, %c0_271] : memref<64x64xf32, #tpu.memory_space<vmem>>, vector<8x64xf32>
    %435 = arith.addf %434, %433 : vector<8x64xf32>
    %c8_272 = arith.constant 8 : index
    %c0_273 = arith.constant 0 : index
    %436 = vector.load %arg6[%c8_272, %c0_273] : memref<64x64xf32, #tpu.memory_space<vmem>>, vector<8x64xf32>
    tpu.vector_store %arg6[%c8_272, %c0_273], %435 {strides = array<i32>} : memref<64x64xf32, #tpu.memory_space<vmem>>, vector<8x64xf32>,
    %c16_274 = arith.constant 16 : index
    %c0_275 = arith.constant 0 : index
    %437 = vector.load %arg8[%c16_274, %c0_275] : memref<64x512xf32, #tpu.memory_space<vmem>>, vector<8x512xf32>
    %438 = arith.mulf %437, %422 : vector<8x512xf32>
    %c16_276 = arith.constant 16 : index
    %c0_277 = arith.constant 0 : index
    %439 = vector.load %arg7[%c16_276, %c0_277] : memref<64x1024xf32, #tpu.memory_space<vmem>>, vector<8x512xf32>
    %440 = arith.addf %438, %439 : vector<8x512xf32>
    %c16_278 = arith.constant 16 : index
    %c512_279 = arith.constant 512 : index
    %441 = vector.load %arg7[%c16_278, %c512_279] : memref<64x1024xf32, #tpu.memory_space<vmem>>, vector<8x512xf32>
    %442 = arith.mulf %441, %440 : vector<8x512xf32>
    %443 = vector.extract_strided_slice %442 {offsets = [0, 0], sizes = [8, 256], strides = [1, 1]} : vector<8x512xf32> to vector<8x256xf32>
    %444 = vector.extract_strided_slice %442 {offsets = [0, 256], sizes = [8, 256], strides = [1, 1]} : vector<8x512xf32> to vector<8x256xf32>
    %445 = arith.addf %443, %444 : vector<8x256xf32>
    %446 = vector.extract_strided_slice %445 {offsets = [0, 0], sizes = [8, 128], strides = [1, 1]} : vector<8x256xf32> to vector<8x128xf32>
    %447 = vector.extract_strided_slice %445 {offsets = [0, 128], sizes = [8, 128], strides = [1, 1]} : vector<8x256xf32> to vector<8x128xf32>
    %448 = arith.addf %446, %447 : vector<8x128xf32>
    %449 = vector.extract_strided_slice %448 {offsets = [0, 0], sizes = [8, 64], strides = [1, 1]} : vector<8x128xf32> to vector<8x64xf32>
    %450 = vector.extract_strided_slice %448 {offsets = [0, 64], sizes = [8, 64], strides = [1, 1]} : vector<8x128xf32> to vector<8x64xf32>
    %451 = arith.addf %449, %450 : vector<8x64xf32>
    %c16_280 = arith.constant 16 : index
    %c0_281 = arith.constant 0 : index
    %452 = vector.load %arg6[%c16_280, %c0_281] : memref<64x64xf32, #tpu.memory_space<vmem>>, vector<8x64xf32>
    %453 = arith.addf %452, %451 : vector<8x64xf32>
    %c16_282 = arith.constant 16 : index
    %c0_283 = arith.constant 0 : index
    %454 = vector.load %arg6[%c16_282, %c0_283] : memref<64x64xf32, #tpu.memory_space<vmem>>, vector<8x64xf32>
    tpu.vector_store %arg6[%c16_282, %c0_283], %453 {strides = array<i32>} : memref<64x64xf32, #tpu.memory_space<vmem>>, vector<8x64xf32>,
    %c24_284 = arith.constant 24 : index
    %c0_285 = arith.constant 0 : index
    %455 = vector.load %arg8[%c24_284, %c0_285] : memref<64x512xf32, #tpu.memory_space<vmem>>, vector<8x512xf32>
    %456 = arith.mulf %455, %440 : vector<8x512xf32>
    %c24_286 = arith.constant 24 : index
    %c0_287 = arith.constant 0 : index
    %457 = vector.load %arg7[%c24_286, %c0_287] : memref<64x1024xf32, #tpu.memory_space<vmem>>, vector<8x512xf32>
    %458 = arith.addf %456, %457 : vector<8x512xf32>
    %c24_288 = arith.constant 24 : index
    %c512_289 = arith.constant 512 : index
    %459 = vector.load %arg7[%c24_288, %c512_289] : memref<64x1024xf32, #tpu.memory_space<vmem>>, vector<8x512xf32>
    %460 = arith.mulf %459, %458 : vector<8x512xf32>
    %461 = vector.extract_strided_slice %460 {offsets = [0, 0], sizes = [8, 256], strides = [1, 1]} : vector<8x512xf32> to vector<8x256xf32>
    %462 = vector.extract_strided_slice %460 {offsets = [0, 256], sizes = [8, 256], strides = [1, 1]} : vector<8x512xf32> to vector<8x256xf32>
    %463 = arith.addf %461, %462 : vector<8x256xf32>
    %464 = vector.extract_strided_slice %463 {offsets = [0, 0], sizes = [8, 128], strides = [1, 1]} : vector<8x256xf32> to vector<8x128xf32>
    %465 = vector.extract_strided_slice %463 {offsets = [0, 128], sizes = [8, 128], strides = [1, 1]} : vector<8x256xf32> to vector<8x128xf32>
    %466 = arith.addf %464, %465 : vector<8x128xf32>
    %467 = vector.extract_strided_slice %466 {offsets = [0, 0], sizes = [8, 64], strides = [1, 1]} : vector<8x128xf32> to vector<8x64xf32>
    %468 = vector.extract_strided_slice %466 {offsets = [0, 64], sizes = [8, 64], strides = [1, 1]} : vector<8x128xf32> to vector<8x64xf32>
    %469 = arith.addf %467, %468 : vector<8x64xf32>
    %c24_290 = arith.constant 24 : index
    %c0_291 = arith.constant 0 : index
    %470 = vector.load %arg6[%c24_290, %c0_291] : memref<64x64xf32, #tpu.memory_space<vmem>>, vector<8x64xf32>
    %471 = arith.addf %470, %469 : vector<8x64xf32>
    %c24_292 = arith.constant 24 : index
    %c0_293 = arith.constant 0 : index
    %472 = vector.load %arg6[%c24_292, %c0_293] : memref<64x64xf32, #tpu.memory_space<vmem>>, vector<8x64xf32>
    tpu.vector_store %arg6[%c24_292, %c0_293], %471 {strides = array<i32>} : memref<64x64xf32, #tpu.memory_space<vmem>>, vector<8x64xf32>,
    %c32_294 = arith.constant 32 : index
    %c0_295 = arith.constant 0 : index
    %473 = vector.load %arg8[%c32_294, %c0_295] : memref<64x512xf32, #tpu.memory_space<vmem>>, vector<8x512xf32>
    %474 = arith.mulf %473, %458 : vector<8x512xf32>
    %c32_296 = arith.constant 32 : index
    %c0_297 = arith.constant 0 : index
    %475 = vector.load %arg7[%c32_296, %c0_297] : memref<64x1024xf32, #tpu.memory_space<vmem>>, vector<8x512xf32>
    %476 = arith.addf %474, %475 : vector<8x512xf32>
    %c32_298 = arith.constant 32 : index
    %c512_299 = arith.constant 512 : index
    %477 = vector.load %arg7[%c32_298, %c512_299] : memref<64x1024xf32, #tpu.memory_space<vmem>>, vector<8x512xf32>
    %478 = arith.mulf %477, %476 : vector<8x512xf32>
    %479 = vector.extract_strided_slice %478 {offsets = [0, 0], sizes = [8, 256], strides = [1, 1]} : vector<8x512xf32> to vector<8x256xf32>
    %480 = vector.extract_strided_slice %478 {offsets = [0, 256], sizes = [8, 256], strides = [1, 1]} : vector<8x512xf32> to vector<8x256xf32>
    %481 = arith.addf %479, %480 : vector<8x256xf32>
    %482 = vector.extract_strided_slice %481 {offsets = [0, 0], sizes = [8, 128], strides = [1, 1]} : vector<8x256xf32> to vector<8x128xf32>
    %483 = vector.extract_strided_slice %481 {offsets = [0, 128], sizes = [8, 128], strides = [1, 1]} : vector<8x256xf32> to vector<8x128xf32>
    %484 = arith.addf %482, %483 : vector<8x128xf32>
    %485 = vector.extract_strided_slice %484 {offsets = [0, 0], sizes = [8, 64], strides = [1, 1]} : vector<8x128xf32> to vector<8x64xf32>
    %486 = vector.extract_strided_slice %484 {offsets = [0, 64], sizes = [8, 64], strides = [1, 1]} : vector<8x128xf32> to vector<8x64xf32>
    %487 = arith.addf %485, %486 : vector<8x64xf32>
    %c32_300 = arith.constant 32 : index
    %c0_301 = arith.constant 0 : index
    %488 = vector.load %arg6[%c32_300, %c0_301] : memref<64x64xf32, #tpu.memory_space<vmem>>, vector<8x64xf32>
    %489 = arith.addf %488, %487 : vector<8x64xf32>
    %c32_302 = arith.constant 32 : index
    %c0_303 = arith.constant 0 : index
    %490 = vector.load %arg6[%c32_302, %c0_303] : memref<64x64xf32, #tpu.memory_space<vmem>>, vector<8x64xf32>
    tpu.vector_store %arg6[%c32_302, %c0_303], %489 {strides = array<i32>} : memref<64x64xf32, #tpu.memory_space<vmem>>, vector<8x64xf32>,
    %c40_304 = arith.constant 40 : index
    %c0_305 = arith.constant 0 : index
    %491 = vector.load %arg8[%c40_304, %c0_305] : memref<64x512xf32, #tpu.memory_space<vmem>>, vector<8x512xf32>
    %492 = arith.mulf %491, %476 : vector<8x512xf32>
    %c40_306 = arith.constant 40 : index
    %c0_307 = arith.constant 0 : index
    %493 = vector.load %arg7[%c40_306, %c0_307] : memref<64x1024xf32, #tpu.memory_space<vmem>>, vector<8x512xf32>
    %494 = arith.addf %492, %493 : vector<8x512xf32>
    %c40_308 = arith.constant 40 : index
    %c512_309 = arith.constant 512 : index
    %495 = vector.load %arg7[%c40_308, %c512_309] : memref<64x1024xf32, #tpu.memory_space<vmem>>, vector<8x512xf32>
    %496 = arith.mulf %495, %494 : vector<8x512xf32>
    %497 = vector.extract_strided_slice %496 {offsets = [0, 0], sizes = [8, 256], strides = [1, 1]} : vector<8x512xf32> to vector<8x256xf32>
    %498 = vector.extract_strided_slice %496 {offsets = [0, 256], sizes = [8, 256], strides = [1, 1]} : vector<8x512xf32> to vector<8x256xf32>
    %499 = arith.addf %497, %498 : vector<8x256xf32>
    %500 = vector.extract_strided_slice %499 {offsets = [0, 0], sizes = [8, 128], strides = [1, 1]} : vector<8x256xf32> to vector<8x128xf32>
    %501 = vector.extract_strided_slice %499 {offsets = [0, 128], sizes = [8, 128], strides = [1, 1]} : vector<8x256xf32> to vector<8x128xf32>
    %502 = arith.addf %500, %501 : vector<8x128xf32>
    %503 = vector.extract_strided_slice %502 {offsets = [0, 0], sizes = [8, 64], strides = [1, 1]} : vector<8x128xf32> to vector<8x64xf32>
    %504 = vector.extract_strided_slice %502 {offsets = [0, 64], sizes = [8, 64], strides = [1, 1]} : vector<8x128xf32> to vector<8x64xf32>
    %505 = arith.addf %503, %504 : vector<8x64xf32>
    %c40_310 = arith.constant 40 : index
    %c0_311 = arith.constant 0 : index
    %506 = vector.load %arg6[%c40_310, %c0_311] : memref<64x64xf32, #tpu.memory_space<vmem>>, vector<8x64xf32>
    %507 = arith.addf %506, %505 : vector<8x64xf32>
    %c40_312 = arith.constant 40 : index
    %c0_313 = arith.constant 0 : index
    %508 = vector.load %arg6[%c40_312, %c0_313] : memref<64x64xf32, #tpu.memory_space<vmem>>, vector<8x64xf32>
    tpu.vector_store %arg6[%c40_312, %c0_313], %507 {strides = array<i32>} : memref<64x64xf32, #tpu.memory_space<vmem>>, vector<8x64xf32>,
    %c48_314 = arith.constant 48 : index
    %c0_315 = arith.constant 0 : index
    %509 = vector.load %arg8[%c48_314, %c0_315] : memref<64x512xf32, #tpu.memory_space<vmem>>, vector<8x512xf32>
    %510 = arith.mulf %509, %494 : vector<8x512xf32>
    %c48_316 = arith.constant 48 : index
    %c0_317 = arith.constant 0 : index
    %511 = vector.load %arg7[%c48_316, %c0_317] : memref<64x1024xf32, #tpu.memory_space<vmem>>, vector<8x512xf32>
    %512 = arith.addf %510, %511 : vector<8x512xf32>
    %c48_318 = arith.constant 48 : index
    %c512_319 = arith.constant 512 : index
    %513 = vector.load %arg7[%c48_318, %c512_319] : memref<64x1024xf32, #tpu.memory_space<vmem>>, vector<8x512xf32>
    %514 = arith.mulf %513, %512 : vector<8x512xf32>
    %515 = vector.extract_strided_slice %514 {offsets = [0, 0], sizes = [8, 256], strides = [1, 1]} : vector<8x512xf32> to vector<8x256xf32>
    %516 = vector.extract_strided_slice %514 {offsets = [0, 256], sizes = [8, 256], strides = [1, 1]} : vector<8x512xf32> to vector<8x256xf32>
    %517 = arith.addf %515, %516 : vector<8x256xf32>
    %518 = vector.extract_strided_slice %517 {offsets = [0, 0], sizes = [8, 128], strides = [1, 1]} : vector<8x256xf32> to vector<8x128xf32>
    %519 = vector.extract_strided_slice %517 {offsets = [0, 128], sizes = [8, 128], strides = [1, 1]} : vector<8x256xf32> to vector<8x128xf32>
    %520 = arith.addf %518, %519 : vector<8x128xf32>
    %521 = vector.extract_strided_slice %520 {offsets = [0, 0], sizes = [8, 64], strides = [1, 1]} : vector<8x128xf32> to vector<8x64xf32>
    %522 = vector.extract_strided_slice %520 {offsets = [0, 64], sizes = [8, 64], strides = [1, 1]} : vector<8x128xf32> to vector<8x64xf32>
    %523 = arith.addf %521, %522 : vector<8x64xf32>
    %c48_320 = arith.constant 48 : index
    %c0_321 = arith.constant 0 : index
    %524 = vector.load %arg6[%c48_320, %c0_321] : memref<64x64xf32, #tpu.memory_space<vmem>>, vector<8x64xf32>
    %525 = arith.addf %524, %523 : vector<8x64xf32>
    %c48_322 = arith.constant 48 : index
    %c0_323 = arith.constant 0 : index
    %526 = vector.load %arg6[%c48_322, %c0_323] : memref<64x64xf32, #tpu.memory_space<vmem>>, vector<8x64xf32>
    tpu.vector_store %arg6[%c48_322, %c0_323], %525 {strides = array<i32>} : memref<64x64xf32, #tpu.memory_space<vmem>>, vector<8x64xf32>,
    %c56_324 = arith.constant 56 : index
    %c0_325 = arith.constant 0 : index
    %527 = vector.load %arg8[%c56_324, %c0_325] : memref<64x512xf32, #tpu.memory_space<vmem>>, vector<8x512xf32>
    %528 = arith.mulf %527, %512 : vector<8x512xf32>
    %c56_326 = arith.constant 56 : index
    %c0_327 = arith.constant 0 : index
    %529 = vector.load %arg7[%c56_326, %c0_327] : memref<64x1024xf32, #tpu.memory_space<vmem>>, vector<8x512xf32>
    %530 = arith.addf %528, %529 : vector<8x512xf32>
    %c56_328 = arith.constant 56 : index
    %c512_329 = arith.constant 512 : index
    %531 = vector.load %arg7[%c56_328, %c512_329] : memref<64x1024xf32, #tpu.memory_space<vmem>>, vector<8x512xf32>
    %532 = arith.mulf %531, %530 : vector<8x512xf32>
    %533 = vector.extract_strided_slice %532 {offsets = [0, 0], sizes = [8, 256], strides = [1, 1]} : vector<8x512xf32> to vector<8x256xf32>
    %534 = vector.extract_strided_slice %532 {offsets = [0, 256], sizes = [8, 256], strides = [1, 1]} : vector<8x512xf32> to vector<8x256xf32>
    %535 = arith.addf %533, %534 : vector<8x256xf32>
    %536 = vector.extract_strided_slice %535 {offsets = [0, 0], sizes = [8, 128], strides = [1, 1]} : vector<8x256xf32> to vector<8x128xf32>
    %537 = vector.extract_strided_slice %535 {offsets = [0, 128], sizes = [8, 128], strides = [1, 1]} : vector<8x256xf32> to vector<8x128xf32>
    %538 = arith.addf %536, %537 : vector<8x128xf32>
    %539 = vector.extract_strided_slice %538 {offsets = [0, 0], sizes = [8, 64], strides = [1, 1]} : vector<8x128xf32> to vector<8x64xf32>
    %540 = vector.extract_strided_slice %538 {offsets = [0, 64], sizes = [8, 64], strides = [1, 1]} : vector<8x128xf32> to vector<8x64xf32>
    %541 = arith.addf %539, %540 : vector<8x64xf32>
    %c56_330 = arith.constant 56 : index
    %c0_331 = arith.constant 0 : index
    %542 = vector.load %arg6[%c56_330, %c0_331] : memref<64x64xf32, #tpu.memory_space<vmem>>, vector<8x64xf32>
    %543 = arith.addf %542, %541 : vector<8x64xf32>
    %c56_332 = arith.constant 56 : index
    %c0_333 = arith.constant 0 : index
    %544 = vector.load %arg6[%c56_332, %c0_333] : memref<64x64xf32, #tpu.memory_space<vmem>>, vector<8x64xf32>
    tpu.vector_store %arg6[%c56_332, %c0_333], %543 {strides = array<i32>} : memref<64x64xf32, #tpu.memory_space<vmem>>, vector<8x64xf32>,
    %c0_334 = arith.constant 0 : index
    %c0_335 = arith.constant 0 : index
    %545 = vector.load %arg6[%c0_334, %c0_335] : memref<64x64xf32, #tpu.memory_space<vmem>>, vector<64x64xf32>
    %c0_336 = arith.constant 0 : index
    %c0_337 = arith.constant 0 : index
    %546 = vector.load %arg5[%c0_336, %c0_337] : memref<64x64xf32, #tpu.memory_space<vmem>>, vector<64x64xf32>
    %547 = arith.mulf %545, %546 : vector<64x64xf32>
    %548 = arith.truncf %547 : vector<64x64xf32> to vector<64x64xbf16>
    %c0_338 = arith.constant 0 : index
    %c2688 = arith.constant 2688 : index
    %549 = vector.load %arg1[%c0_338, %c2688] : memref<64x2944xbf16, #tpu.memory_space<vmem>>, vector<64x128xbf16>
    %cst_339 = arith.constant dense<0.000000e+00> : vector<64x128xf32>
    %550 = tpu.matmul %548, %549, %cst_339 {dimension_numbers = #tpu.dot_dimension_numbers<[1], [0], [0], [1], [0, 0, 1, 1], [], []>} : vector<64x64xbf16>, vector<64x128xbf16>, vector<64x128xf32> -> vector<64x128xf32>
    %551 = vector.extract_strided_slice %550 {offsets = [0, 0], sizes = [64, 64], strides = [1, 1]} : vector<64x128xf32> to vector<64x64xf32>
    %c19 = arith.constant 19 : index
    %c0_340 = arith.constant 0 : index
    %552 = vector.load %arg2[%c19, %c0_340] : memref<24x512xf32, #tpu.memory_space<vmem>>, vector<1x64xf32>
    %553 = vector.broadcast %552 : vector<1x64xf32> to vector<64x64xf32>
    %554 = arith.addf %551, %553 : vector<64x64xf32>
    %cst_341 = arith.constant 0.000000e+00 : f32
    %555 = vector.broadcast %cst_341 : f32 to vector<64x64xf32>
    %556 = arith.maximumf %554, %555 : vector<64x64xf32>
    %557 = arith.truncf %556 : vector<64x64xf32> to vector<64x64xbf16>
    %c0_342 = arith.constant 0 : index
    %c2816 = arith.constant 2816 : index
    %558 = vector.load %arg1[%c0_342, %c2816] : memref<64x2944xbf16, #tpu.memory_space<vmem>>, vector<64x128xbf16>
    %cst_343 = arith.constant dense<0.000000e+00> : vector<64x128xf32>
    %559 = tpu.matmul %557, %558, %cst_343 {dimension_numbers = #tpu.dot_dimension_numbers<[1], [0], [0], [1], [0, 0, 1, 1], [], []>} : vector<64x64xbf16>, vector<64x128xbf16>, vector<64x128xf32> -> vector<64x128xf32>
    %c20 = arith.constant 20 : index
    %c0_344 = arith.constant 0 : index
    %560 = vector.load %arg2[%c20, %c0_344] : memref<24x512xf32, #tpu.memory_space<vmem>>, vector<1x128xf32>
    %561 = vector.broadcast %560 : vector<1x128xf32> to vector<64x128xf32>
    %562 = arith.addf %559, %561 : vector<64x128xf32>
    %563 = vector.extract_strided_slice %562 {offsets = [0, 0], sizes = [64, 32], strides = [1, 1]} : vector<64x128xf32> to vector<64x32xf32>
    %c0_345 = arith.constant 0 : index
    %c0_346 = arith.constant 0 : index
    %564 = vector.load %arg3[%c0_345, %c0_346] : memref<64x32xf32, #tpu.memory_space<vmem>>, vector<64x32xf32>
    tpu.vector_store %arg3[%c0_345, %c0_346], %563 {strides = array<i32>} : memref<64x32xf32, #tpu.memory_space<vmem>>, vector<64x32xf32>,
    return
  }
}

</mosaic_0001>

<llo_original>
// kernel: mamba_encoder_forward.1
$region0: #{mamba_encoder_forward.1}
  #allocation0 [shape = 'u32[]', space=smem, size = 0x4, offset = 0x4, fixed_abs, tag = 'smem constant byte address 0x4 - core index']
  #allocation1 [shape = 'u32[144,128]{1,0:T(1,128)}', space=vmem, size = 0x12000, scoped, tag = 'internal scratch']
  #allocation2 [shape = 'f32[88,64]{1,0:T(8,128)}', space=vmem, size = 0xb000, scoped, tag = 'scratch operand']
  #allocation3 [shape = 'f32[64,64]{1,0:T(8,128)}', space=vmem, size = 0x8000, scoped, tag = 'scratch operand']
  #allocation4 [shape = 'f32[64,64]{1,0:T(8,128)}', space=vmem, size = 0x8000, scoped, tag = 'scratch operand']
  #allocation5 [shape = 'f32[64,1024]{1,0:T(8,128)}', space=vmem, size = 0x40000, scoped, tag = 'scratch operand']
  #allocation6 [shape = 'f32[64,512]{1,0:T(8,128)}', space=vmem, size = 0x20000, scoped, tag = 'scratch operand']
  %s0 = inlined_call_operand.vmem [shape: f32[64,16], index: 0, kind: input, shape index: {}]
  %s1 = inlined_call_operand.hbm [shape: bf16[64,2944], index: 1, kind: input, shape index: {}]
  %s2 = inlined_call_operand.vmem [shape: f32[24,512], index: 2, kind: input, shape index: {}]
  %s3 = inlined_call_operand.vmem [shape: f32[64,32], index: 3, kind: output, shape index: {}]
  %s4 = sld [smem:[#allocation0]]
  $region26: #{mamba_encoder_forward.1} parent=0
    _
  %s6 = ssub.s32 1, %s4
  %s7 = scalar_select 0, %s6, %s4
  $region1: #{mamba_encoder_forward.1} parent=0
    #allocation7 [shape = 'u8[376832]{0}', space=vmem, size = 0x5c000, scoped, tag = 'input window, operand 1, single buffered']
    #allocation8 [shape = 's32[1]{0}', space=sflag, size = 0x4, scoped, tag = 'scoped memory for mamba_encoder_forward.1']
    %8 = vsyncpa [#allocation8], 0
    // Predicated region
    $region2: #{mamba_encoder_forward.1} parent=1 // pred_check
      _
    $region3: #{mamba_encoder_forward.1} parent=1 // pred_check_branch
      %10 = sbr.rel (0) target = $region5
    $region4: #{mamba_encoder_forward.1} parent=1 // pred_region
      _
    $region5: #{mamba_encoder_forward.1} parent=1 // pred_fallthru
      _
    // Predicated region
    $region6: #{mamba_encoder_forward.1} parent=1 // pred_check
      _
    $region7: #{mamba_encoder_forward.1} parent=1 // pred_check_branch
      %12 = sbr.rel (0) target = $region9
    $region8: #{mamba_encoder_forward.1} parent=1 // pred_region
      %s14 = ssub.s32 11776, 11776
      %15 = vsyncadd [#allocation8], %s14
      %s16 = sshll.u32 [#allocation7], 4
      %s17 = int_to_ptr.vmem [resolvable:$true] %s16
      %22 = dma.hbm_to_vmem [thread:$0]  %s1, 11776, %s17, [#allocation8], 1472, 1472, 92
    $region9: #{mamba_encoder_forward.1} parent=1 // pred_fallthru
      _
    // Predicated region
    $region10: #{mamba_encoder_forward.1} parent=1 // pred_check
      _
    $region11: #{mamba_encoder_forward.1} parent=1 // pred_check_branch
      %24 = sbr.rel (0) target = $region13
    $region12: #{mamba_encoder_forward.1} parent=1 // pred_region
      _
    $region13: #{mamba_encoder_forward.1} parent=1 // pred_fallthru
      _
    // Predicated region
    $region14: #{mamba_encoder_forward.1} parent=1 // pred_check
      _
    $region15: #{mamba_encoder_forward.1} parent=1 // pred_check_branch
      %26 = sbr.rel (0) target = $region17
    $region16: #{mamba_encoder_forward.1} parent=1 // pred_region
      %27 = dma.done [#allocation8], 11776
    $region17: #{mamba_encoder_forward.1} parent=1 // pred_fallthru
      _
    %vm29 = vcmask 523264
    %30 = vst.msk [vmem:[#allocation2] sm:$0xff] %vm29, 0.0
    %31 = vst.msk [vmem:[#allocation2 + $0x8] sm:$0xff] %vm29, 0.0
    %32 = vst.msk [vmem:[#allocation2 + $0x10] sm:$0xff] %vm29, 0.0
    %v33 = vld [vmem:[%s0] sm:$0xff]
    %v34 = vld [vmem:[%s0 + $0x8] sm:$0xff]
    %v35 = vld [vmem:[%s0 + $0x10] sm:$0xff]
    %v36 = vld [vmem:[%s0 + $0x18] sm:$0xff]
    %v37 = vld [vmem:[%s0 + $0x20] sm:$0xff]
    %v38 = vld [vmem:[%s0 + $0x28] sm:$0xff]
    %v39 = vld [vmem:[%s0 + $0x30] sm:$0xff]
    %v40 = vld [vmem:[%s0 + $0x38] sm:$0xff]
    %v41 = vpack.c.bf16 %v34, %v33
    %v42 = vpack.c.bf16 %v36, %v35
    %v43 = vpack.c.bf16 %v38, %v37
    %v44 = vpack.c.bf16 %v40, %v39
    %v45 = vld [vmem:[#allocation7] sm:$0xf]
    %v46 = vld [vmem:[#allocation7 + $0x5c] sm:$0xf]
    %v47 = vld [vmem:[%s2] ss:$0 sm:$0xff]
    %v50 = vunpack.c.l.b16 %v45
    %v51 = vunpack.c.l.b16 %v46
    %v52 = vpack.c.b16 %v51, %v50
    %vm54 = vcmask 130048
    %v56 = vsel %vm54, %v41, 0
    %v59 = vsel %vm54, %v42, 0
    %v62 = vsel %vm54, %v43, 0
    %v65 = vsel %vm54, %v44, 0
    %67 = vmatprep.subr.bf16.mxu0 0
    %68 = vmatpush1.bf16.msra.mxu0 %v52
    %69 = vmatprep.subr.bf16.mxu0 0
    %70 = vmatpush1.bf16.msra.mxu0 0
    %71 = vmatprep.subr.bf16.mxu0 0
    %72 = vmatpush1.bf16.msra.mxu0 0
    %73 = vmatprep.subr.bf16.mxu0 0
    %74 = vmatpush1.bf16.msra.mxu0 0
    %75 = vmatprep.subr.bf16.mxu0 0
    %76 = vmatpush1.bf16.msra.mxu0 0
    %77 = vmatprep.subr.bf16.mxu0 0
    %78 = vmatpush1.bf16.msra.mxu0 0
    %79 = vmatprep.subr.bf16.mxu0 0
    %80 = vmatpush1.bf16.msra.mxu0 0
    %81 = vmatprep.subr.bf16.mxu0 0
    %82 = vmatpush1.bf16.msra.mxu0 0
    %83 = vmatprep.subr.bf16.mxu0 0
    %84 = vmatpush1.bf16.msra.mxu0 0
    %85 = vmatprep.subr.bf16.mxu0 0
    %86 = vmatpush1.bf16.msra.mxu0 0
    %87 = vmatprep.subr.bf16.mxu0 0
    %88 = vmatpush1.bf16.msra.mxu0 0
    %89 = vmatprep.subr.bf16.mxu0 0
    %90 = vmatpush1.bf16.msra.mxu0 0
    %91 = vmatprep.subr.bf16.mxu0 0
    %92 = vmatpush1.bf16.msra.mxu0 0
    %93 = vmatprep.subr.bf16.mxu0 0
    %94 = vmatpush1.bf16.msra.mxu0 0
    %95 = vmatprep.subr.bf16.mxu0 0
    %96 = vmatpush1.bf16.msra.mxu0 0
    %97 = vmatprep.subr.bf16.mxu0 0
    %98 = vmatpush1.bf16.msra.mxu0 0
    %99 = vmatprep.mubr.bf16.mxu0 0
    %100 = vmatmul.mubr.bf16.gmra.mrb[0].mxu0 %v56
    %v101 = vpop.f32.mrb[0].mxu0
    %v102 = vadd.f32 %v47, %v101
    %v103 = vpop.f32.mrb[0].mxu0
    %v104 = vpop.f32.mrb[0].mxu0
    %v105 = vadd.f32 %v47, %v104
    %v106 = vpop.f32.mrb[0].mxu0
    %107 = vmatprep.mubr.bf16.mxu0 0
    %108 = vmatmul.mubr.bf16.gmra.mrb[0].mxu0 %v59
    %v109 = vpop.f32.mrb[0].mxu0
    %v110 = vadd.f32 %v47, %v109
    %v111 = vpop.f32.mrb[0].mxu0
    %v112 = vpop.f32.mrb[0].mxu0
    %v113 = vadd.f32 %v47, %v112
    %v114 = vpop.f32.mrb[0].mxu0
    %115 = vmatprep.mubr.bf16.mxu0 0
    %116 = vmatmul.mubr.bf16.gmra.mrb[0].mxu0 %v62
    %v117 = vpop.f32.mrb[0].mxu0
    %v118 = vadd.f32 %v47, %v117
    %v119 = vpop.f32.mrb[0].mxu0
    %v120 = vpop.f32.mrb[0].mxu0
    %v121 = vadd.f32 %v47, %v120
    %v122 = vpop.f32.mrb[0].mxu0
    %123 = vmatprep.mubr.bf16.mxu0 0
    %124 = vmatmul.mubr.bf16.gmra.mrb[0].mxu0 %v65
    %v125 = vpop.f32.mrb[0].mxu0
    %v126 = vadd.f32 %v47, %v125
    %v127 = vpop.f32.mrb[0].mxu0
    %v128 = vpop.f32.mrb[0].mxu0
    %v129 = vadd.f32 %v47, %v128
    %v130 = vpop.f32.mrb[0].mxu0
    %131 = vdwg.mxu0
    %v132 = vmul.f32 %v102, 0.5
    %v133 = vmul.f32 %v105, 0.5
    %v134 = vmul.f32 %v110, 0.5
    %v135 = vmul.f32 %v113, 0.5
    %v136 = vmul.f32 %v118, 0.5
    %v137 = vmul.f32 %v121, 0.5
    %v138 = vmul.f32 %v126, 0.5
    %v139 = vmul.f32 %v129, 0.5
    %v140 = vtanh.pop %v132
    %v141 = vtanh.pop %v133
    %v142 = vtanh.pop %v134
    %v143 = vtanh.pop %v135
    %v144 = vtanh.pop %v136
    %v145 = vtanh.pop %v137
    %v146 = vtanh.pop %v138
    %v147 = vtanh.pop %v139
    %v148 = vadd.f32 %v140, 1.0
    %v149 = vadd.f32 %v141, 1.0
    %v150 = vadd.f32 %v142, 1.0
    %v151 = vadd.f32 %v143, 1.0
    %v152 = vadd.f32 %v144, 1.0
    %v153 = vadd.f32 %v145, 1.0
    %v154 = vadd.f32 %v146, 1.0
    %v155 = vadd.f32 %v147, 1.0
    %v156 = vmul.f32 %v148, 0.5
    %v157 = vmul.f32 %v149, 0.5
    %v158 = vmul.f32 %v150, 0.5
    %v159 = vmul.f32 %v151, 0.5
    %v160 = vmul.f32 %v152, 0.5
    %v161 = vmul.f32 %v153, 0.5
    %v162 = vmul.f32 %v154, 0.5
    %v163 = vmul.f32 %v155, 0.5
    %v164 = vmul.f32 %v102, %v156
    %v165 = vmul.f32 %v105, %v157
    %v166 = vmul.f32 %v110, %v158
    %v167 = vmul.f32 %v113, %v159
    %v168 = vmul.f32 %v118, %v160
    %v169 = vmul.f32 %v121, %v161
    %v170 = vmul.f32 %v126, %v162
    %v171 = vmul.f32 %v129, %v163
    %180 = vrot.lane.b32.xlu0 %v164, 64
    %v181 = vpop.permute.xlu0 %180
    %182 = vrot.lane.b32.xlu0 %v165, 64
    %v183 = vpop.permute.xlu0 %182
    %184 = vrot.lane.b32.xlu0 %v166, 64
    %v185 = vpop.permute.xlu0 %184
    %186 = vrot.lane.b32.xlu0 %v167, 64
    %v187 = vpop.permute.xlu0 %186
    %188 = vrot.lane.b32.xlu0 %v168, 64
    %v189 = vpop.permute.xlu0 %188
    %190 = vrot.lane.b32.xlu0 %v169, 64
    %v191 = vpop.permute.xlu0 %190
    %192 = vrot.lane.b32.xlu0 %v170, 64
    %v193 = vpop.permute.xlu0 %192
    %194 = vrot.lane.b32.xlu0 %v171, 64
    %v195 = vpop.permute.xlu0 %194
    %204 = vst.msk [vmem:[#allocation3] sm:$0xff] %vm29, %v181
    %205 = vst.msk [vmem:[#allocation3 + $0x8] sm:$0xff] %vm29, %v183
    %206 = vst.msk [vmem:[#allocation3 + $0x10] sm:$0xff] %vm29, %v185
    %207 = vst.msk [vmem:[#allocation3 + $0x18] sm:$0xff] %vm29, %v187
    %208 = vst.msk [vmem:[#allocation3 + $0x20] sm:$0xff] %vm29, %v189
    %209 = vst.msk [vmem:[#allocation3 + $0x28] sm:$0xff] %vm29, %v191
    %210 = vst.msk [vmem:[#allocation3 + $0x30] sm:$0xff] %vm29, %v193
    %211 = vst.msk [vmem:[#allocation3 + $0x38] sm:$0xff] %vm29, %v195
    %212 = vst.msk [vmem:[#allocation2 + $0x18] sm:$0xff] %vm29, %v102
    %213 = vst.msk [vmem:[#allocation2 + $0x20] sm:$0xff] %vm29, %v105
    %214 = vst.msk [vmem:[#allocation2 + $0x28] sm:$0xff] %vm29, %v110
    %215 = vst.msk [vmem:[#allocation2 + $0x30] sm:$0xff] %vm29, %v113
    %216 = vst.msk [vmem:[#allocation2 + $0x38] sm:$0xff] %vm29, %v118
    %217 = vst.msk [vmem:[#allocation2 + $0x40] sm:$0xff] %vm29, %v121
    %218 = vst.msk [vmem:[#allocation2 + $0x48] sm:$0xff] %vm29, %v126
    %219 = vst.msk [vmem:[#allocation2 + $0x50] sm:$0xff] %vm29, %v129
    %v220 = vld [vmem:[%s2 + $0x5] ss:$0 sm:$0xff]
    %v221 = vld [vmem:[#allocation2] sm:$0xff]
    %v222 = vld [vmem:[#allocation2 + $0x8] sm:$0xff]
    %v223 = vld [vmem:[#allocation2 + $0x10] sm:$0xff]
    %v224 = vld [vmem:[#allocation2 + $0x18] sm:$0xff]
    %v225 = vld [vmem:[#allocation2 + $0x20] sm:$0xff]
    %v226 = vld [vmem:[#allocation2 + $0x28] sm:$0xff]
    %v227 = vld [vmem:[#allocation2 + $0x30] sm:$0xff]
    %v228 = vld [vmem:[#allocation2 + $0x38] sm:$0xff]
    %v229 = vld [vmem:[%s2 + $0x1] ss:$0 sm:$0xff]
    %v230 = vmul.f32 %v221, %v229
    %v231 = vmul.f32 %v222, %v229
    %v232 = vmul.f32 %v223, %v229
    %v233 = vmul.f32 %v224, %v229
    %v234 = vmul.f32 %v225, %v229
    %v235 = vmul.f32 %v226, %v229
    %v236 = vmul.f32 %v227, %v229
    %v237 = vmul.f32 %v228, %v229
    %v238 = vadd.f32 %v220, %v230
    %v239 = vadd.f32 %v220, %v231
    %v240 = vadd.f32 %v220, %v232
    %v241 = vadd.f32 %v220, %v233
    %v242 = vadd.f32 %v220, %v234
    %v243 = vadd.f32 %v220, %v235
    %v244 = vadd.f32 %v220, %v236
    %v245 = vadd.f32 %v220, %v237
    %v246 = vld [vmem:[#allocation2 + $0x40] sm:$0xff]
    %v247 = vld [vmem:[%s2 + $0x2] ss:$0 sm:$0xff]
    %v248 = vmul.f32 %v222, %v247
    %v249 = vmul.f32 %v223, %v247
    %v250 = vmul.f32 %v224, %v247
    %v251 = vmul.f32 %v225, %v247
    %v252 = vmul.f32 %v226, %v247
    %v253 = vmul.f32 %v227, %v247
    %v254 = vmul.f32 %v228, %v247
    %v255 = vmul.f32 %v246, %v247
    %v256 = vadd.f32 %v238, %v248
    %v257 = vadd.f32 %v239, %v249
    %v258 = vadd.f32 %v240, %v250
    %v259 = vadd.f32 %v241, %v251
    %v260 = vadd.f32 %v242, %v252
    %v261 = vadd.f32 %v243, %v253
    %v262 = vadd.f32 %v244, %v254
    %v263 = vadd.f32 %v245, %v255
    %v264 = vld [vmem:[#allocation2 + $0x48] sm:$0xff]
    %v265 = vld [vmem:[%s2 + $0x3] ss:$0 sm:$0xff]
    %v266 = vmul.f32 %v223, %v265
    %v267 = vmul.f32 %v224, %v265
    %v268 = vmul.f32 %v225, %v265
    %v269 = vmul.f32 %v226, %v265
    %v270 = vmul.f32 %v227, %v265
    %v271 = vmul.f32 %v228, %v265
    %v272 = vmul.f32 %v246, %v265
    %v273 = vmul.f32 %v264, %v265
    %v274 = vadd.f32 %v256, %v266
    %v275 = vadd.f32 %v257, %v267
    %v276 = vadd.f32 %v258, %v268
    %v277 = vadd.f32 %v259, %v269
    %v278 = vadd.f32 %v260, %v270
    %v279 = vadd.f32 %v261, %v271
    %v280 = vadd.f32 %v262, %v272
    %v281 = vadd.f32 %v263, %v273
    %v282 = vld [vmem:[#allocation2 + $0x50] sm:$0xff]
    %v283 = vld [vmem:[%s2 + $0x4] ss:$0 sm:$0xff]
    %v284 = vmul.f32 %v224, %v283
    %v285 = vmul.f32 %v225, %v283
    %v286 = vmul.f32 %v226, %v283
    %v287 = vmul.f32 %v227, %v283
    %v288 = vmul.f32 %v228, %v283
    %v289 = vmul.f32 %v246, %v283
    %v290 = vmul.f32 %v264, %v283
    %v291 = vmul.f32 %v282, %v283
    %v292 = vadd.f32 %v274, %v284
    %v293 = vadd.f32 %v275, %v285
    %v294 = vadd.f32 %v276, %v286
    %v295 = vadd.f32 %v277, %v287
    %v296 = vadd.f32 %v278, %v288
    %v297 = vadd.f32 %v279, %v289
    %v298 = vadd.f32 %v280, %v290
    %v299 = vadd.f32 %v281, %v291
    %v300 = vmul.f32 %v292, 0.5
    %v301 = vmul.f32 %v293, 0.5
    %v302 = vmul.f32 %v294, 0.5
    %v303 = vmul.f32 %v295, 0.5
    %v304 = vmul.f32 %v296, 0.5
    %v305 = vmul.f32 %v297, 0.5
    %v306 = vmul.f32 %v298, 0.5
    %v307 = vmul.f32 %v299, 0.5
    %v308 = vtanh.pop %v300
    %v309 = vtanh.pop %v301
    %v310 = vtanh.pop %v302
    %v311 = vtanh.pop %v303
    %v312 = vtanh.pop %v304
    %v313 = vtanh.pop %v305
    %v314 = vtanh.pop %v306
    %v315 = vtanh.pop %v307
    %v316 = vadd.f32 %v308, 1.0
    %v317 = vadd.f32 %v309, 1.0
    %v318 = vadd.f32 %v310, 1.0
    %v319 = vadd.f32 %v311, 1.0
    %v320 = vadd.f32 %v312, 1.0
    %v321 = vadd.f32 %v313, 1.0
    %v322 = vadd.f32 %v314, 1.0
    %v323 = vadd.f32 %v315, 1.0
    %v324 = vmul.f32 %v316, 0.5
    %v325 = vmul.f32 %v317, 0.5
    %v326 = vmul.f32 %v318, 0.5
    %v327 = vmul.f32 %v319, 0.5
    %v328 = vmul.f32 %v320, 0.5
    %v329 = vmul.f32 %v321, 0.5
    %v330 = vmul.f32 %v322, 0.5
    %v331 = vmul.f32 %v323, 0.5
    %v332 = vmul.f32 %v292, %v324
    %v333 = vmul.f32 %v293, %v325
    %v334 = vmul.f32 %v294, %v326
    %v335 = vmul.f32 %v295, %v327
    %v336 = vmul.f32 %v296, %v328
    %v337 = vmul.f32 %v297, %v329
    %v338 = vmul.f32 %v298, %v330
    %v339 = vmul.f32 %v299, %v331
    %v340 = vpack.c.bf16 %v333, %v332
    %v341 = vpack.c.bf16 %v335, %v334
    %v342 = vpack.c.bf16 %v337, %v336
    %v343 = vpack.c.bf16 %v339, %v338
    %v344 = vld [vmem:[#allocation7 + $0x24] sm:$0xf]
    %v345 = vld [vmem:[#allocation7 + $0x80] sm:$0xf]
    %v346 = vld [vmem:[#allocation7 + $0xdc] sm:$0xf]
    %v347 = vld [vmem:[#allocation7 + $0x138] sm:$0xf]
    %v348 = vld [vmem:[#allocation7 + $0x194] sm:$0xf]
    %v349 = vld [vmem:[#allocation7 + $0x1f0] sm:$0xf]
    %v350 = vld [vmem:[#allocation7 + $0x24c] sm:$0xf]
    %v351 = vld [vmem:[#allocation7 + $0x2a8] sm:$0xf]
    %v360 = vunpack.c.l.b16 %v344
    %v361 = vunpack.c.l.b16 %v345
    %v362 = vunpack.c.l.b16 %v346
    %v363 = vunpack.c.l.b16 %v347
    %v364 = vunpack.c.l.b16 %v348
    %v365 = vunpack.c.l.b16 %v349
    %v366 = vunpack.c.l.b16 %v350
    %v367 = vunpack.c.l.b16 %v351
    %v368 = vpack.c.b16 %v361, %v360
    %v369 = vpack.c.b16 %v363, %v362
    %v370 = vpack.c.b16 %v365, %v364
    %v371 = vpack.c.b16 %v367, %v366
    %v377 = vsel %vm29, %v340, 0
    %v380 = vsel %vm29, %v341, 0
    %v383 = vsel %vm29, %v342, 0
    %v386 = vsel %vm29, %v343, 0
    %388 = vmatprep.subr.bf16.mxu0 0
    %389 = vmatpush1.bf16.msra.mxu0 %v368
    %390 = vmatprep.subr.bf16.mxu0 0
    %391 = vmatpush1.bf16.msra.mxu0 %v369
    %392 = vmatprep.subr.bf16.mxu0 0
    %393 = vmatpush1.bf16.msra.mxu0 %v370
    %394 = vmatprep.subr.bf16.mxu0 0
    %395 = vmatpush1.bf16.msra.mxu0 %v371
    %396 = vmatprep.subr.bf16.mxu0 0
    %397 = vmatpush1.bf16.msra.mxu0 0
    %398 = vmatprep.subr.bf16.mxu0 0
    %399 = vmatpush1.bf16.msra.mxu0 0
    %400 = vmatprep.subr.bf16.mxu0 0
    %401 = vmatpush1.bf16.msra.mxu0 0
    %402 = vmatprep.subr.bf16.mxu0 0
    %403 = vmatpush1.bf16.msra.mxu0 0
    %404 = vmatprep.subr.bf16.mxu0 0
    %405 = vmatpush1.bf16.msra.mxu0 0
    %406 = vmatprep.subr.bf16.mxu0 0
    %407 = vmatpush1.bf16.msra.mxu0 0
    %408 = vmatprep.subr.bf16.mxu0 0
    %409 = vmatpush1.bf16.msra.mxu0 0
    %410 = vmatprep.subr.bf16.mxu0 0
    %411 = vmatpush1.bf16.msra.mxu0 0
    %412 = vmatprep.subr.bf16.mxu0 0
    %413 = vmatpush1.bf16.msra.mxu0 0
    %414 = vmatprep.subr.bf16.mxu0 0
    %415 = vmatpush1.bf16.msra.mxu0 0
    %416 = vmatprep.subr.bf16.mxu0 0
    %417 = vmatpush1.bf16.msra.mxu0 0
    %418 = vmatprep.subr.bf16.mxu0 0
    %419 = vmatpush1.bf16.msra.mxu0 0
    %420 = vmatprep.mubr.bf16.mxu0 0
    %421 = vmatmul.mubr.bf16.gmra.mrb[0].mxu0 %v377
    %v422 = vpop.f32.mrb[0].mxu0
    %v423 = vadd.f32 0.0, %v422
    %v424 = vpop.f32.mrb[0].mxu0
    %v425 = vpop.f32.mrb[0].mxu0
    %v426 = vadd.f32 0.0, %v425
    %v427 = vpop.f32.mrb[0].mxu0
    %428 = vmatprep.mubr.bf16.mxu0 0
    %429 = vmatmul.mubr.bf16.gmra.mrb[0].mxu0 %v380
    %v430 = vpop.f32.mrb[0].mxu0
    %v431 = vadd.f32 0.0, %v430
    %v432 = vpop.f32.mrb[0].mxu0
    %v433 = vpop.f32.mrb[0].mxu0
    %v434 = vadd.f32 0.0, %v433
    %v435 = vpop.f32.mrb[0].mxu0
    %436 = vmatprep.mubr.bf16.mxu0 0
    %437 = vmatmul.mubr.bf16.gmra.mrb[0].mxu0 %v383
    %v438 = vpop.f32.mrb[0].mxu0
    %v439 = vadd.f32 0.0, %v438
    %v440 = vpop.f32.mrb[0].mxu0
    %v441 = vpop.f32.mrb[0].mxu0
    %v442 = vadd.f32 0.0, %v441
    %v443 = vpop.f32.mrb[0].mxu0
    %444 = vmatprep.mubr.bf16.mxu0 0
    %445 = vmatmul.mubr.bf16.gmra.mrb[0].mxu0 %v386
    %v446 = vpop.f32.mrb[0].mxu0
    %v447 = vadd.f32 0.0, %v446
    %v448 = vpop.f32.mrb[0].mxu0
    %v449 = vpop.f32.mrb[0].mxu0
    %v450 = vadd.f32 0.0, %v449
    %v451 = vpop.f32.mrb[0].mxu0
    %452 = vdwg.mxu0
    %v453 = vld [vmem:[%s2 + $0x6] ss:$0 sm:$0xff]
    %v454 = vadd.f32 %v423, %v453
    %v455 = vadd.f32 %v426, %v453
    %v456 = vadd.f32 %v431, %v453
    %v457 = vadd.f32 %v434, %v453
    %v458 = vadd.f32 %v439, %v453
    %v459 = vadd.f32 %v442, %v453
    %v460 = vadd.f32 %v447, %v453
    %v461 = vadd.f32 %v450, %v453
    %v462 = vmax.f32 %v454, 0.0
    %v463 = vmax.f32 %v455, 0.0
    %v464 = vmax.f32 %v456, 0.0
    %v465 = vmax.f32 %v457, 0.0
    %v466 = vmax.f32 %v458, 0.0
    %v467 = vmax.f32 %v459, 0.0
    %v468 = vmax.f32 %v460, 0.0
    %v469 = vmax.f32 %v461, 0.0
    %v470 = vand.u32 2147483647, %v454
    %v471 = vand.u32 2147483647, %v455
    %v472 = vand.u32 2147483647, %v456
    %v473 = vand.u32 2147483647, %v457
    %v474 = vand.u32 2147483647, %v458
    %v475 = vand.u32 2147483647, %v459
    %v476 = vand.u32 2147483647, %v460
    %v477 = vand.u32 2147483647, %v461
    %v478 = vsub.f32 0.0, %v470
    %v479 = vsub.f32 0.0, %v471
    %v480 = vsub.f32 0.0, %v472
    %v481 = vsub.f32 0.0, %v473
    %v482 = vsub.f32 0.0, %v474
    %v483 = vsub.f32 0.0, %v475
    %v484 = vsub.f32 0.0, %v476
    %v485 = vsub.f32 0.0, %v477
    %v486 = vmul.f32 %v478, 1.442695
    %v487 = vpow.pop %v486
    %v488 = vmul.f32 %v479, 1.442695
    %v489 = vpow.pop %v488
    %v490 = vmul.f32 %v480, 1.442695
    %v491 = vpow.pop %v490
    %v492 = vmul.f32 %v481, 1.442695
    %v493 = vpow.pop %v492
    %v494 = vmul.f32 %v482, 1.442695
    %v495 = vpow.pop %v494
    %v496 = vmul.f32 %v483, 1.442695
    %v497 = vpow.pop %v496
    %v498 = vmul.f32 %v484, 1.442695
    %v499 = vpow.pop %v498
    %v500 = vmul.f32 %v485, 1.442695
    %v501 = vpow.pop %v500
    %v502 = vadd.f32 %v487, 1.0
    %v503 = vadd.f32 %v489, 1.0
    %v504 = vadd.f32 %v491, 1.0
    %v505 = vadd.f32 %v493, 1.0
    %v506 = vadd.f32 %v495, 1.0
    %v507 = vadd.f32 %v497, 1.0
    %v508 = vadd.f32 %v499, 1.0
    %v509 = vadd.f32 %v501, 1.0
    %v510 = vlog2.pop %v502
    %v511 = vmul.f32 %v510, 0.6931472
    %v512 = vlog2.pop %v503
    %v513 = vmul.f32 %v512, 0.6931472
    %v514 = vlog2.pop %v504
    %v515 = vmul.f32 %v514, 0.6931472
    %v516 = vlog2.pop %v505
    %v517 = vmul.f32 %v516, 0.6931472
    %v518 = vlog2.pop %v506
    %v519 = vmul.f32 %v518, 0.6931472
    %v520 = vlog2.pop %v507
    %v521 = vmul.f32 %v520, 0.6931472
    %v522 = vlog2.pop %v508
    %v523 = vmul.f32 %v522, 0.6931472
    %v524 = vlog2.pop %v509
    %v525 = vmul.f32 %v524, 0.6931472
    %v526 = vadd.f32 %v462, %v511
    %v527 = vadd.f32 %v463, %v513
    %v528 = vadd.f32 %v464, %v515
    %v529 = vadd.f32 %v465, %v517
    %v530 = vadd.f32 %v466, %v519
    %v531 = vadd.f32 %v467, %v521
    %v532 = vadd.f32 %v468, %v523
    %v533 = vadd.f32 %v469, %v525
    %v534 = vmul.f32 %v526, %v332
    %v535 = vmul.f32 %v527, %v333
    %v536 = vmul.f32 %v528, %v334
    %v537 = vmul.f32 %v529, %v335
    %v538 = vmul.f32 %v530, %v336
    %v539 = vmul.f32 %v531, %v337
    %v540 = vmul.f32 %v532, %v338
    %v541 = vmul.f32 %v533, %v339
    %v542 = vld [vmem:[%s2 + $0x20] ss:$0 sm:$0xff]
    %v543 = vmul.f32 %v542, %v332
    %v544 = vmul.f32 %v542, %v333
    %v545 = vmul.f32 %v542, %v334
    %v546 = vmul.f32 %v542, %v335
    %v547 = vmul.f32 %v542, %v336
    %v548 = vmul.f32 %v542, %v337
    %v549 = vmul.f32 %v542, %v338
    %v550 = vmul.f32 %v542, %v339
    %551 = vst.msk [vmem:[#allocation4] sm:$0xff] %vm29, %v543
    %552 = vst.msk [vmem:[#allocation4 + $0x8] sm:$0xff] %vm29, %v544
    %553 = vst.msk [vmem:[#allocation4 + $0x10] sm:$0xff] %vm29, %v545
    %554 = vst.msk [vmem:[#allocation4 + $0x18] sm:$0xff] %vm29, %v546
    %555 = vst.msk [vmem:[#allocation4 + $0x20] sm:$0xff] %vm29, %v547
    %556 = vst.msk [vmem:[#allocation4 + $0x28] sm:$0xff] %vm29, %v548
    %557 = vst.msk [vmem:[#allocation4 + $0x30] sm:$0xff] %vm29, %v549
    %558 = vst.msk [vmem:[#allocation4 + $0x38] sm:$0xff] %vm29, %v550
    %567 = vrot.lane.b32.xlu0 %v526, 64
    %v568 = vpop.permute.xlu0 %567
    %569 = vrot.lane.b32.xlu0 %v527, 64
    %v570 = vpop.permute.xlu0 %569
    %571 = vrot.lane.b32.xlu0 %v528, 64
    %v572 = vpop.permute.xlu0 %571
    %573 = vrot.lane.b32.xlu0 %v529, 64
    %v574 = vpop.permute.xlu0 %573
    %575 = vrot.lane.b32.xlu0 %v530, 64
    %v576 = vpop.permute.xlu0 %575
    %577 = vrot.lane.b32.xlu0 %v531, 64
    %v578 = vpop.permute.xlu0 %577
    %579 = vrot.lane.b32.xlu0 %v532, 64
    %v580 = vpop.permute.xlu0 %579
    %581 = vrot.lane.b32.xlu0 %v533, 64
    %v582 = vpop.permute.xlu0 %581
    %v591 = vsel %vm29, %v526, %v568
    %v592 = vsel %vm29, %v527, %v570
    %v593 = vsel %vm29, %v528, %v572
    %v594 = vsel %vm29, %v529, %v574
    %v595 = vsel %vm29, %v530, %v576
    %v596 = vsel %vm29, %v531, %v578
    %v597 = vsel %vm29, %v532, %v580
    %v598 = vsel %vm29, %v533, %v582
    %607 = vrot.lane.b32.xlu0 %v534, 64
    %v608 = vpop.permute.xlu0 %607
    %609 = vrot.lane.b32.xlu0 %v535, 64
    %v610 = vpop.permute.xlu0 %609
    %611 = vrot.lane.b32.xlu0 %v536, 64
    %v612 = vpop.permute.xlu0 %611
    %613 = vrot.lane.b32.xlu0 %v537, 64
    %v614 = vpop.permute.xlu0 %613
    %615 = vrot.lane.b32.xlu0 %v538, 64
    %v616 = vpop.permute.xlu0 %615
    %617 = vrot.lane.b32.xlu0 %v539, 64
    %v618 = vpop.permute.xlu0 %617
    %619 = vrot.lane.b32.xlu0 %v540, 64
    %v620 = vpop.permute.xlu0 %619
    %621 = vrot.lane.b32.xlu0 %v541, 64
    %v622 = vpop.permute.xlu0 %621
    %v631 = vsel %vm29, %v534, %v608
    %v632 = vsel %vm29, %v535, %v610
    %v633 = vsel %vm29, %v536, %v612
    %v634 = vsel %vm29, %v537, %v614
    %v635 = vsel %vm29, %v538, %v616
    %v636 = vsel %vm29, %v539, %v618
    %v637 = vsel %vm29, %v540, %v620
    %v638 = vsel %vm29, %v541, %v622
    %v639 = vld [vmem:[#allocation7 + $0x4] sm:$0xf]
    %v640 = vld [vmem:[#allocation7 + $0x60] sm:$0xf]
    %v641 = vld [vmem:[#allocation7 + $0xbc] sm:$0xf]
    %v642 = vld [vmem:[#allocation7 + $0x118] sm:$0xf]
    %v643 = vld [vmem:[#allocation7 + $0x174] sm:$0xf]
    %v644 = vld [vmem:[#allocation7 + $0x1d0] sm:$0xf]
    %v645 = vld [vmem:[#allocation7 + $0x22c] sm:$0xf]
    %v646 = vld [vmem:[#allocation7 + $0x288] sm:$0xf]
    %v655 = vunpack.c.l.b16 %v639
    %v656 = vunpack.c.l.b16 %v640
    %v657 = vunpack.c.l.b16 %v641
    %v658 = vunpack.c.l.b16 %v642
    %v659 = vunpack.c.l.b16 %v643
    %v660 = vunpack.c.l.b16 %v644
    %v661 = vunpack.c.l.b16 %v645
    %v662 = vunpack.c.l.b16 %v646
    %v663 = vpack.c.b16 %v656, %v655
    %v664 = vpack.c.b16 %v658, %v657
    %v665 = vpack.c.b16 %v660, %v659
    %v666 = vpack.c.b16 %v662, %v661
    %671 = vmatprep.subr.bf16.mxu0 0
    %672 = vmatpush1.bf16.msra.mxu0 %v663
    %673 = vmatprep.subr.bf16.mxu0 0
    %674 = vmatpush1.bf16.msra.mxu0 %v664
    %675 = vmatprep.subr.bf16.mxu0 0
    %676 = vmatpush1.bf16.msra.mxu0 %v665
    %677 = vmatprep.subr.bf16.mxu0 0
    %678 = vmatpush1.bf16.msra.mxu0 %v666
    %679 = vmatprep.subr.bf16.mxu0 0
    %680 = vmatpush1.bf16.msra.mxu0 0
    %681 = vmatprep.subr.bf16.mxu0 0
    %682 = vmatpush1.bf16.msra.mxu0 0
    %683 = vmatprep.subr.bf16.mxu0 0
    %684 = vmatpush1.bf16.msra.mxu0 0
    %685 = vmatprep.subr.bf16.mxu0 0
    %686 = vmatpush1.bf16.msra.mxu0 0
    %687 = vmatprep.subr.bf16.mxu0 0
    %688 = vmatpush1.bf16.msra.mxu0 0
    %689 = vmatprep.subr.bf16.mxu0 0
    %690 = vmatpush1.bf16.msra.mxu0 0
    %691 = vmatprep.subr.bf16.mxu0 0
    %692 = vmatpush1.bf16.msra.mxu0 0
    %693 = vmatprep.subr.bf16.mxu0 0
    %694 = vmatpush1.bf16.msra.mxu0 0
    %695 = vmatprep.subr.bf16.mxu0 0
    %696 = vmatpush1.bf16.msra.mxu0 0
    %697 = vmatprep.subr.bf16.mxu0 0
    %698 = vmatpush1.bf16.msra.mxu0 0
    %699 = vmatprep.subr.bf16.mxu0 0
    %700 = vmatpush1.bf16.msra.mxu0 0
    %701 = vmatprep.subr.bf16.mxu0 0
    %702 = vmatpush1.bf16.msra.mxu0 0
    %703 = vmatprep.mubr.bf16.mxu0 0
    %704 = vmatmul.mubr.bf16.gmra.mrb[0].mxu0 %v377
    %v705 = vpop.f32.mrb[0].mxu0
    %v706 = vadd.f32 0.0, %v705
    %v707 = vpop.f32.mrb[0].mxu0
    %v708 = vpop.f32.mrb[0].mxu0
    %v709 = vadd.f32 0.0, %v708
    %v710 = vpop.f32.mrb[0].mxu0
    %711 = vmatprep.mubr.bf16.mxu0 0
    %712 = vmatmul.mubr.bf16.gmra.mrb[0].mxu0 %v380
    %v713 = vpop.f32.mrb[0].mxu0
    %v714 = vadd.f32 0.0, %v713
    %v715 = vpop.f32.mrb[0].mxu0
    %v716 = vpop.f32.mrb[0].mxu0
    %v717 = vadd.f32 0.0, %v716
    %v718 = vpop.f32.mrb[0].mxu0
    %719 = vmatprep.mubr.bf16.mxu0 0
    %720 = vmatmul.mubr.bf16.gmra.mrb[0].mxu0 %v383
    %v721 = vpop.f32.mrb[0].mxu0
    %v722 = vadd.f32 0.0, %v721
    %v723 = vpop.f32.mrb[0].mxu0
    %v724 = vpop.f32.mrb[0].mxu0
    %v725 = vadd.f32 0.0, %v724
    %v726 = vpop.f32.mrb[0].mxu0
    %727 = vmatprep.mubr.bf16.mxu0 0
    %728 = vmatmul.mubr.bf16.gmra.mrb[0].mxu0 %v386
    %v729 = vpop.f32.mrb[0].mxu0
    %v730 = vadd.f32 0.0, %v729
    %v731 = vpop.f32.mrb[0].mxu0
    %v732 = vpop.f32.mrb[0].mxu0
    %v733 = vadd.f32 0.0, %v732
    %v734 = vpop.f32.mrb[0].mxu0
    %735 = vdwg.mxu0
    %v736 = vmul.f32 %v706, %v631
    %v737 = vmul.f32 %v709, %v632
    %v738 = vmul.f32 %v714, %v633
    %v739 = vmul.f32 %v717, %v634
    %v740 = vmul.f32 %v722, %v635
    %v741 = vmul.f32 %v725, %v636
    %v742 = vmul.f32 %v730, %v637
    %v743 = vmul.f32 %v733, %v638
    %744 = vst [vmem:[#allocation5] sm:$0xff] %v736
    %745 = vst [vmem:[#allocation5 + $0x40] sm:$0xff] %v737
    %746 = vst [vmem:[#allocation5 + $0x80] sm:$0xff] %v738
    %747 = vst [vmem:[#allocation5 + $0xc0] sm:$0xff] %v739
    %748 = vst [vmem:[#allocation5 + $0x100] sm:$0xff] %v740
    %749 = vst [vmem:[#allocation5 + $0x140] sm:$0xff] %v741
    %750 = vst [vmem:[#allocation5 + $0x180] sm:$0xff] %v742
    %751 = vst [vmem:[#allocation5 + $0x1c0] sm:$0xff] %v743
    %v752 = vld [vmem:[%s2 + $0x7] ss:$0 sm:$0xff]
    %v753 = vmul.f32 %v591, %v752
    %v754 = vmul.f32 %v592, %v752
    %v755 = vmul.f32 %v593, %v752
    %v756 = vmul.f32 %v594, %v752
    %v757 = vmul.f32 %v595, %v752
    %v758 = vmul.f32 %v596, %v752
    %v759 = vmul.f32 %v597, %v752
    %v760 = vmul.f32 %v598, %v752
    %v761 = vmul.f32 %v753, 1.442695
    %v762 = vpow.pop %v761
    %v763 = vmul.f32 %v754, 1.442695
    %v764 = vpow.pop %v763
    %v765 = vmul.f32 %v755, 1.442695
    %v766 = vpow.pop %v765
    %v767 = vmul.f32 %v756, 1.442695
    %v768 = vpow.pop %v767
    %v769 = vmul.f32 %v757, 1.442695
    %v770 = vpow.pop %v769
    %v771 = vmul.f32 %v758, 1.442695
    %v772 = vpow.pop %v771
    %v773 = vmul.f32 %v759, 1.442695
    %v774 = vpow.pop %v773
    %v775 = vmul.f32 %v760, 1.442695
    %v776 = vpow.pop %v775
    %777 = vst [vmem:[#allocation6] sm:$0xff] %v762
    %778 = vst [vmem:[#allocation6 + $0x20] sm:$0xff] %v764
    %779 = vst [vmem:[#allocation6 + $0x40] sm:$0xff] %v766
    %780 = vst [vmem:[#allocation6 + $0x60] sm:$0xff] %v768
    %781 = vst [vmem:[#allocation6 + $0x80] sm:$0xff] %v770
    %782 = vst [vmem:[#allocation6 + $0xa0] sm:$0xff] %v772
    %783 = vst [vmem:[#allocation6 + $0xc0] sm:$0xff] %v774
    %784 = vst [vmem:[#allocation6 + $0xe0] sm:$0xff] %v776
    %v785 = vld [vmem:[#allocation7 + $0x8] sm:$0xf]
    %v786 = vld [vmem:[#allocation7 + $0x64] sm:$0xf]
    %v787 = vld [vmem:[#allocation7 + $0xc0] sm:$0xf]
    %v788 = vld [vmem:[#allocation7 + $0x11c] sm:$0xf]
    %v789 = vld [vmem:[#allocation7 + $0x178] sm:$0xf]
    %v790 = vld [vmem:[#allocation7 + $0x1d4] sm:$0xf]
    %v791 = vld [vmem:[#allocation7 + $0x230] sm:$0xf]
    %v792 = vld [vmem:[#allocation7 + $0x28c] sm:$0xf]
    %v801 = vunpack.c.l.b16 %v785
    %v802 = vunpack.c.l.b16 %v786
    %v803 = vunpack.c.l.b16 %v787
    %v804 = vunpack.c.l.b16 %v788
    %v805 = vunpack.c.l.b16 %v789
    %v806 = vunpack.c.l.b16 %v790
    %v807 = vunpack.c.l.b16 %v791
    %v808 = vunpack.c.l.b16 %v792
    %v809 = vpack.c.b16 %v802, %v801
    %v810 = vpack.c.b16 %v804, %v803
    %v811 = vpack.c.b16 %v806, %v805
    %v812 = vpack.c.b16 %v808, %v807
    %817 = vmatprep.subr.bf16.mxu0 0
    %818 = vmatpush1.bf16.msra.mxu0 %v809
    %819 = vmatprep.subr.bf16.mxu0 0
    %820 = vmatpush1.bf16.msra.mxu0 %v810
    %821 = vmatprep.subr.bf16.mxu0 0
    %822 = vmatpush1.bf16.msra.mxu0 %v811
    %823 = vmatprep.subr.bf16.mxu0 0
    %824 = vmatpush1.bf16.msra.mxu0 %v812
    %825 = vmatprep.subr.bf16.mxu0 0
    %826 = vmatpush1.bf16.msra.mxu0 0
    %827 = vmatprep.subr.bf16.mxu0 0
    %828 = vmatpush1.bf16.msra.mxu0 0
    %829 = vmatprep.subr.bf16.mxu0 0
    %830 = vmatpush1.bf16.msra.mxu0 0
    %831 = vmatprep.subr.bf16.mxu0 0
    %832 = vmatpush1.bf16.msra.mxu0 0
    %833 = vmatprep.subr.bf16.mxu0 0
    %834 = vmatpush1.bf16.msra.mxu0 0
    %835 = vmatprep.subr.bf16.mxu0 0
    %836 = vmatpush1.bf16.msra.mxu0 0
    %837 = vmatprep.subr.bf16.mxu0 0
    %838 = vmatpush1.bf16.msra.mxu0 0
    %839 = vmatprep.subr.bf16.mxu0 0
    %840 = vmatpush1.bf16.msra.mxu0 0
    %841 = vmatprep.subr.bf16.mxu0 0
    %842 = vmatpush1.bf16.msra.mxu0 0
    %843 = vmatprep.subr.bf16.mxu0 0
    %844 = vmatpush1.bf16.msra.mxu0 0
    %845 = vmatprep.subr.bf16.mxu0 0
    %846 = vmatpush1.bf16.msra.mxu0 0
    %847 = vmatprep.subr.bf16.mxu0 0
    %848 = vmatpush1.bf16.msra.mxu0 0
    %849 = vmatprep.mubr.bf16.mxu0 0
    %850 = vmatmul.mubr.bf16.gmra.mrb[0].mxu0 %v377
    %v851 = vpop.f32.mrb[0].mxu0
    %v852 = vadd.f32 0.0, %v851
    %v853 = vpop.f32.mrb[0].mxu0
    %v854 = vpop.f32.mrb[0].mxu0
    %v855 = vadd.f32 0.0, %v854
    %v856 = vpop.f32.mrb[0].mxu0
    %857 = vmatprep.mubr.bf16.mxu0 0
    %858 = vmatmul.mubr.bf16.gmra.mrb[0].mxu0 %v380
    %v859 = vpop.f32.mrb[0].mxu0
    %v860 = vadd.f32 0.0, %v859
    %v861 = vpop.f32.mrb[0].mxu0
    %v862 = vpop.f32.mrb[0].mxu0
    %v863 = vadd.f32 0.0, %v862
    %v864 = vpop.f32.mrb[0].mxu0
    %865 = vmatprep.mubr.bf16.mxu0 0
    %866 = vmatmul.mubr.bf16.gmra.mrb[0].mxu0 %v383
    %v867 = vpop.f32.mrb[0].mxu0
    %v868 = vadd.f32 0.0, %v867
    %v869 = vpop.f32.mrb[0].mxu0
    %v870 = vpop.f32.mrb[0].mxu0
    %v871 = vadd.f32 0.0, %v870
    %v872 = vpop.f32.mrb[0].mxu0
    %873 = vmatprep.mubr.bf16.mxu0 0
    %874 = vmatmul.mubr.bf16.gmra.mrb[0].mxu0 %v386
    %v875 = vpop.f32.mrb[0].mxu0
    %v876 = vadd.f32 0.0, %v875
    %v877 = vpop.f32.mrb[0].mxu0
    %v878 = vpop.f32.mrb[0].mxu0
    %v879 = vadd.f32 0.0, %v878
    %v880 = vpop.f32.mrb[0].mxu0
    %881 = vdwg.mxu0
    %v882 = vmul.f32 %v852, %v631
    %v883 = vmul.f32 %v855, %v632
    %v884 = vmul.f32 %v860, %v633
    %v885 = vmul.f32 %v863, %v634
    %v886 = vmul.f32 %v868, %v635
    %v887 = vmul.f32 %v871, %v636
    %v888 = vmul.f32 %v876, %v637
    %v889 = vmul.f32 %v879, %v638
    %890 = vst [vmem:[#allocation5 + $0x8] sm:$0xff] %v882
    %891 = vst [vmem:[#allocation5 + $0x48] sm:$0xff] %v883
    %892 = vst [vmem:[#allocation5 + $0x88] sm:$0xff] %v884
    %893 = vst [vmem:[#allocation5 + $0xc8] sm:$0xff] %v885
    %894 = vst [vmem:[#allocation5 + $0x108] sm:$0xff] %v886
    %895 = vst [vmem:[#allocation5 + $0x148] sm:$0xff] %v887
    %896 = vst [vmem:[#allocation5 + $0x188] sm:$0xff] %v888
    %897 = vst [vmem:[#allocation5 + $0x1c8] sm:$0xff] %v889
    %v898 = vld [vmem:[%s2 + $0xf] ss:$0 sm:$0xff]
    %v899 = vmul.f32 %v591, %v898
    %v900 = vmul.f32 %v592, %v898
    %v901 = vmul.f32 %v593, %v898
    %v902 = vmul.f32 %v594, %v898
    %v903 = vmul.f32 %v595, %v898
    %v904 = vmul.f32 %v596, %v898
    %v905 = vmul.f32 %v597, %v898
    %v906 = vmul.f32 %v598, %v898
    %v907 = vmul.f32 %v899, 1.442695
    %v908 = vpow.pop %v907
    %v909 = vmul.f32 %v900, 1.442695
    %v910 = vpow.pop %v909
    %v911 = vmul.f32 %v901, 1.442695
    %v912 = vpow.pop %v911
    %v913 = vmul.f32 %v902, 1.442695
    %v914 = vpow.pop %v913
    %v915 = vmul.f32 %v903, 1.442695
    %v916 = vpow.pop %v915
    %v917 = vmul.f32 %v904, 1.442695
    %v918 = vpow.pop %v917
    %v919 = vmul.f32 %v905, 1.442695
    %v920 = vpow.pop %v919
    %v921 = vmul.f32 %v906, 1.442695
    %v922 = vpow.pop %v921
    %923 = vst [vmem:[#allocation6 + $0x8] sm:$0xff] %v908
    %924 = vst [vmem:[#allocation6 + $0x28] sm:$0xff] %v910
    %925 = vst [vmem:[#allocation6 + $0x48] sm:$0xff] %v912
    %926 = vst [vmem:[#allocation6 + $0x68] sm:$0xff] %v914
    %927 = vst [vmem:[#allocation6 + $0x88] sm:$0xff] %v916
    %928 = vst [vmem:[#allocation6 + $0xa8] sm:$0xff] %v918
    %929 = vst [vmem:[#allocation6 + $0xc8] sm:$0xff] %v920
    %930 = vst [vmem:[#allocation6 + $0xe8] sm:$0xff] %v922
    %v931 = vld [vmem:[#allocation7 + $0xc] sm:$0xf]
    %v932 = vld [vmem:[#allocation7 + $0x68] sm:$0xf]
    %v933 = vld [vmem:[#allocation7 + $0xc4] sm:$0xf]
    %v934 = vld [vmem:[#allocation7 + $0x120] sm:$0xf]
    %v935 = vld [vmem:[#allocation7 + $0x17c] sm:$0xf]
    %v936 = vld [vmem:[#allocation7 + $0x1d8] sm:$0xf]
    %v937 = vld [vmem:[#allocation7 + $0x234] sm:$0xf]
    %v938 = vld [vmem:[#allocation7 + $0x290] sm:$0xf]
    %v947 = vunpack.c.l.b16 %v931
    %v948 = vunpack.c.l.b16 %v932
    %v949 = vunpack.c.l.b16 %v933
    %v950 = vunpack.c.l.b16 %v934
    %v951 = vunpack.c.l.b16 %v935
    %v952 = vunpack.c.l.b16 %v936
    %v953 = vunpack.c.l.b16 %v937
    %v954 = vunpack.c.l.b16 %v938
    %v955 = vpack.c.b16 %v948, %v947
    %v956 = vpack.c.b16 %v950, %v949
    %v957 = vpack.c.b16 %v952, %v951
    %v958 = vpack.c.b16 %v954, %v953
    %963 = vmatprep.subr.bf16.mxu0 0
    %964 = vmatpush1.bf16.msra.mxu0 %v955
    %965 = vmatprep.subr.bf16.mxu0 0
    %966 = vmatpush1.bf16.msra.mxu0 %v956
    %967 = vmatprep.subr.bf16.mxu0 0
    %968 = vmatpush1.bf16.msra.mxu0 %v957
    %969 = vmatprep.subr.bf16.mxu0 0
    %970 = vmatpush1.bf16.msra.mxu0 %v958
    %971 = vmatprep.subr.bf16.mxu0 0
    %972 = vmatpush1.bf16.msra.mxu0 0
    %973 = vmatprep.subr.bf16.mxu0 0
    %974 = vmatpush1.bf16.msra.mxu0 0
    %975 = vmatprep.subr.bf16.mxu0 0
    %976 = vmatpush1.bf16.msra.mxu0 0
    %977 = vmatprep.subr.bf16.mxu0 0
    %978 = vmatpush1.bf16.msra.mxu0 0
    %979 = vmatprep.subr.bf16.mxu0 0
    %980 = vmatpush1.bf16.msra.mxu0 0
    %981 = vmatprep.subr.bf16.mxu0 0
    %982 = vmatpush1.bf16.msra.mxu0 0
    %983 = vmatprep.subr.bf16.mxu0 0
    %984 = vmatpush1.bf16.msra.mxu0 0
    %985 = vmatprep.subr.bf16.mxu0 0
    %986 = vmatpush1.bf16.msra.mxu0 0
    %987 = vmatprep.subr.bf16.mxu0 0
    %988 = vmatpush1.bf16.msra.mxu0 0
    %989 = vmatprep.subr.bf16.mxu0 0
    %990 = vmatpush1.bf16.msra.mxu0 0
    %991 = vmatprep.subr.bf16.mxu0 0
    %992 = vmatpush1.bf16.msra.mxu0 0
    %993 = vmatprep.subr.bf16.mxu0 0
    %994 = vmatpush1.bf16.msra.mxu0 0
    %995 = vmatprep.mubr.bf16.mxu0 0
    %996 = vmatmul.mubr.bf16.gmra.mrb[0].mxu0 %v377
    %v997 = vpop.f32.mrb[0].mxu0
    %v998 = vadd.f32 0.0, %v997
    %v999 = vpop.f32.mrb[0].mxu0
    %v1000 = vpop.f32.mrb[0].mxu0
    %v1001 = vadd.f32 0.0, %v1000
    %v1002 = vpop.f32.mrb[0].mxu0
    %1003 = vmatprep.mubr.bf16.mxu0 0
    %1004 = vmatmul.mubr.bf16.gmra.mrb[0].mxu0 %v380
    %v1005 = vpop.f32.mrb[0].mxu0
    %v1006 = vadd.f32 0.0, %v1005
    %v1007 = vpop.f32.mrb[0].mxu0
    %v1008 = vpop.f32.mrb[0].mxu0
    %v1009 = vadd.f32 0.0, %v1008
    %v1010 = vpop.f32.mrb[0].mxu0
    %1011 = vmatprep.mubr.bf16.mxu0 0
    %1012 = vmatmul.mubr.bf16.gmra.mrb[0].mxu0 %v383
    %v1013 = vpop.f32.mrb[0].mxu0
    %v1014 = vadd.f32 0.0, %v1013
    %v1015 = vpop.f32.mrb[0].mxu0
    %v1016 = vpop.f32.mrb[0].mxu0
    %v1017 = vadd.f32 0.0, %v1016
    %v1018 = vpop.f32.mrb[0].mxu0
    %1019 = vmatprep.mubr.bf16.mxu0 0
    %1020 = vmatmul.mubr.bf16.gmra.mrb[0].mxu0 %v386
    %v1021 = vpop.f32.mrb[0].mxu0
    %v1022 = vadd.f32 0.0, %v1021
    %v1023 = vpop.f32.mrb[0].mxu0
    %v1024 = vpop.f32.mrb[0].mxu0
    %v1025 = vadd.f32 0.0, %v1024
    %v1026 = vpop.f32.mrb[0].mxu0
    %1027 = vdwg.mxu0
    %v1028 = vmul.f32 %v998, %v631
    %v1029 = vmul.f32 %v1001, %v632
    %v1030 = vmul.f32 %v1006, %v633
    %v1031 = vmul.f32 %v1009, %v634
    %v1032 = vmul.f32 %v1014, %v635
    %v1033 = vmul.f32 %v1017, %v636
    %v1034 = vmul.f32 %v1022, %v637
    %v1035 = vmul.f32 %v1025, %v638
    %1036 = vst [vmem:[#allocation5 + $0x10] sm:$0xff] %v1028
    %1037 = vst [vmem:[#allocation5 + $0x50] sm:$0xff] %v1029
    %1038 = vst [vmem:[#allocation5 + $0x90] sm:$0xff] %v1030
    %1039 = vst [vmem:[#allocation5 + $0xd0] sm:$0xff] %v1031
    %1040 = vst [vmem:[#allocation5 + $0x110] sm:$0xff] %v1032
    %1041 = vst [vmem:[#allocation5 + $0x150] sm:$0xff] %v1033
    %1042 = vst [vmem:[#allocation5 + $0x190] sm:$0xff] %v1034
    %1043 = vst [vmem:[#allocation5 + $0x1d0] sm:$0xff] %v1035
    %v1044 = vld [vmem:[%s2 + $0x17] ss:$0 sm:$0xff]
    %v1045 = vmul.f32 %v591, %v1044
    %v1046 = vmul.f32 %v592, %v1044
    %v1047 = vmul.f32 %v593, %v1044
    %v1048 = vmul.f32 %v594, %v1044
    %v1049 = vmul.f32 %v595, %v1044
    %v1050 = vmul.f32 %v596, %v1044
    %v1051 = vmul.f32 %v597, %v1044
    %v1052 = vmul.f32 %v598, %v1044
    %v1053 = vmul.f32 %v1045, 1.442695
    %v1054 = vpow.pop %v1053
    %v1055 = vmul.f32 %v1046, 1.442695
    %v1056 = vpow.pop %v1055
    %v1057 = vmul.f32 %v1047, 1.442695
    %v1058 = vpow.pop %v1057
    %v1059 = vmul.f32 %v1048, 1.442695
    %v1060 = vpow.pop %v1059
    %v1061 = vmul.f32 %v1049, 1.442695
    %v1062 = vpow.pop %v1061
    %v1063 = vmul.f32 %v1050, 1.442695
    %v1064 = vpow.pop %v1063
    %v1065 = vmul.f32 %v1051, 1.442695
    %v1066 = vpow.pop %v1065
    %v1067 = vmul.f32 %v1052, 1.442695
    %v1068 = vpow.pop %v1067
    %1069 = vst [vmem:[#allocation6 + $0x10] sm:$0xff] %v1054
    %1070 = vst [vmem:[#allocation6 + $0x30] sm:$0xff] %v1056
    %1071 = vst [vmem:[#allocation6 + $0x50] sm:$0xff] %v1058
    %1072 = vst [vmem:[#allocation6 + $0x70] sm:$0xff] %v1060
    %1073 = vst [vmem:[#allocation6 + $0x90] sm:$0xff] %v1062
    %1074 = vst [vmem:[#allocation6 + $0xb0] sm:$0xff] %v1064
    %1075 = vst [vmem:[#allocation6 + $0xd0] sm:$0xff] %v1066
    %1076 = vst [vmem:[#allocation6 + $0xf0] sm:$0xff] %v1068
    %v1077 = vld [vmem:[#allocation7 + $0x10] sm:$0xf]
    %v1078 = vld [vmem:[#allocation7 + $0x6c] sm:$0xf]
    %v1079 = vld [vmem:[#allocation7 + $0xc8] sm:$0xf]
    %v1080 = vld [vmem:[#allocation7 + $0x124] sm:$0xf]
    %v1081 = vld [vmem:[#allocation7 + $0x180] sm:$0xf]
    %v1082 = vld [vmem:[#allocation7 + $0x1dc] sm:$0xf]
    %v1083 = vld [vmem:[#allocation7 + $0x238] sm:$0xf]
    %v1084 = vld [vmem:[#allocation7 + $0x294] sm:$0xf]
    %v1093 = vunpack.c.l.b16 %v1077
    %v1094 = vunpack.c.l.b16 %v1078
    %v1095 = vunpack.c.l.b16 %v1079
    %v1096 = vunpack.c.l.b16 %v1080
    %v1097 = vunpack.c.l.b16 %v1081
    %v1098 = vunpack.c.l.b16 %v1082
    %v1099 = vunpack.c.l.b16 %v1083
    %v1100 = vunpack.c.l.b16 %v1084
    %v1101 = vpack.c.b16 %v1094, %v1093
    %v1102 = vpack.c.b16 %v1096, %v1095
    %v1103 = vpack.c.b16 %v1098, %v1097
    %v1104 = vpack.c.b16 %v1100, %v1099
    %1109 = vmatprep.subr.bf16.mxu0 0
    %1110 = vmatpush1.bf16.msra.mxu0 %v1101
    %1111 = vmatprep.subr.bf16.mxu0 0
    %1112 = vmatpush1.bf16.msra.mxu0 %v1102
    %1113 = vmatprep.subr.bf16.mxu0 0
    %1114 = vmatpush1.bf16.msra.mxu0 %v1103
    %1115 = vmatprep.subr.bf16.mxu0 0
    %1116 = vmatpush1.bf16.msra.mxu0 %v1104
    %1117 = vmatprep.subr.bf16.mxu0 0
    %1118 = vmatpush1.bf16.msra.mxu0 0
    %1119 = vmatprep.subr.bf16.mxu0 0
    %1120 = vmatpush1.bf16.msra.mxu0 0
    %1121 = vmatprep.subr.bf16.mxu0 0
    %1122 = vmatpush1.bf16.msra.mxu0 0
    %1123 = vmatprep.subr.bf16.mxu0 0
    %1124 = vmatpush1.bf16.msra.mxu0 0
    %1125 = vmatprep.subr.bf16.mxu0 0
    %1126 = vmatpush1.bf16.msra.mxu0 0
    %1127 = vmatprep.subr.bf16.mxu0 0
    %1128 = vmatpush1.bf16.msra.mxu0 0
    %1129 = vmatprep.subr.bf16.mxu0 0
    %1130 = vmatpush1.bf16.msra.mxu0 0
    %1131 = vmatprep.subr.bf16.mxu0 0
    %1132 = vmatpush1.bf16.msra.mxu0 0
    %1133 = vmatprep.subr.bf16.mxu0 0
    %1134 = vmatpush1.bf16.msra.mxu0 0
    %1135 = vmatprep.subr.bf16.mxu0 0
    %1136 = vmatpush1.bf16.msra.mxu0 0
    %1137 = vmatprep.subr.bf16.mxu0 0
    %1138 = vmatpush1.bf16.msra.mxu0 0
    %1139 = vmatprep.subr.bf16.mxu0 0
    %1140 = vmatpush1.bf16.msra.mxu0 0
    %1141 = vmatprep.mubr.bf16.mxu0 0
    %1142 = vmatmul.mubr.bf16.gmra.mrb[0].mxu0 %v377
    %v1143 = vpop.f32.mrb[0].mxu0
    %v1144 = vadd.f32 0.0, %v1143
    %v1145 = vpop.f32.mrb[0].mxu0
    %v1146 = vpop.f32.mrb[0].mxu0
    %v1147 = vadd.f32 0.0, %v1146
    %v1148 = vpop.f32.mrb[0].mxu0
    %1149 = vmatprep.mubr.bf16.mxu0 0
    %1150 = vmatmul.mubr.bf16.gmra.mrb[0].mxu0 %v380
    %v1151 = vpop.f32.mrb[0].mxu0
    %v1152 = vadd.f32 0.0, %v1151
    %v1153 = vpop.f32.mrb[0].mxu0
    %v1154 = vpop.f32.mrb[0].mxu0
    %v1155 = vadd.f32 0.0, %v1154
    %v1156 = vpop.f32.mrb[0].mxu0
    %1157 = vmatprep.mubr.bf16.mxu0 0
    %1158 = vmatmul.mubr.bf16.gmra.mrb[0].mxu0 %v383
    %v1159 = vpop.f32.mrb[0].mxu0
    %v1160 = vadd.f32 0.0, %v1159
    %v1161 = vpop.f32.mrb[0].mxu0
    %v1162 = vpop.f32.mrb[0].mxu0
    %v1163 = vadd.f32 0.0, %v1162
    %v1164 = vpop.f32.mrb[0].mxu0
    %1165 = vmatprep.mubr.bf16.mxu0 0
    %1166 = vmatmul.mubr.bf16.gmra.mrb[0].mxu0 %v386
    %v1167 = vpop.f32.mrb[0].mxu0
    %v1168 = vadd.f32 0.0, %v1167
    %v1169 = vpop.f32.mrb[0].mxu0
    %v1170 = vpop.f32.mrb[0].mxu0
    %v1171 = vadd.f32 0.0, %v1170
    %v1172 = vpop.f32.mrb[0].mxu0
    %1173 = vdwg.mxu0
    %v1174 = vmul.f32 %v1144, %v631
    %v1175 = vmul.f32 %v1147, %v632
    %v1176 = vmul.f32 %v1152, %v633
    %v1177 = vmul.f32 %v1155, %v634
    %v1178 = vmul.f32 %v1160, %v635
    %v1179 = vmul.f32 %v1163, %v636
    %v1180 = vmul.f32 %v1168, %v637
    %v1181 = vmul.f32 %v1171, %v638
    %1182 = vst [vmem:[#allocation5 + $0x18] sm:$0xff] %v1174
    %1183 = vst [vmem:[#allocation5 + $0x58] sm:$0xff] %v1175
    %1184 = vst [vmem:[#allocation5 + $0x98] sm:$0xff] %v1176
    %1185 = vst [vmem:[#allocation5 + $0xd8] sm:$0xff] %v1177
    %1186 = vst [vmem:[#allocation5 + $0x118] sm:$0xff] %v1178
    %1187 = vst [vmem:[#allocation5 + $0x158] sm:$0xff] %v1179
    %1188 = vst [vmem:[#allocation5 + $0x198] sm:$0xff] %v1180
    %1189 = vst [vmem:[#allocation5 + $0x1d8] sm:$0xff] %v1181
    %v1190 = vld [vmem:[%s2 + $0x1f] ss:$0 sm:$0xff]
    %v1191 = vmul.f32 %v591, %v1190
    %v1192 = vmul.f32 %v592, %v1190
    %v1193 = vmul.f32 %v593, %v1190
    %v1194 = vmul.f32 %v594, %v1190
    %v1195 = vmul.f32 %v595, %v1190
    %v1196 = vmul.f32 %v596, %v1190
    %v1197 = vmul.f32 %v597, %v1190
    %v1198 = vmul.f32 %v598, %v1190
    %v1199 = vmul.f32 %v1191, 1.442695
    %v1200 = vpow.pop %v1199
    %v1201 = vmul.f32 %v1192, 1.442695
    %v1202 = vpow.pop %v1201
    %v1203 = vmul.f32 %v1193, 1.442695
    %v1204 = vpow.pop %v1203
    %v1205 = vmul.f32 %v1194, 1.442695
    %v1206 = vpow.pop %v1205
    %v1207 = vmul.f32 %v1195, 1.442695
    %v1208 = vpow.pop %v1207
    %v1209 = vmul.f32 %v1196, 1.442695
    %v1210 = vpow.pop %v1209
    %v1211 = vmul.f32 %v1197, 1.442695
    %v1212 = vpow.pop %v1211
    %v1213 = vmul.f32 %v1198, 1.442695
    %v1214 = vpow.pop %v1213
    %1215 = vst [vmem:[#allocation6 + $0x18] sm:$0xff] %v1200
    %1216 = vst [vmem:[#allocation6 + $0x38] sm:$0xff] %v1202
    %1217 = vst [vmem:[#allocation6 + $0x58] sm:$0xff] %v1204
    %1218 = vst [vmem:[#allocation6 + $0x78] sm:$0xff] %v1206
    %1219 = vst [vmem:[#allocation6 + $0x98] sm:$0xff] %v1208
    %1220 = vst [vmem:[#allocation6 + $0xb8] sm:$0xff] %v1210
    %1221 = vst [vmem:[#allocation6 + $0xd8] sm:$0xff] %v1212
    %1222 = vst [vmem:[#allocation6 + $0xf8] sm:$0xff] %v1214
    %v1223 = vld [vmem:[#allocation7 + $0x14] sm:$0xf]
    %v1224 = vld [vmem:[#allocation7 + $0x70] sm:$0xf]
    %v1225 = vld [vmem:[#allocation7 + $0xcc] sm:$0xf]
    %v1226 = vld [vmem:[#allocation7 + $0x128] sm:$0xf]
    %v1227 = vld [vmem:[#allocation7 + $0x184] sm:$0xf]
    %v1228 = vld [vmem:[#allocation7 + $0x1e0] sm:$0xf]
    %v1229 = vld [vmem:[#allocation7 + $0x23c] sm:$0xf]
    %v1230 = vld [vmem:[#allocation7 + $0x298] sm:$0xf]
    %v1239 = vunpack.c.l.b16 %v1223
    %v1240 = vunpack.c.l.b16 %v1224
    %v1241 = vunpack.c.l.b16 %v1225
    %v1242 = vunpack.c.l.b16 %v1226
    %v1243 = vunpack.c.l.b16 %v1227
    %v1244 = vunpack.c.l.b16 %v1228
    %v1245 = vunpack.c.l.b16 %v1229
    %v1246 = vunpack.c.l.b16 %v1230
    %v1247 = vpack.c.b16 %v1240, %v1239
    %v1248 = vpack.c.b16 %v1242, %v1241
    %v1249 = vpack.c.b16 %v1244, %v1243
    %v1250 = vpack.c.b16 %v1246, %v1245
    %1255 = vmatprep.subr.bf16.mxu0 0
    %1256 = vmatpush1.bf16.msra.mxu0 %v1247
    %1257 = vmatprep.subr.bf16.mxu0 0
    %1258 = vmatpush1.bf16.msra.mxu0 %v1248
    %1259 = vmatprep.subr.bf16.mxu0 0
    %1260 = vmatpush1.bf16.msra.mxu0 %v1249
    %1261 = vmatprep.subr.bf16.mxu0 0
    %1262 = vmatpush1.bf16.msra.mxu0 %v1250
    %1263 = vmatprep.subr.bf16.mxu0 0
    %1264 = vmatpush1.bf16.msra.mxu0 0
    %1265 = vmatprep.subr.bf16.mxu0 0
    %1266 = vmatpush1.bf16.msra.mxu0 0
    %1267 = vmatprep.subr.bf16.mxu0 0
    %1268 = vmatpush1.bf16.msra.mxu0 0
    %1269 = vmatprep.subr.bf16.mxu0 0
    %1270 = vmatpush1.bf16.msra.mxu0 0
    %1271 = vmatprep.subr.bf16.mxu0 0
    %1272 = vmatpush1.bf16.msra.mxu0 0
    %1273 = vmatprep.subr.bf16.mxu0 0
    %1274 = vmatpush1.bf16.msra.mxu0 0
    %1275 = vmatprep.subr.bf16.mxu0 0
    %1276 = vmatpush1.bf16.msra.mxu0 0
    %1277 = vmatprep.subr.bf16.mxu0 0
    %1278 = vmatpush1.bf16.msra.mxu0 0
    %1279 = vmatprep.subr.bf16.mxu0 0
    %1280 = vmatpush1.bf16.msra.mxu0 0
    %1281 = vmatprep.subr.bf16.mxu0 0
    %1282 = vmatpush1.bf16.msra.mxu0 0
    %1283 = vmatprep.subr.bf16.mxu0 0
    %1284 = vmatpush1.bf16.msra.mxu0 0
    %1285 = vmatprep.subr.bf16.mxu0 0
    %1286 = vmatpush1.bf16.msra.mxu0 0
    %1287 = vmatprep.mubr.bf16.mxu0 0
    %1288 = vmatmul.mubr.bf16.gmra.mrb[0].mxu0 %v377
    %v1289 = vpop.f32.mrb[0].mxu0
    %v1290 = vadd.f32 0.0, %v1289
    %v1291 = vpop.f32.mrb[0].mxu0
    %v1292 = vpop.f32.mrb[0].mxu0
    %v1293 = vadd.f32 0.0, %v1292
    %v1294 = vpop.f32.mrb[0].mxu0
    %1295 = vmatprep.mubr.bf16.mxu0 0
    %1296 = vmatmul.mubr.bf16.gmra.mrb[0].mxu0 %v380
    %v1297 = vpop.f32.mrb[0].mxu0
    %v1298 = vadd.f32 0.0, %v1297
    %v1299 = vpop.f32.mrb[0].mxu0
    %v1300 = vpop.f32.mrb[0].mxu0
    %v1301 = vadd.f32 0.0, %v1300
    %v1302 = vpop.f32.mrb[0].mxu0
    %1303 = vmatprep.mubr.bf16.mxu0 0
    %1304 = vmatmul.mubr.bf16.gmra.mrb[0].mxu0 %v383
    %v1305 = vpop.f32.mrb[0].mxu0
    %v1306 = vadd.f32 0.0, %v1305
    %v1307 = vpop.f32.mrb[0].mxu0
    %v1308 = vpop.f32.mrb[0].mxu0
    %v1309 = vadd.f32 0.0, %v1308
    %v1310 = vpop.f32.mrb[0].mxu0
    %1311 = vmatprep.mubr.bf16.mxu0 0
    %1312 = vmatmul.mubr.bf16.gmra.mrb[0].mxu0 %v386
    %v1313 = vpop.f32.mrb[0].mxu0
    %v1314 = vadd.f32 0.0, %v1313
    %v1315 = vpop.f32.mrb[0].mxu0
    %v1316 = vpop.f32.mrb[0].mxu0
    %v1317 = vadd.f32 0.0, %v1316
    %v1318 = vpop.f32.mrb[0].mxu0
    %1319 = vdwg.mxu0
    %1320 = vst [vmem:[#allocation5 + $0x20] sm:$0xff] %v1290
    %1321 = vst [vmem:[#allocation5 + $0x60] sm:$0xff] %v1293
    %1322 = vst [vmem:[#allocation5 + $0xa0] sm:$0xff] %v1298
    %1323 = vst [vmem:[#allocation5 + $0xe0] sm:$0xff] %v1301
    %1324 = vst [vmem:[#allocation5 + $0x120] sm:$0xff] %v1306
    %1325 = vst [vmem:[#allocation5 + $0x160] sm:$0xff] %v1309
    %1326 = vst [vmem:[#allocation5 + $0x1a0] sm:$0xff] %v1314
    %1327 = vst [vmem:[#allocation5 + $0x1e0] sm:$0xff] %v1317
    %v1328 = vld [vmem:[#allocation7 + $0x18] sm:$0xf]
    %v1329 = vld [vmem:[#allocation7 + $0x74] sm:$0xf]
    %v1330 = vld [vmem:[#allocation7 + $0xd0] sm:$0xf]
    %v1331 = vld [vmem:[#allocation7 + $0x12c] sm:$0xf]
    %v1332 = vld [vmem:[#allocation7 + $0x188] sm:$0xf]
    %v1333 = vld [vmem:[#allocation7 + $0x1e4] sm:$0xf]
    %v1334 = vld [vmem:[#allocation7 + $0x240] sm:$0xf]
    %v1335 = vld [vmem:[#allocation7 + $0x29c] sm:$0xf]
    %v1344 = vunpack.c.l.b16 %v1328
    %v1345 = vunpack.c.l.b16 %v1329
    %v1346 = vunpack.c.l.b16 %v1330
    %v1347 = vunpack.c.l.b16 %v1331
    %v1348 = vunpack.c.l.b16 %v1332
    %v1349 = vunpack.c.l.b16 %v1333
    %v1350 = vunpack.c.l.b16 %v1334
    %v1351 = vunpack.c.l.b16 %v1335
    %v1352 = vpack.c.b16 %v1345, %v1344
    %v1353 = vpack.c.b16 %v1347, %v1346
    %v1354 = vpack.c.b16 %v1349, %v1348
    %v1355 = vpack.c.b16 %v1351, %v1350
    %1360 = vmatprep.subr.bf16.mxu0 0
    %1361 = vmatpush1.bf16.msra.mxu0 %v1352
    %1362 = vmatprep.subr.bf16.mxu0 0
    %1363 = vmatpush1.bf16.msra.mxu0 %v1353
    %1364 = vmatprep.subr.bf16.mxu0 0
    %1365 = vmatpush1.bf16.msra.mxu0 %v1354
    %1366 = vmatprep.subr.bf16.mxu0 0
    %1367 = vmatpush1.bf16.msra.mxu0 %v1355
    %1368 = vmatprep.subr.bf16.mxu0 0
    %1369 = vmatpush1.bf16.msra.mxu0 0
    %1370 = vmatprep.subr.bf16.mxu0 0
    %1371 = vmatpush1.bf16.msra.mxu0 0
    %1372 = vmatprep.subr.bf16.mxu0 0
    %1373 = vmatpush1.bf16.msra.mxu0 0
    %1374 = vmatprep.subr.bf16.mxu0 0
    %1375 = vmatpush1.bf16.msra.mxu0 0
    %1376 = vmatprep.subr.bf16.mxu0 0
    %1377 = vmatpush1.bf16.msra.mxu0 0
    %1378 = vmatprep.subr.bf16.mxu0 0
    %1379 = vmatpush1.bf16.msra.mxu0 0
    %1380 = vmatprep.subr.bf16.mxu0 0
    %1381 = vmatpush1.bf16.msra.mxu0 0
    %1382 = vmatprep.subr.bf16.mxu0 0
    %1383 = vmatpush1.bf16.msra.mxu0 0
    %1384 = vmatprep.subr.bf16.mxu0 0
    %1385 = vmatpush1.bf16.msra.mxu0 0
    %1386 = vmatprep.subr.bf16.mxu0 0
    %1387 = vmatpush1.bf16.msra.mxu0 0
    %1388 = vmatprep.subr.bf16.mxu0 0
    %1389 = vmatpush1.bf16.msra.mxu0 0
    %1390 = vmatprep.subr.bf16.mxu0 0
    %1391 = vmatpush1.bf16.msra.mxu0 0
    %1392 = vmatprep.mubr.bf16.mxu0 0
    %1393 = vmatmul.mubr.bf16.gmra.mrb[0].mxu0 %v377
    %v1394 = vpop.f32.mrb[0].mxu0
    %v1395 = vadd.f32 0.0, %v1394
    %v1396 = vpop.f32.mrb[0].mxu0
    %v1397 = vpop.f32.mrb[0].mxu0
    %v1398 = vadd.f32 0.0, %v1397
    %v1399 = vpop.f32.mrb[0].mxu0
    %1400 = vmatprep.mubr.bf16.mxu0 0
    %1401 = vmatmul.mubr.bf16.gmra.mrb[0].mxu0 %v380
    %v1402 = vpop.f32.mrb[0].mxu0
    %v1403 = vadd.f32 0.0, %v1402
    %v1404 = vpop.f32.mrb[0].mxu0
    %v1405 = vpop.f32.mrb[0].mxu0
    %v1406 = vadd.f32 0.0, %v1405
    %v1407 = vpop.f32.mrb[0].mxu0
    %1408 = vmatprep.mubr.bf16.mxu0 0
    %1409 = vmatmul.mubr.bf16.gmra.mrb[0].mxu0 %v383
    %v1410 = vpop.f32.mrb[0].mxu0
    %v1411 = vadd.f32 0.0, %v1410
    %v1412 = vpop.f32.mrb[0].mxu0
    %v1413 = vpop.f32.mrb[0].mxu0
    %v1414 = vadd.f32 0.0, %v1413
    %v1415 = vpop.f32.mrb[0].mxu0
    %1416 = vmatprep.mubr.bf16.mxu0 0
    %1417 = vmatmul.mubr.bf16.gmra.mrb[0].mxu0 %v386
    %v1418 = vpop.f32.mrb[0].mxu0
    %v1419 = vadd.f32 0.0, %v1418
    %v1420 = vpop.f32.mrb[0].mxu0
    %v1421 = vpop.f32.mrb[0].mxu0
    %v1422 = vadd.f32 0.0, %v1421
    %v1423 = vpop.f32.mrb[0].mxu0
    %1424 = vdwg.mxu0
    %1425 = vst [vmem:[#allocation5 + $0x28] sm:$0xff] %v1395
    %1426 = vst [vmem:[#allocation5 + $0x68] sm:$0xff] %v1398
    %1427 = vst [vmem:[#allocation5 + $0xa8] sm:$0xff] %v1403
    %1428 = vst [vmem:[#allocation5 + $0xe8] sm:$0xff] %v1406
    %1429 = vst [vmem:[#allocation5 + $0x128] sm:$0xff] %v1411
    %1430 = vst [vmem:[#allocation5 + $0x168] sm:$0xff] %v1414
    %1431 = vst [vmem:[#allocation5 + $0x1a8] sm:$0xff] %v1419
    %1432 = vst [vmem:[#allocation5 + $0x1e8] sm:$0xff] %v1422
    %v1433 = vld [vmem:[#allocation7 + $0x1c] sm:$0xf]
    %v1434 = vld [vmem:[#allocation7 + $0x78] sm:$0xf]
    %v1435 = vld [vmem:[#allocation7 + $0xd4] sm:$0xf]
    %v1436 = vld [vmem:[#allocation7 + $0x130] sm:$0xf]
    %v1437 = vld [vmem:[#allocation7 + $0x18c] sm:$0xf]
    %v1438 = vld [vmem:[#allocation7 + $0x1e8] sm:$0xf]
    %v1439 = vld [vmem:[#allocation7 + $0x244] sm:$0xf]
    %v1440 = vld [vmem:[#allocation7 + $0x2a0] sm:$0xf]
    %v1449 = vunpack.c.l.b16 %v1433
    %v1450 = vunpack.c.l.b16 %v1434
    %v1451 = vunpack.c.l.b16 %v1435
    %v1452 = vunpack.c.l.b16 %v1436
    %v1453 = vunpack.c.l.b16 %v1437
    %v1454 = vunpack.c.l.b16 %v1438
    %v1455 = vunpack.c.l.b16 %v1439
    %v1456 = vunpack.c.l.b16 %v1440
    %v1457 = vpack.c.b16 %v1450, %v1449
    %v1458 = vpack.c.b16 %v1452, %v1451
    %v1459 = vpack.c.b16 %v1454, %v1453
    %v1460 = vpack.c.b16 %v1456, %v1455
    %1465 = vmatprep.subr.bf16.mxu0 0
    %1466 = vmatpush1.bf16.msra.mxu0 %v1457
    %1467 = vmatprep.subr.bf16.mxu0 0
    %1468 = vmatpush1.bf16.msra.mxu0 %v1458
    %1469 = vmatprep.subr.bf16.mxu0 0
    %1470 = vmatpush1.bf16.msra.mxu0 %v1459
    %1471 = vmatprep.subr.bf16.mxu0 0
    %1472 = vmatpush1.bf16.msra.mxu0 %v1460
    %1473 = vmatprep.subr.bf16.mxu0 0
    %1474 = vmatpush1.bf16.msra.mxu0 0
    %1475 = vmatprep.subr.bf16.mxu0 0
    %1476 = vmatpush1.bf16.msra.mxu0 0
    %1477 = vmatprep.subr.bf16.mxu0 0
    %1478 = vmatpush1.bf16.msra.mxu0 0
    %1479 = vmatprep.subr.bf16.mxu0 0
    %1480 = vmatpush1.bf16.msra.mxu0 0
    %1481 = vmatprep.subr.bf16.mxu0 0
    %1482 = vmatpush1.bf16.msra.mxu0 0
    %1483 = vmatprep.subr.bf16.mxu0 0
    %1484 = vmatpush1.bf16.msra.mxu0 0
    %1485 = vmatprep.subr.bf16.mxu0 0
    %1486 = vmatpush1.bf16.msra.mxu0 0
    %1487 = vmatprep.subr.bf16.mxu0 0
    %1488 = vmatpush1.bf16.msra.mxu0 0
    %1489 = vmatprep.subr.bf16.mxu0 0
    %1490 = vmatpush1.bf16.msra.mxu0 0
    %1491 = vmatprep.subr.bf16.mxu0 0
    %1492 = vmatpush1.bf16.msra.mxu0 0
    %1493 = vmatprep.subr.bf16.mxu0 0
    %1494 = vmatpush1.bf16.msra.mxu0 0
    %1495 = vmatprep.subr.bf16.mxu0 0
    %1496 = vmatpush1.bf16.msra.mxu0 0
    %1497 = vmatprep.mubr.bf16.mxu0 0
    %1498 = vmatmul.mubr.bf16.gmra.mrb[0].mxu0 %v377
    %v1499 = vpop.f32.mrb[0].mxu0
    %v1500 = vadd.f32 0.0, %v1499
    %v1501 = vpop.f32.mrb[0].mxu0
    %v1502 = vpop.f32.mrb[0].mxu0
    %v1503 = vadd.f32 0.0, %v1502
    %v1504 = vpop.f32.mrb[0].mxu0
    %1505 = vmatprep.mubr.bf16.mxu0 0
    %1506 = vmatmul.mubr.bf16.gmra.mrb[0].mxu0 %v380
    %v1507 = vpop.f32.mrb[0].mxu0
    %v1508 = vadd.f32 0.0, %v1507
    %v1509 = vpop.f32.mrb[0].mxu0
    %v1510 = vpop.f32.mrb[0].mxu0
    %v1511 = vadd.f32 0.0, %v1510
    %v1512 = vpop.f32.mrb[0].mxu0
    %1513 = vmatprep.mubr.bf16.mxu0 0
    %1514 = vmatmul.mubr.bf16.gmra.mrb[0].mxu0 %v383
    %v1515 = vpop.f32.mrb[0].mxu0
    %v1516 = vadd.f32 0.0, %v1515
    %v1517 = vpop.f32.mrb[0].mxu0
    %v1518 = vpop.f32.mrb[0].mxu0
    %v1519 = vadd.f32 0.0, %v1518
    %v1520 = vpop.f32.mrb[0].mxu0
    %1521 = vmatprep.mubr.bf16.mxu0 0
    %1522 = vmatmul.mubr.bf16.gmra.mrb[0].mxu0 %v386
    %v1523 = vpop.f32.mrb[0].mxu0
    %v1524 = vadd.f32 0.0, %v1523
    %v1525 = vpop.f32.mrb[0].mxu0
    %v1526 = vpop.f32.mrb[0].mxu0
    %v1527 = vadd.f32 0.0, %v1526
    %v1528 = vpop.f32.mrb[0].mxu0
    %1529 = vdwg.mxu0
    %1530 = vst [vmem:[#allocation5 + $0x30] sm:$0xff] %v1500
    %1531 = vst [vmem:[#allocation5 + $0x70] sm:$0xff] %v1503
    %1532 = vst [vmem:[#allocation5 + $0xb0] sm:$0xff] %v1508
    %1533 = vst [vmem:[#allocation5 + $0xf0] sm:$0xff] %v1511
    %1534 = vst [vmem:[#allocation5 + $0x130] sm:$0xff] %v1516
    %1535 = vst [vmem:[#allocation5 + $0x170] sm:$0xff] %v1519
    %1536 = vst [vmem:[#allocation5 + $0x1b0] sm:$0xff] %v1524
    %1537 = vst [vmem:[#allocation5 + $0x1f0] sm:$0xff] %v1527
    %v1538 = vld [vmem:[#allocation7 + $0x20] sm:$0xf]
    %v1539 = vld [vmem:[#allocation7 + $0x7c] sm:$0xf]
    %v1540 = vld [vmem:[#allocation7 + $0xd8] sm:$0xf]
    %v1541 = vld [vmem:[#allocation7 + $0x134] sm:$0xf]
    %v1542 = vld [vmem:[#allocation7 + $0x190] sm:$0xf]
    %v1543 = vld [vmem:[#allocation7 + $0x1ec] sm:$0xf]
    %v1544 = vld [vmem:[#allocation7 + $0x248] sm:$0xf]
    %v1545 = vld [vmem:[#allocation7 + $0x2a4] sm:$0xf]
    %v1554 = vunpack.c.l.b16 %v1538
    %v1555 = vunpack.c.l.b16 %v1539
    %v1556 = vunpack.c.l.b16 %v1540
    %v1557 = vunpack.c.l.b16 %v1541
    %v1558 = vunpack.c.l.b16 %v1542
    %v1559 = vunpack.c.l.b16 %v1543
    %v1560 = vunpack.c.l.b16 %v1544
    %v1561 = vunpack.c.l.b16 %v1545
    %v1562 = vpack.c.b16 %v1555, %v1554
    %v1563 = vpack.c.b16 %v1557, %v1556
    %v1564 = vpack.c.b16 %v1559, %v1558
    %v1565 = vpack.c.b16 %v1561, %v1560
    %1570 = vmatprep.subr.bf16.mxu0 0
    %1571 = vmatpush1.bf16.msra.mxu0 %v1562
    %1572 = vmatprep.subr.bf16.mxu0 0
    %1573 = vmatpush1.bf16.msra.mxu0 %v1563
    %1574 = vmatprep.subr.bf16.mxu0 0
    %1575 = vmatpush1.bf16.msra.mxu0 %v1564
    %1576 = vmatprep.subr.bf16.mxu0 0
    %1577 = vmatpush1.bf16.msra.mxu0 %v1565
    %1578 = vmatprep.subr.bf16.mxu0 0
    %1579 = vmatpush1.bf16.msra.mxu0 0
    %1580 = vmatprep.subr.bf16.mxu0 0
    %1581 = vmatpush1.bf16.msra.mxu0 0
    %1582 = vmatprep.subr.bf16.mxu0 0
    %1583 = vmatpush1.bf16.msra.mxu0 0
    %1584 = vmatprep.subr.bf16.mxu0 0
    %1585 = vmatpush1.bf16.msra.mxu0 0
    %1586 = vmatprep.subr.bf16.mxu0 0
    %1587 = vmatpush1.bf16.msra.mxu0 0
    %1588 = vmatprep.subr.bf16.mxu0 0
    %1589 = vmatpush1.bf16.msra.mxu0 0
    %1590 = vmatprep.subr.bf16.mxu0 0
    %1591 = vmatpush1.bf16.msra.mxu0 0
    %1592 = vmatprep.subr.bf16.mxu0 0
    %1593 = vmatpush1.bf16.msra.mxu0 0
    %1594 = vmatprep.subr.bf16.mxu0 0
    %1595 = vmatpush1.bf16.msra.mxu0 0
    %1596 = vmatprep.subr.bf16.mxu0 0
    %1597 = vmatpush1.bf16.msra.mxu0 0
    %1598 = vmatprep.subr.bf16.mxu0 0
    %1599 = vmatpush1.bf16.msra.mxu0 0
    %1600 = vmatprep.subr.bf16.mxu0 0
    %1601 = vmatpush1.bf16.msra.mxu0 0
    %1602 = vmatprep.mubr.bf16.mxu0 0
    %1603 = vmatmul.mubr.bf16.gmra.mrb[0].mxu0 %v377
    %v1604 = vpop.f32.mrb[0].mxu0
    %v1605 = vadd.f32 0.0, %v1604
    %v1606 = vpop.f32.mrb[0].mxu0
    %v1607 = vpop.f32.mrb[0].mxu0
    %v1608 = vadd.f32 0.0, %v1607
    %v1609 = vpop.f32.mrb[0].mxu0
    %1610 = vmatprep.mubr.bf16.mxu0 0
    %1611 = vmatmul.mubr.bf16.gmra.mrb[0].mxu0 %v380
    %v1612 = vpop.f32.mrb[0].mxu0
    %v1613 = vadd.f32 0.0, %v1612
    %v1614 = vpop.f32.mrb[0].mxu0
    %v1615 = vpop.f32.mrb[0].mxu0
    %v1616 = vadd.f32 0.0, %v1615
    %v1617 = vpop.f32.mrb[0].mxu0
    %1618 = vmatprep.mubr.bf16.mxu0 0
    %1619 = vmatmul.mubr.bf16.gmra.mrb[0].mxu0 %v383
    %v1620 = vpop.f32.mrb[0].mxu0
    %v1621 = vadd.f32 0.0, %v1620
    %v1622 = vpop.f32.mrb[0].mxu0
    %v1623 = vpop.f32.mrb[0].mxu0
    %v1624 = vadd.f32 0.0, %v1623
    %v1625 = vpop.f32.mrb[0].mxu0
    %1626 = vmatprep.mubr.bf16.mxu0 0
    %1627 = vmatmul.mubr.bf16.gmra.mrb[0].mxu0 %v386
    %v1628 = vpop.f32.mrb[0].mxu0
    %v1629 = vadd.f32 0.0, %v1628
    %v1630 = vpop.f32.mrb[0].mxu0
    %v1631 = vpop.f32.mrb[0].mxu0
    %v1632 = vadd.f32 0.0, %v1631
    %v1633 = vpop.f32.mrb[0].mxu0
    %1634 = vdwg.mxu0
    %1635 = vst [vmem:[#allocation5 + $0x38] sm:$0xff] %v1605
    %1636 = vst [vmem:[#allocation5 + $0x78] sm:$0xff] %v1608
    %1637 = vst [vmem:[#allocation5 + $0xb8] sm:$0xff] %v1613
    %1638 = vst [vmem:[#allocation5 + $0xf8] sm:$0xff] %v1616
    %1639 = vst [vmem:[#allocation5 + $0x138] sm:$0xff] %v1621
    %1640 = vst [vmem:[#allocation5 + $0x178] sm:$0xff] %v1624
    %1641 = vst [vmem:[#allocation5 + $0x1b8] sm:$0xff] %v1629
    %1642 = vst [vmem:[#allocation5 + $0x1f8] sm:$0xff] %v1632
    %v1643 = vld [vmem:[#allocation6] sm:$0xff]
    %v1644 = vld [vmem:[#allocation6 + $0x8] sm:$0xff]
    %v1645 = vld [vmem:[#allocation6 + $0x10] sm:$0xff]
    %v1646 = vld [vmem:[#allocation6 + $0x18] sm:$0xff]
    %v1647 = vmul.f32 %v1643, 0.0
    %v1648 = vmul.f32 %v1644, 0.0
    %v1649 = vmul.f32 %v1645, 0.0
    %v1650 = vmul.f32 %v1646, 0.0
    %v1651 = vld [vmem:[#allocation5] sm:$0xff]
    %v1652 = vld [vmem:[#allocation5 + $0x8] sm:$0xff]
    %v1653 = vld [vmem:[#allocation5 + $0x10] sm:$0xff]
    %v1654 = vld [vmem:[#allocation5 + $0x18] sm:$0xff]
    %v1655 = vadd.f32 %v1647, %v1651
    %v1656 = vadd.f32 %v1648, %v1652
    %v1657 = vadd.f32 %v1649, %v1653
    %v1658 = vadd.f32 %v1650, %v1654
    %v1659 = vld [vmem:[#allocation5 + $0x20] sm:$0xff]
    %v1660 = vld [vmem:[#allocation5 + $0x28] sm:$0xff]
    %v1661 = vld [vmem:[#allocation5 + $0x30] sm:$0xff]
    %v1662 = vld [vmem:[#allocation5 + $0x38] sm:$0xff]
    %v1663 = vmul.f32 %v1659, %v1655
    %v1664 = vmul.f32 %v1660, %v1656
    %v1665 = vmul.f32 %v1661, %v1657
    %v1666 = vmul.f32 %v1662, %v1658
    %v1667 = vadd.f32 %v1663, %v1665
    %v1668 = vadd.f32 %v1664, %v1666
    %v1669 = vadd.f32 %v1667, %v1668
    %1671 = vrot.lane.b32.xlu0 %v1669, 64
    %v1672 = vpop.permute.xlu0 %1671
    %v1674 = vadd.f32 %v1669, %v1672
    %v1675 = vld [vmem:[#allocation4] sm:$0xff]
    %v1676 = vadd.f32 %v1675, %v1674
    %1677 = vst.msk [vmem:[#allocation4] sm:$0xff] %vm29, %v1676
    %v1678 = vld [vmem:[#allocation6 + $0x20] sm:$0xff]
    %v1679 = vld [vmem:[#allocation6 + $0x28] sm:$0xff]
    %v1680 = vld [vmem:[#allocation6 + $0x30] sm:$0xff]
    %v1681 = vld [vmem:[#allocation6 + $0x38] sm:$0xff]
    %v1682 = vmul.f32 %v1678, %v1655
    %v1683 = vmul.f32 %v1679, %v1656
    %v1684 = vmul.f32 %v1680, %v1657
    %v1685 = vmul.f32 %v1681, %v1658
    %v1686 = vld [vmem:[#allocation5 + $0x40] sm:$0xff]
    %v1687 = vld [vmem:[#allocation5 + $0x48] sm:$0xff]
    %v1688 = vld [vmem:[#allocation5 + $0x50] sm:$0xff]
    %v1689 = vld [vmem:[#allocation5 + $0x58] sm:$0xff]
    %v1690 = vadd.f32 %v1682, %v1686
    %v1691 = vadd.f32 %v1683, %v1687
    %v1692 = vadd.f32 %v1684, %v1688
    %v1693 = vadd.f32 %v1685, %v1689
    %v1694 = vld [vmem:[#allocation5 + $0x60] sm:$0xff]
    %v1695 = vld [vmem:[#allocation5 + $0x68] sm:$0xff]
    %v1696 = vld [vmem:[#allocation5 + $0x70] sm:$0xff]
    %v1697 = vld [vmem:[#allocation5 + $0x78] sm:$0xff]
    %v1698 = vmul.f32 %v1694, %v1690
    %v1699 = vmul.f32 %v1695, %v1691
    %v1700 = vmul.f32 %v1696, %v1692
    %v1701 = vmul.f32 %v1697, %v1693
    %v1702 = vadd.f32 %v1698, %v1700
    %v1703 = vadd.f32 %v1699, %v1701
    %v1704 = vadd.f32 %v1702, %v1703
    %1706 = vrot.lane.b32.xlu0 %v1704, 64
    %v1707 = vpop.permute.xlu0 %1706
    %v1709 = vadd.f32 %v1704, %v1707
    %v1710 = vld [vmem:[#allocation4 + $0x8] sm:$0xff]
    %v1711 = vadd.f32 %v1710, %v1709
    %1712 = vst.msk [vmem:[#allocation4 + $0x8] sm:$0xff] %vm29, %v1711
    %v1713 = vld [vmem:[#allocation6 + $0x40] sm:$0xff]
    %v1714 = vld [vmem:[#allocation6 + $0x48] sm:$0xff]
    %v1715 = vld [vmem:[#allocation6 + $0x50] sm:$0xff]
    %v1716 = vld [vmem:[#allocation6 + $0x58] sm:$0xff]
    %v1717 = vmul.f32 %v1713, %v1690
    %v1718 = vmul.f32 %v1714, %v1691
    %v1719 = vmul.f32 %v1715, %v1692
    %v1720 = vmul.f32 %v1716, %v1693
    %v1721 = vld [vmem:[#allocation5 + $0x80] sm:$0xff]
    %v1722 = vld [vmem:[#allocation5 + $0x88] sm:$0xff]
    %v1723 = vld [vmem:[#allocation5 + $0x90] sm:$0xff]
    %v1724 = vld [vmem:[#allocation5 + $0x98] sm:$0xff]
    %v1725 = vadd.f32 %v1717, %v1721
    %v1726 = vadd.f32 %v1718, %v1722
    %v1727 = vadd.f32 %v1719, %v1723
    %v1728 = vadd.f32 %v1720, %v1724
    %v1729 = vld [vmem:[#allocation5 + $0xa0] sm:$0xff]
    %v1730 = vld [vmem:[#allocation5 + $0xa8] sm:$0xff]
    %v1731 = vld [vmem:[#allocation5 + $0xb0] sm:$0xff]
    %v1732 = vld [vmem:[#allocation5 + $0xb8] sm:$0xff]
    %v1733 = vmul.f32 %v1729, %v1725
    %v1734 = vmul.f32 %v1730, %v1726
    %v1735 = vmul.f32 %v1731, %v1727
    %v1736 = vmul.f32 %v1732, %v1728
    %v1737 = vadd.f32 %v1733, %v1735
    %v1738 = vadd.f32 %v1734, %v1736
    %v1739 = vadd.f32 %v1737, %v1738
    %1741 = vrot.lane.b32.xlu0 %v1739, 64
    %v1742 = vpop.permute.xlu0 %1741
    %v1744 = vadd.f32 %v1739, %v1742
    %v1745 = vld [vmem:[#allocation4 + $0x10] sm:$0xff]
    %v1746 = vadd.f32 %v1745, %v1744
    %1747 = vst.msk [vmem:[#allocation4 + $0x10] sm:$0xff] %vm29, %v1746
    %v1748 = vld [vmem:[#allocation6 + $0x60] sm:$0xff]
    %v1749 = vld [vmem:[#allocation6 + $0x68] sm:$0xff]
    %v1750 = vld [vmem:[#allocation6 + $0x70] sm:$0xff]
    %v1751 = vld [vmem:[#allocation6 + $0x78] sm:$0xff]
    %v1752 = vmul.f32 %v1748, %v1725
    %v1753 = vmul.f32 %v1749, %v1726
    %v1754 = vmul.f32 %v1750, %v1727
    %v1755 = vmul.f32 %v1751, %v1728
    %v1756 = vld [vmem:[#allocation5 + $0xc0] sm:$0xff]
    %v1757 = vld [vmem:[#allocation5 + $0xc8] sm:$0xff]
    %v1758 = vld [vmem:[#allocation5 + $0xd0] sm:$0xff]
    %v1759 = vld [vmem:[#allocation5 + $0xd8] sm:$0xff]
    %v1760 = vadd.f32 %v1752, %v1756
    %v1761 = vadd.f32 %v1753, %v1757
    %v1762 = vadd.f32 %v1754, %v1758
    %v1763 = vadd.f32 %v1755, %v1759
    %v1764 = vld [vmem:[#allocation5 + $0xe0] sm:$0xff]
    %v1765 = vld [vmem:[#allocation5 + $0xe8] sm:$0xff]
    %v1766 = vld [vmem:[#allocation5 + $0xf0] sm:$0xff]
    %v1767 = vld [vmem:[#allocation5 + $0xf8] sm:$0xff]
    %v1768 = vmul.f32 %v1764, %v1760
    %v1769 = vmul.f32 %v1765, %v1761
    %v1770 = vmul.f32 %v1766, %v1762
    %v1771 = vmul.f32 %v1767, %v1763
    %v1772 = vadd.f32 %v1768, %v1770
    %v1773 = vadd.f32 %v1769, %v1771
    %v1774 = vadd.f32 %v1772, %v1773
    %1776 = vrot.lane.b32.xlu0 %v1774, 64
    %v1777 = vpop.permute.xlu0 %1776
    %v1779 = vadd.f32 %v1774, %v1777
    %v1780 = vld [vmem:[#allocation4 + $0x18] sm:$0xff]
    %v1781 = vadd.f32 %v1780, %v1779
    %1782 = vst.msk [vmem:[#allocation4 + $0x18] sm:$0xff] %vm29, %v1781
    %v1783 = vld [vmem:[#allocation6 + $0x80] sm:$0xff]
    %v1784 = vld [vmem:[#allocation6 + $0x88] sm:$0xff]
    %v1785 = vld [vmem:[#allocation6 + $0x90] sm:$0xff]
    %v1786 = vld [vmem:[#allocation6 + $0x98] sm:$0xff]
    %v1787 = vmul.f32 %v1783, %v1760
    %v1788 = vmul.f32 %v1784, %v1761
    %v1789 = vmul.f32 %v1785, %v1762
    %v1790 = vmul.f32 %v1786, %v1763
    %v1791 = vld [vmem:[#allocation5 + $0x100] sm:$0xff]
    %v1792 = vld [vmem:[#allocation5 + $0x108] sm:$0xff]
    %v1793 = vld [vmem:[#allocation5 + $0x110] sm:$0xff]
    %v1794 = vld [vmem:[#allocation5 + $0x118] sm:$0xff]
    %v1795 = vadd.f32 %v1787, %v1791
    %v1796 = vadd.f32 %v1788, %v1792
    %v1797 = vadd.f32 %v1789, %v1793
    %v1798 = vadd.f32 %v1790, %v1794
    %v1799 = vld [vmem:[#allocation5 + $0x120] sm:$0xff]
    %v1800 = vld [vmem:[#allocation5 + $0x128] sm:$0xff]
    %v1801 = vld [vmem:[#allocation5 + $0x130] sm:$0xff]
    %v1802 = vld [vmem:[#allocation5 + $0x138] sm:$0xff]
    %v1803 = vmul.f32 %v1799, %v1795
    %v1804 = vmul.f32 %v1800, %v1796
    %v1805 = vmul.f32 %v1801, %v1797
    %v1806 = vmul.f32 %v1802, %v1798
    %v1807 = vadd.f32 %v1803, %v1805
    %v1808 = vadd.f32 %v1804, %v1806
    %v1809 = vadd.f32 %v1807, %v1808
    %1811 = vrot.lane.b32.xlu0 %v1809, 64
    %v1812 = vpop.permute.xlu0 %1811
    %v1814 = vadd.f32 %v1809, %v1812
    %v1815 = vld [vmem:[#allocation4 + $0x20] sm:$0xff]
    %v1816 = vadd.f32 %v1815, %v1814
    %1817 = vst.msk [vmem:[#allocation4 + $0x20] sm:$0xff] %vm29, %v1816
    %v1818 = vld [vmem:[#allocation6 + $0xa0] sm:$0xff]
    %v1819 = vld [vmem:[#allocation6 + $0xa8] sm:$0xff]
    %v1820 = vld [vmem:[#allocation6 + $0xb0] sm:$0xff]
    %v1821 = vld [vmem:[#allocation6 + $0xb8] sm:$0xff]
    %v1822 = vmul.f32 %v1818, %v1795
    %v1823 = vmul.f32 %v1819, %v1796
    %v1824 = vmul.f32 %v1820, %v1797
    %v1825 = vmul.f32 %v1821, %v1798
    %v1826 = vld [vmem:[#allocation5 + $0x140] sm:$0xff]
    %v1827 = vld [vmem:[#allocation5 + $0x148] sm:$0xff]
    %v1828 = vld [vmem:[#allocation5 + $0x150] sm:$0xff]
    %v1829 = vld [vmem:[#allocation5 + $0x158] sm:$0xff]
    %v1830 = vadd.f32 %v1822, %v1826
    %v1831 = vadd.f32 %v1823, %v1827
    %v1832 = vadd.f32 %v1824, %v1828
    %v1833 = vadd.f32 %v1825, %v1829
    %v1834 = vld [vmem:[#allocation5 + $0x160] sm:$0xff]
    %v1835 = vld [vmem:[#allocation5 + $0x168] sm:$0xff]
    %v1836 = vld [vmem:[#allocation5 + $0x170] sm:$0xff]
    %v1837 = vld [vmem:[#allocation5 + $0x178] sm:$0xff]
    %v1838 = vmul.f32 %v1834, %v1830
    %v1839 = vmul.f32 %v1835, %v1831
    %v1840 = vmul.f32 %v1836, %v1832
    %v1841 = vmul.f32 %v1837, %v1833
    %v1842 = vadd.f32 %v1838, %v1840
    %v1843 = vadd.f32 %v1839, %v1841
    %v1844 = vadd.f32 %v1842, %v1843
    %1846 = vrot.lane.b32.xlu0 %v1844, 64
    %v1847 = vpop.permute.xlu0 %1846
    %v1849 = vadd.f32 %v1844, %v1847
    %v1850 = vld [vmem:[#allocation4 + $0x28] sm:$0xff]
    %v1851 = vadd.f32 %v1850, %v1849
    %1852 = vst.msk [vmem:[#allocation4 + $0x28] sm:$0xff] %vm29, %v1851
    %v1853 = vld [vmem:[#allocation6 + $0xc0] sm:$0xff]
    %v1854 = vld [vmem:[#allocation6 + $0xc8] sm:$0xff]
    %v1855 = vld [vmem:[#allocation6 + $0xd0] sm:$0xff]
    %v1856 = vld [vmem:[#allocation6 + $0xd8] sm:$0xff]
    %v1857 = vmul.f32 %v1853, %v1830
    %v1858 = vmul.f32 %v1854, %v1831
    %v1859 = vmul.f32 %v1855, %v1832
    %v1860 = vmul.f32 %v1856, %v1833
    %v1861 = vld [vmem:[#allocation5 + $0x180] sm:$0xff]
    %v1862 = vld [vmem:[#allocation5 + $0x188] sm:$0xff]
    %v1863 = vld [vmem:[#allocation5 + $0x190] sm:$0xff]
    %v1864 = vld [vmem:[#allocation5 + $0x198] sm:$0xff]
    %v1865 = vadd.f32 %v1857, %v1861
    %v1866 = vadd.f32 %v1858, %v1862
    %v1867 = vadd.f32 %v1859, %v1863
    %v1868 = vadd.f32 %v1860, %v1864
    %v1869 = vld [vmem:[#allocation5 + $0x1a0] sm:$0xff]
    %v1870 = vld [vmem:[#allocation5 + $0x1a8] sm:$0xff]
    %v1871 = vld [vmem:[#allocation5 + $0x1b0] sm:$0xff]
    %v1872 = vld [vmem:[#allocation5 + $0x1b8] sm:$0xff]
    %v1873 = vmul.f32 %v1869, %v1865
    %v1874 = vmul.f32 %v1870, %v1866
    %v1875 = vmul.f32 %v1871, %v1867
    %v1876 = vmul.f32 %v1872, %v1868
    %v1877 = vadd.f32 %v1873, %v1875
    %v1878 = vadd.f32 %v1874, %v1876
    %v1879 = vadd.f32 %v1877, %v1878
    %1881 = vrot.lane.b32.xlu0 %v1879, 64
    %v1882 = vpop.permute.xlu0 %1881
    %v1884 = vadd.f32 %v1879, %v1882
    %v1885 = vld [vmem:[#allocation4 + $0x30] sm:$0xff]
    %v1886 = vadd.f32 %v1885, %v1884
    %1887 = vst.msk [vmem:[#allocation4 + $0x30] sm:$0xff] %vm29, %v1886
    %v1888 = vld [vmem:[#allocation6 + $0xe0] sm:$0xff]
    %v1889 = vld [vmem:[#allocation6 + $0xe8] sm:$0xff]
    %v1890 = vld [vmem:[#allocation6 + $0xf0] sm:$0xff]
    %v1891 = vld [vmem:[#allocation6 + $0xf8] sm:$0xff]
    %v1892 = vmul.f32 %v1888, %v1865
    %v1893 = vmul.f32 %v1889, %v1866
    %v1894 = vmul.f32 %v1890, %v1867
    %v1895 = vmul.f32 %v1891, %v1868
    %v1896 = vld [vmem:[#allocation5 + $0x1c0] sm:$0xff]
    %v1897 = vld [vmem:[#allocation5 + $0x1c8] sm:$0xff]
    %v1898 = vld [vmem:[#allocation5 + $0x1d0] sm:$0xff]
    %v1899 = vld [vmem:[#allocation5 + $0x1d8] sm:$0xff]
    %v1900 = vadd.f32 %v1892, %v1896
    %v1901 = vadd.f32 %v1893, %v1897
    %v1902 = vadd.f32 %v1894, %v1898
    %v1903 = vadd.f32 %v1895, %v1899
    %v1904 = vld [vmem:[#allocation5 + $0x1e0] sm:$0xff]
    %v1905 = vld [vmem:[#allocation5 + $0x1e8] sm:$0xff]
    %v1906 = vld [vmem:[#allocation5 + $0x1f0] sm:$0xff]
    %v1907 = vld [vmem:[#allocation5 + $0x1f8] sm:$0xff]
    %v1908 = vmul.f32 %v1904, %v1900
    %v1909 = vmul.f32 %v1905, %v1901
    %v1910 = vmul.f32 %v1906, %v1902
    %v1911 = vmul.f32 %v1907, %v1903
    %v1912 = vadd.f32 %v1908, %v1910
    %v1913 = vadd.f32 %v1909, %v1911
    %v1914 = vadd.f32 %v1912, %v1913
    %1916 = vrot.lane.b32.xlu0 %v1914, 64
    %v1917 = vpop.permute.xlu0 %1916
    %v1919 = vadd.f32 %v1914, %v1917
    %v1920 = vld [vmem:[#allocation4 + $0x38] sm:$0xff]
    %v1921 = vadd.f32 %v1920, %v1919
    %1922 = vst.msk [vmem:[#allocation4 + $0x38] sm:$0xff] %vm29, %v1921
    %v1923 = vld [vmem:[#allocation4] sm:$0xff]
    %v1924 = vld [vmem:[#allocation4 + $0x8] sm:$0xff]
    %v1925 = vld [vmem:[#allocation4 + $0x10] sm:$0xff]
    %v1926 = vld [vmem:[#allocation4 + $0x18] sm:$0xff]
    %v1927 = vld [vmem:[#allocation4 + $0x20] sm:$0xff]
    %v1928 = vld [vmem:[#allocation4 + $0x28] sm:$0xff]
    %v1929 = vld [vmem:[#allocation4 + $0x30] sm:$0xff]
    %v1930 = vld [vmem:[#allocation4 + $0x38] sm:$0xff]
    %v1931 = vld [vmem:[#allocation3] sm:$0xff]
    %v1932 = vld [vmem:[#allocation3 + $0x8] sm:$0xff]
    %v1933 = vld [vmem:[#allocation3 + $0x10] sm:$0xff]
    %v1934 = vld [vmem:[#allocation3 + $0x18] sm:$0xff]
    %v1935 = vld [vmem:[#allocation3 + $0x20] sm:$0xff]
    %v1936 = vld [vmem:[#allocation3 + $0x28] sm:$0xff]
    %v1937 = vld [vmem:[#allocation3 + $0x30] sm:$0xff]
    %v1938 = vld [vmem:[#allocation3 + $0x38] sm:$0xff]
    %v1939 = vmul.f32 %v1923, %v1931
    %v1940 = vmul.f32 %v1924, %v1932
    %v1941 = vmul.f32 %v1925, %v1933
    %v1942 = vmul.f32 %v1926, %v1934
    %v1943 = vmul.f32 %v1927, %v1935
    %v1944 = vmul.f32 %v1928, %v1936
    %v1945 = vmul.f32 %v1929, %v1937
    %v1946 = vmul.f32 %v1930, %v1938
    %v1947 = vpack.c.bf16 %v1940, %v1939
    %v1948 = vpack.c.bf16 %v1942, %v1941
    %v1949 = vpack.c.bf16 %v1944, %v1943
    %v1950 = vpack.c.bf16 %v1946, %v1945
    %v1951 = vld [vmem:[#allocation7 + $0x28] sm:$0xf]
    %v1952 = vld [vmem:[#allocation7 + $0x84] sm:$0xf]
    %v1953 = vld [vmem:[#allocation7 + $0xe0] sm:$0xf]
    %v1954 = vld [vmem:[#allocation7 + $0x13c] sm:$0xf]
    %v1955 = vld [vmem:[#allocation7 + $0x198] sm:$0xf]
    %v1956 = vld [vmem:[#allocation7 + $0x1f4] sm:$0xf]
    %v1957 = vld [vmem:[#allocation7 + $0x250] sm:$0xf]
    %v1958 = vld [vmem:[#allocation7 + $0x2ac] sm:$0xf]
    %v1967 = vunpack.c.l.b16 %v1951
    %v1968 = vunpack.c.l.b16 %v1952
    %v1969 = vunpack.c.l.b16 %v1953
    %v1970 = vunpack.c.l.b16 %v1954
    %v1971 = vunpack.c.l.b16 %v1955
    %v1972 = vunpack.c.l.b16 %v1956
    %v1973 = vunpack.c.l.b16 %v1957
    %v1974 = vunpack.c.l.b16 %v1958
    %v1975 = vpack.c.b16 %v1968, %v1967
    %v1976 = vpack.c.b16 %v1970, %v1969
    %v1977 = vpack.c.b16 %v1972, %v1971
    %v1978 = vpack.c.b16 %v1974, %v1973
    %v1984 = vsel %vm29, %v1947, 0
    %v1987 = vsel %vm29, %v1948, 0
    %v1990 = vsel %vm29, %v1949, 0
    %v1993 = vsel %vm29, %v1950, 0
    %1995 = vmatprep.subr.bf16.mxu0 0
    %1996 = vmatpush1.bf16.msra.mxu0 %v1975
    %1997 = vmatprep.subr.bf16.mxu0 0
    %1998 = vmatpush1.bf16.msra.mxu0 %v1976
    %1999 = vmatprep.subr.bf16.mxu0 0
    %2000 = vmatpush1.bf16.msra.mxu0 %v1977
    %2001 = vmatprep.subr.bf16.mxu0 0
    %2002 = vmatpush1.bf16.msra.mxu0 %v1978
    %2003 = vmatprep.subr.bf16.mxu0 0
    %2004 = vmatpush1.bf16.msra.mxu0 0
    %2005 = vmatprep.subr.bf16.mxu0 0
    %2006 = vmatpush1.bf16.msra.mxu0 0
    %2007 = vmatprep.subr.bf16.mxu0 0
    %2008 = vmatpush1.bf16.msra.mxu0 0
    %2009 = vmatprep.subr.bf16.mxu0 0
    %2010 = vmatpush1.bf16.msra.mxu0 0
    %2011 = vmatprep.subr.bf16.mxu0 0
    %2012 = vmatpush1.bf16.msra.mxu0 0
    %2013 = vmatprep.subr.bf16.mxu0 0
    %2014 = vmatpush1.bf16.msra.mxu0 0
    %2015 = vmatprep.subr.bf16.mxu0 0
    %2016 = vmatpush1.bf16.msra.mxu0 0
    %2017 = vmatprep.subr.bf16.mxu0 0
    %2018 = vmatpush1.bf16.msra.mxu0 0
    %2019 = vmatprep.subr.bf16.mxu0 0
    %2020 = vmatpush1.bf16.msra.mxu0 0
    %2021 = vmatprep.subr.bf16.mxu0 0
    %2022 = vmatpush1.bf16.msra.mxu0 0
    %2023 = vmatprep.subr.bf16.mxu0 0
    %2024 = vmatpush1.bf16.msra.mxu0 0
    %2025 = vmatprep.subr.bf16.mxu0 0
    %2026 = vmatpush1.bf16.msra.mxu0 0
    %2027 = vmatprep.mubr.bf16.mxu0 0
    %2028 = vmatmul.mubr.bf16.gmra.mrb[0].mxu0 %v1984
    %v2029 = vpop.f32.mrb[0].mxu0
    %v2030 = vadd.f32 0.0, %v2029
    %v2031 = vpop.f32.mrb[0].mxu0
    %v2032 = vpop.f32.mrb[0].mxu0
    %v2033 = vadd.f32 0.0, %v2032
    %v2034 = vpop.f32.mrb[0].mxu0
    %2035 = vmatprep.mubr.bf16.mxu0 0
    %2036 = vmatmul.mubr.bf16.gmra.mrb[0].mxu0 %v1987
    %v2037 = vpop.f32.mrb[0].mxu0
    %v2038 = vadd.f32 0.0, %v2037
    %v2039 = vpop.f32.mrb[0].mxu0
    %v2040 = vpop.f32.mrb[0].mxu0
    %v2041 = vadd.f32 0.0, %v2040
    %v2042 = vpop.f32.mrb[0].mxu0
    %2043 = vmatprep.mubr.bf16.mxu0 0
    %2044 = vmatmul.mubr.bf16.gmra.mrb[0].mxu0 %v1990
    %v2045 = vpop.f32.mrb[0].mxu0
    %v2046 = vadd.f32 0.0, %v2045
    %v2047 = vpop.f32.mrb[0].mxu0
    %v2048 = vpop.f32.mrb[0].mxu0
    %v2049 = vadd.f32 0.0, %v2048
    %v2050 = vpop.f32.mrb[0].mxu0
    %2051 = vmatprep.mubr.bf16.mxu0 0
    %2052 = vmatmul.mubr.bf16.gmra.mrb[0].mxu0 %v1993
    %v2053 = vpop.f32.mrb[0].mxu0
    %v2054 = vadd.f32 0.0, %v2053
    %v2055 = vpop.f32.mrb[0].mxu0
    %v2056 = vpop.f32.mrb[0].mxu0
    %v2057 = vadd.f32 0.0, %v2056
    %v2058 = vpop.f32.mrb[0].mxu0
    %2059 = vdwg.mxu0
    %v2060 = vld [vmem:[%s2 + $0x21] ss:$0 sm:$0xff]
    %v2061 = vadd.f32 %v2030, %v2060
    %v2062 = vadd.f32 %v2033, %v2060
    %v2063 = vadd.f32 %v2038, %v2060
    %v2064 = vadd.f32 %v2041, %v2060
    %v2065 = vadd.f32 %v2046, %v2060
    %v2066 = vadd.f32 %v2049, %v2060
    %v2067 = vadd.f32 %v2054, %v2060
    %v2068 = vadd.f32 %v2057, %v2060
    %v2069 = vmax.f32 %v2061, 0.0
    %v2070 = vmax.f32 %v2062, 0.0
    %v2071 = vmax.f32 %v2063, 0.0
    %v2072 = vmax.f32 %v2064, 0.0
    %v2073 = vmax.f32 %v2065, 0.0
    %v2074 = vmax.f32 %v2066, 0.0
    %v2075 = vmax.f32 %v2067, 0.0
    %v2076 = vmax.f32 %v2068, 0.0
    %v2077 = vpack.c.bf16 %v2070, %v2069
    %v2078 = vpack.c.bf16 %v2072, %v2071
    %v2079 = vpack.c.bf16 %v2074, %v2073
    %v2080 = vpack.c.bf16 %v2076, %v2075
    %v2081 = vld [vmem:[#allocation7 + $0x2c] sm:$0xf]
    %v2082 = vld [vmem:[#allocation7 + $0x88] sm:$0xf]
    %v2083 = vld [vmem:[#allocation7 + $0xe4] sm:$0xf]
    %v2084 = vld [vmem:[#allocation7 + $0x140] sm:$0xf]
    %v2085 = vld [vmem:[#allocation7 + $0x19c] sm:$0xf]
    %v2086 = vld [vmem:[#allocation7 + $0x1f8] sm:$0xf]
    %v2087 = vld [vmem:[#allocation7 + $0x254] sm:$0xf]
    %v2088 = vld [vmem:[#allocation7 + $0x2b0] sm:$0xf]
    %v2089 = vld [vmem:[%s2 + $0x22] ss:$0 sm:$0xff]
    %v2098 = vunpack.c.l.b16 %v2081
    %v2099 = vunpack.c.l.b16 %v2082
    %v2100 = vunpack.c.l.b16 %v2083
    %v2101 = vunpack.c.l.b16 %v2084
    %v2102 = vunpack.c.l.b16 %v2085
    %v2103 = vunpack.c.l.b16 %v2086
    %v2104 = vunpack.c.l.b16 %v2087
    %v2105 = vunpack.c.l.b16 %v2088
    %v2106 = vpack.c.b16 %v2099, %v2098
    %v2107 = vpack.c.b16 %v2101, %v2100
    %v2108 = vpack.c.b16 %v2103, %v2102
    %v2109 = vpack.c.b16 %v2105, %v2104
    %v2115 = vsel %vm29, %v2077, 0
    %v2118 = vsel %vm29, %v2078, 0
    %v2121 = vsel %vm29, %v2079, 0
    %v2124 = vsel %vm29, %v2080, 0
    %2126 = vmatprep.subr.bf16.mxu0 0
    %2127 = vmatpush1.bf16.msra.mxu0 %v2106
    %2128 = vmatprep.subr.bf16.mxu0 0
    %2129 = vmatpush1.bf16.msra.mxu0 %v2107
    %2130 = vmatprep.subr.bf16.mxu0 0
    %2131 = vmatpush1.bf16.msra.mxu0 %v2108
    %2132 = vmatprep.subr.bf16.mxu0 0
    %2133 = vmatpush1.bf16.msra.mxu0 %v2109
    %2134 = vmatprep.subr.bf16.mxu0 0
    %2135 = vmatpush1.bf16.msra.mxu0 0
    %2136 = vmatprep.subr.bf16.mxu0 0
    %2137 = vmatpush1.bf16.msra.mxu0 0
    %2138 = vmatprep.subr.bf16.mxu0 0
    %2139 = vmatpush1.bf16.msra.mxu0 0
    %2140 = vmatprep.subr.bf16.mxu0 0
    %2141 = vmatpush1.bf16.msra.mxu0 0
    %2142 = vmatprep.subr.bf16.mxu0 0
    %2143 = vmatpush1.bf16.msra.mxu0 0
    %2144 = vmatprep.subr.bf16.mxu0 0
    %2145 = vmatpush1.bf16.msra.mxu0 0
    %2146 = vmatprep.subr.bf16.mxu0 0
    %2147 = vmatpush1.bf16.msra.mxu0 0
    %2148 = vmatprep.subr.bf16.mxu0 0
    %2149 = vmatpush1.bf16.msra.mxu0 0
    %2150 = vmatprep.subr.bf16.mxu0 0
    %2151 = vmatpush1.bf16.msra.mxu0 0
    %2152 = vmatprep.subr.bf16.mxu0 0
    %2153 = vmatpush1.bf16.msra.mxu0 0
    %2154 = vmatprep.subr.bf16.mxu0 0
    %2155 = vmatpush1.bf16.msra.mxu0 0
    %2156 = vmatprep.subr.bf16.mxu0 0
    %2157 = vmatpush1.bf16.msra.mxu0 0
    %2158 = vmatprep.mubr.bf16.mxu0 0
    %2159 = vmatmul.mubr.bf16.gmra.mrb[0].mxu0 %v2115
    %v2160 = vpop.f32.mrb[0].mxu0
    %v2161 = vadd.f32 %v2089, %v2160
    %v2162 = vpop.f32.mrb[0].mxu0
    %v2163 = vpop.f32.mrb[0].mxu0
    %v2164 = vadd.f32 %v2089, %v2163
    %v2165 = vpop.f32.mrb[0].mxu0
    %2166 = vmatprep.mubr.bf16.mxu0 0
    %2167 = vmatmul.mubr.bf16.gmra.mrb[0].mxu0 %v2118
    %v2168 = vpop.f32.mrb[0].mxu0
    %v2169 = vadd.f32 %v2089, %v2168
    %v2170 = vpop.f32.mrb[0].mxu0
    %v2171 = vpop.f32.mrb[0].mxu0
    %v2172 = vadd.f32 %v2089, %v2171
    %v2173 = vpop.f32.mrb[0].mxu0
    %2174 = vmatprep.mubr.bf16.mxu0 0
    %2175 = vmatmul.mubr.bf16.gmra.mrb[0].mxu0 %v2121
    %v2176 = vpop.f32.mrb[0].mxu0
    %v2177 = vadd.f32 %v2089, %v2176
    %v2178 = vpop.f32.mrb[0].mxu0
    %v2179 = vpop.f32.mrb[0].mxu0
    %v2180 = vadd.f32 %v2089, %v2179
    %v2181 = vpop.f32.mrb[0].mxu0
    %2182 = vmatprep.mubr.bf16.mxu0 0
    %2183 = vmatmul.mubr.bf16.gmra.mrb[0].mxu0 %v2124
    %v2184 = vpop.f32.mrb[0].mxu0
    %v2185 = vadd.f32 %v2089, %v2184
    %v2186 = vpop.f32.mrb[0].mxu0
    %v2187 = vpop.f32.mrb[0].mxu0
    %v2188 = vadd.f32 %v2089, %v2187
    %v2189 = vpop.f32.mrb[0].mxu0
    %2190 = vdwg.mxu0
    %v2191 = vmul.f32 %v2161, 0.5
    %v2192 = vmul.f32 %v2164, 0.5
    %v2193 = vmul.f32 %v2169, 0.5
    %v2194 = vmul.f32 %v2172, 0.5
    %v2195 = vmul.f32 %v2177, 0.5
    %v2196 = vmul.f32 %v2180, 0.5
    %v2197 = vmul.f32 %v2185, 0.5
    %v2198 = vmul.f32 %v2188, 0.5
    %v2199 = vtanh.pop %v2191
    %v2200 = vtanh.pop %v2192
    %v2201 = vtanh.pop %v2193
    %v2202 = vtanh.pop %v2194
    %v2203 = vtanh.pop %v2195
    %v2204 = vtanh.pop %v2196
    %v2205 = vtanh.pop %v2197
    %v2206 = vtanh.pop %v2198
    %v2207 = vadd.f32 %v2199, 1.0
    %v2208 = vadd.f32 %v2200, 1.0
    %v2209 = vadd.f32 %v2201, 1.0
    %v2210 = vadd.f32 %v2202, 1.0
    %v2211 = vadd.f32 %v2203, 1.0
    %v2212 = vadd.f32 %v2204, 1.0
    %v2213 = vadd.f32 %v2205, 1.0
    %v2214 = vadd.f32 %v2206, 1.0
    %v2215 = vmul.f32 %v2207, 0.5
    %v2216 = vmul.f32 %v2208, 0.5
    %v2217 = vmul.f32 %v2209, 0.5
    %v2218 = vmul.f32 %v2210, 0.5
    %v2219 = vmul.f32 %v2211, 0.5
    %v2220 = vmul.f32 %v2212, 0.5
    %v2221 = vmul.f32 %v2213, 0.5
    %v2222 = vmul.f32 %v2214, 0.5
    %v2223 = vmul.f32 %v2161, %v2215
    %v2224 = vmul.f32 %v2164, %v2216
    %v2225 = vmul.f32 %v2169, %v2217
    %v2226 = vmul.f32 %v2172, %v2218
    %v2227 = vmul.f32 %v2177, %v2219
    %v2228 = vmul.f32 %v2180, %v2220
    %v2229 = vmul.f32 %v2185, %v2221
    %v2230 = vmul.f32 %v2188, %v2222
    %2239 = vrot.lane.b32.xlu0 %v2223, 64
    %v2240 = vpop.permute.xlu0 %2239
    %2241 = vrot.lane.b32.xlu0 %v2224, 64
    %v2242 = vpop.permute.xlu0 %2241
    %2243 = vrot.lane.b32.xlu0 %v2225, 64
    %v2244 = vpop.permute.xlu0 %2243
    %2245 = vrot.lane.b32.xlu0 %v2226, 64
    %v2246 = vpop.permute.xlu0 %2245
    %2247 = vrot.lane.b32.xlu0 %v2227, 64
    %v2248 = vpop.permute.xlu0 %2247
    %2249 = vrot.lane.b32.xlu0 %v2228, 64
    %v2250 = vpop.permute.xlu0 %2249
    %2251 = vrot.lane.b32.xlu0 %v2229, 64
    %v2252 = vpop.permute.xlu0 %2251
    %2253 = vrot.lane.b32.xlu0 %v2230, 64
    %v2254 = vpop.permute.xlu0 %2253
    %2263 = vst.msk [vmem:[#allocation3] sm:$0xff] %vm29, %v2240
    %2264 = vst.msk [vmem:[#allocation3 + $0x8] sm:$0xff] %vm29, %v2242
    %2265 = vst.msk [vmem:[#allocation3 + $0x10] sm:$0xff] %vm29, %v2244
    %2266 = vst.msk [vmem:[#allocation3 + $0x18] sm:$0xff] %vm29, %v2246
    %2267 = vst.msk [vmem:[#allocation3 + $0x20] sm:$0xff] %vm29, %v2248
    %2268 = vst.msk [vmem:[#allocation3 + $0x28] sm:$0xff] %vm29, %v2250
    %2269 = vst.msk [vmem:[#allocation3 + $0x30] sm:$0xff] %vm29, %v2252
    %2270 = vst.msk [vmem:[#allocation3 + $0x38] sm:$0xff] %vm29, %v2254
    %2271 = vst.msk [vmem:[#allocation2 + $0x18] sm:$0xff] %vm29, %v2161
    %2272 = vst.msk [vmem:[#allocation2 + $0x20] sm:$0xff] %vm29, %v2164
    %2273 = vst.msk [vmem:[#allocation2 + $0x28] sm:$0xff] %vm29, %v2169
    %2274 = vst.msk [vmem:[#allocation2 + $0x30] sm:$0xff] %vm29, %v2172
    %2275 = vst.msk [vmem:[#allocation2 + $0x38] sm:$0xff] %vm29, %v2177
    %2276 = vst.msk [vmem:[#allocation2 + $0x40] sm:$0xff] %vm29, %v2180
    %2277 = vst.msk [vmem:[#allocation2 + $0x48] sm:$0xff] %vm29, %v2185
    %2278 = vst.msk [vmem:[#allocation2 + $0x50] sm:$0xff] %vm29, %v2188
    %v2279 = vld [vmem:[%s2 + $0x27] ss:$0 sm:$0xff]
    %v2280 = vld [vmem:[#allocation2] sm:$0xff]
    %v2281 = vld [vmem:[#allocation2 + $0x8] sm:$0xff]
    %v2282 = vld [vmem:[#allocation2 + $0x10] sm:$0xff]
    %v2283 = vld [vmem:[#allocation2 + $0x18] sm:$0xff]
    %v2284 = vld [vmem:[#allocation2 + $0x20] sm:$0xff]
    %v2285 = vld [vmem:[#allocation2 + $0x28] sm:$0xff]
    %v2286 = vld [vmem:[#allocation2 + $0x30] sm:$0xff]
    %v2287 = vld [vmem:[#allocation2 + $0x38] sm:$0xff]
    %v2288 = vld [vmem:[%s2 + $0x23] ss:$0 sm:$0xff]
    %v2289 = vmul.f32 %v2280, %v2288
    %v2290 = vmul.f32 %v2281, %v2288
    %v2291 = vmul.f32 %v2282, %v2288
    %v2292 = vmul.f32 %v2283, %v2288
    %v2293 = vmul.f32 %v2284, %v2288
    %v2294 = vmul.f32 %v2285, %v2288
    %v2295 = vmul.f32 %v2286, %v2288
    %v2296 = vmul.f32 %v2287, %v2288
    %v2297 = vadd.f32 %v2279, %v2289
    %v2298 = vadd.f32 %v2279, %v2290
    %v2299 = vadd.f32 %v2279, %v2291
    %v2300 = vadd.f32 %v2279, %v2292
    %v2301 = vadd.f32 %v2279, %v2293
    %v2302 = vadd.f32 %v2279, %v2294
    %v2303 = vadd.f32 %v2279, %v2295
    %v2304 = vadd.f32 %v2279, %v2296
    %v2305 = vld [vmem:[#allocation2 + $0x40] sm:$0xff]
    %v2306 = vld [vmem:[%s2 + $0x24] ss:$0 sm:$0xff]
    %v2307 = vmul.f32 %v2281, %v2306
    %v2308 = vmul.f32 %v2282, %v2306
    %v2309 = vmul.f32 %v2283, %v2306
    %v2310 = vmul.f32 %v2284, %v2306
    %v2311 = vmul.f32 %v2285, %v2306
    %v2312 = vmul.f32 %v2286, %v2306
    %v2313 = vmul.f32 %v2287, %v2306
    %v2314 = vmul.f32 %v2305, %v2306
    %v2315 = vadd.f32 %v2297, %v2307
    %v2316 = vadd.f32 %v2298, %v2308
    %v2317 = vadd.f32 %v2299, %v2309
    %v2318 = vadd.f32 %v2300, %v2310
    %v2319 = vadd.f32 %v2301, %v2311
    %v2320 = vadd.f32 %v2302, %v2312
    %v2321 = vadd.f32 %v2303, %v2313
    %v2322 = vadd.f32 %v2304, %v2314
    %v2323 = vld [vmem:[#allocation2 + $0x48] sm:$0xff]
    %v2324 = vld [vmem:[%s2 + $0x25] ss:$0 sm:$0xff]
    %v2325 = vmul.f32 %v2282, %v2324
    %v2326 = vmul.f32 %v2283, %v2324
    %v2327 = vmul.f32 %v2284, %v2324
    %v2328 = vmul.f32 %v2285, %v2324
    %v2329 = vmul.f32 %v2286, %v2324
    %v2330 = vmul.f32 %v2287, %v2324
    %v2331 = vmul.f32 %v2305, %v2324
    %v2332 = vmul.f32 %v2323, %v2324
    %v2333 = vadd.f32 %v2315, %v2325
    %v2334 = vadd.f32 %v2316, %v2326
    %v2335 = vadd.f32 %v2317, %v2327
    %v2336 = vadd.f32 %v2318, %v2328
    %v2337 = vadd.f32 %v2319, %v2329
    %v2338 = vadd.f32 %v2320, %v2330
    %v2339 = vadd.f32 %v2321, %v2331
    %v2340 = vadd.f32 %v2322, %v2332
    %v2341 = vld [vmem:[#allocation2 + $0x50] sm:$0xff]
    %v2342 = vld [vmem:[%s2 + $0x26] ss:$0 sm:$0xff]
    %v2343 = vmul.f32 %v2283, %v2342
    %v2344 = vmul.f32 %v2284, %v2342
    %v2345 = vmul.f32 %v2285, %v2342
    %v2346 = vmul.f32 %v2286, %v2342
    %v2347 = vmul.f32 %v2287, %v2342
    %v2348 = vmul.f32 %v2305, %v2342
    %v2349 = vmul.f32 %v2323, %v2342
    %v2350 = vmul.f32 %v2341, %v2342
    %v2351 = vadd.f32 %v2333, %v2343
    %v2352 = vadd.f32 %v2334, %v2344
    %v2353 = vadd.f32 %v2335, %v2345
    %v2354 = vadd.f32 %v2336, %v2346
    %v2355 = vadd.f32 %v2337, %v2347
    %v2356 = vadd.f32 %v2338, %v2348
    %v2357 = vadd.f32 %v2339, %v2349
    %v2358 = vadd.f32 %v2340, %v2350
    %v2359 = vmul.f32 %v2351, 0.5
    %v2360 = vmul.f32 %v2352, 0.5
    %v2361 = vmul.f32 %v2353, 0.5
    %v2362 = vmul.f32 %v2354, 0.5
    %v2363 = vmul.f32 %v2355, 0.5
    %v2364 = vmul.f32 %v2356, 0.5
    %v2365 = vmul.f32 %v2357, 0.5
    %v2366 = vmul.f32 %v2358, 0.5
    %v2367 = vtanh.pop %v2359
    %v2368 = vtanh.pop %v2360
    %v2369 = vtanh.pop %v2361
    %v2370 = vtanh.pop %v2362
    %v2371 = vtanh.pop %v2363
    %v2372 = vtanh.pop %v2364
    %v2373 = vtanh.pop %v2365
    %v2374 = vtanh.pop %v2366
    %v2375 = vadd.f32 %v2367, 1.0
    %v2376 = vadd.f32 %v2368, 1.0
    %v2377 = vadd.f32 %v2369, 1.0
    %v2378 = vadd.f32 %v2370, 1.0
    %v2379 = vadd.f32 %v2371, 1.0
    %v2380 = vadd.f32 %v2372, 1.0
    %v2381 = vadd.f32 %v2373, 1.0
    %v2382 = vadd.f32 %v2374, 1.0
    %v2383 = vmul.f32 %v2375, 0.5
    %v2384 = vmul.f32 %v2376, 0.5
    %v2385 = vmul.f32 %v2377, 0.5
    %v2386 = vmul.f32 %v2378, 0.5
    %v2387 = vmul.f32 %v2379, 0.5
    %v2388 = vmul.f32 %v2380, 0.5
    %v2389 = vmul.f32 %v2381, 0.5
    %v2390 = vmul.f32 %v2382, 0.5
    %v2391 = vmul.f32 %v2351, %v2383
    %v2392 = vmul.f32 %v2352, %v2384
    %v2393 = vmul.f32 %v2353, %v2385
    %v2394 = vmul.f32 %v2354, %v2386
    %v2395 = vmul.f32 %v2355, %v2387
    %v2396 = vmul.f32 %v2356, %v2388
    %v2397 = vmul.f32 %v2357, %v2389
    %v2398 = vmul.f32 %v2358, %v2390
    %v2399 = vpack.c.bf16 %v2392, %v2391
    %v2400 = vpack.c.bf16 %v2394, %v2393
    %v2401 = vpack.c.bf16 %v2396, %v2395
    %v2402 = vpack.c.bf16 %v2398, %v2397
    %v2403 = vld [vmem:[#allocation7 + $0x50] sm:$0xf]
    %v2404 = vld [vmem:[#allocation7 + $0xac] sm:$0xf]
    %v2405 = vld [vmem:[#allocation7 + $0x108] sm:$0xf]
    %v2406 = vld [vmem:[#allocation7 + $0x164] sm:$0xf]
    %v2407 = vld [vmem:[#allocation7 + $0x1c0] sm:$0xf]
    %v2408 = vld [vmem:[#allocation7 + $0x21c] sm:$0xf]
    %v2409 = vld [vmem:[#allocation7 + $0x278] sm:$0xf]
    %v2410 = vld [vmem:[#allocation7 + $0x2d4] sm:$0xf]
    %v2419 = vunpack.c.l.b16 %v2403
    %v2420 = vunpack.c.l.b16 %v2404
    %v2421 = vunpack.c.l.b16 %v2405
    %v2422 = vunpack.c.l.b16 %v2406
    %v2423 = vunpack.c.l.b16 %v2407
    %v2424 = vunpack.c.l.b16 %v2408
    %v2425 = vunpack.c.l.b16 %v2409
    %v2426 = vunpack.c.l.b16 %v2410
    %v2427 = vpack.c.b16 %v2420, %v2419
    %v2428 = vpack.c.b16 %v2422, %v2421
    %v2429 = vpack.c.b16 %v2424, %v2423
    %v2430 = vpack.c.b16 %v2426, %v2425
    %v2436 = vsel %vm29, %v2399, 0
    %v2439 = vsel %vm29, %v2400, 0
    %v2442 = vsel %vm29, %v2401, 0
    %v2445 = vsel %vm29, %v2402, 0
    %2447 = vmatprep.subr.bf16.mxu0 0
    %2448 = vmatpush1.bf16.msra.mxu0 %v2427
    %2449 = vmatprep.subr.bf16.mxu0 0
    %2450 = vmatpush1.bf16.msra.mxu0 %v2428
    %2451 = vmatprep.subr.bf16.mxu0 0
    %2452 = vmatpush1.bf16.msra.mxu0 %v2429
    %2453 = vmatprep.subr.bf16.mxu0 0
    %2454 = vmatpush1.bf16.msra.mxu0 %v2430
    %2455 = vmatprep.subr.bf16.mxu0 0
    %2456 = vmatpush1.bf16.msra.mxu0 0
    %2457 = vmatprep.subr.bf16.mxu0 0
    %2458 = vmatpush1.bf16.msra.mxu0 0
    %2459 = vmatprep.subr.bf16.mxu0 0
    %2460 = vmatpush1.bf16.msra.mxu0 0
    %2461 = vmatprep.subr.bf16.mxu0 0
    %2462 = vmatpush1.bf16.msra.mxu0 0
    %2463 = vmatprep.subr.bf16.mxu0 0
    %2464 = vmatpush1.bf16.msra.mxu0 0
    %2465 = vmatprep.subr.bf16.mxu0 0
    %2466 = vmatpush1.bf16.msra.mxu0 0
    %2467 = vmatprep.subr.bf16.mxu0 0
    %2468 = vmatpush1.bf16.msra.mxu0 0
    %2469 = vmatprep.subr.bf16.mxu0 0
    %2470 = vmatpush1.bf16.msra.mxu0 0
    %2471 = vmatprep.subr.bf16.mxu0 0
    %2472 = vmatpush1.bf16.msra.mxu0 0
    %2473 = vmatprep.subr.bf16.mxu0 0
    %2474 = vmatpush1.bf16.msra.mxu0 0
    %2475 = vmatprep.subr.bf16.mxu0 0
    %2476 = vmatpush1.bf16.msra.mxu0 0
    %2477 = vmatprep.subr.bf16.mxu0 0
    %2478 = vmatpush1.bf16.msra.mxu0 0
    %2479 = vmatprep.mubr.bf16.mxu0 0
    %2480 = vmatmul.mubr.bf16.gmra.mrb[0].mxu0 %v2436
    %v2481 = vpop.f32.mrb[0].mxu0
    %v2482 = vadd.f32 0.0, %v2481
    %v2483 = vpop.f32.mrb[0].mxu0
    %v2484 = vpop.f32.mrb[0].mxu0
    %v2485 = vadd.f32 0.0, %v2484
    %v2486 = vpop.f32.mrb[0].mxu0
    %2487 = vmatprep.mubr.bf16.mxu0 0
    %2488 = vmatmul.mubr.bf16.gmra.mrb[0].mxu0 %v2439
    %v2489 = vpop.f32.mrb[0].mxu0
    %v2490 = vadd.f32 0.0, %v2489
    %v2491 = vpop.f32.mrb[0].mxu0
    %v2492 = vpop.f32.mrb[0].mxu0
    %v2493 = vadd.f32 0.0, %v2492
    %v2494 = vpop.f32.mrb[0].mxu0
    %2495 = vmatprep.mubr.bf16.mxu0 0
    %2496 = vmatmul.mubr.bf16.gmra.mrb[0].mxu0 %v2442
    %v2497 = vpop.f32.mrb[0].mxu0
    %v2498 = vadd.f32 0.0, %v2497
    %v2499 = vpop.f32.mrb[0].mxu0
    %v2500 = vpop.f32.mrb[0].mxu0
    %v2501 = vadd.f32 0.0, %v2500
    %v2502 = vpop.f32.mrb[0].mxu0
    %2503 = vmatprep.mubr.bf16.mxu0 0
    %2504 = vmatmul.mubr.bf16.gmra.mrb[0].mxu0 %v2445
    %v2505 = vpop.f32.mrb[0].mxu0
    %v2506 = vadd.f32 0.0, %v2505
    %v2507 = vpop.f32.mrb[0].mxu0
    %v2508 = vpop.f32.mrb[0].mxu0
    %v2509 = vadd.f32 0.0, %v2508
    %v2510 = vpop.f32.mrb[0].mxu0
    %2511 = vdwg.mxu0
    %v2512 = vld [vmem:[%s2 + $0x40] ss:$0 sm:$0xff]
    %v2513 = vadd.f32 %v2482, %v2512
    %v2514 = vadd.f32 %v2485, %v2512
    %v2515 = vadd.f32 %v2490, %v2512
    %v2516 = vadd.f32 %v2493, %v2512
    %v2517 = vadd.f32 %v2498, %v2512
    %v2518 = vadd.f32 %v2501, %v2512
    %v2519 = vadd.f32 %v2506, %v2512
    %v2520 = vadd.f32 %v2509, %v2512
    %v2521 = vmax.f32 %v2513, 0.0
    %v2522 = vmax.f32 %v2514, 0.0
    %v2523 = vmax.f32 %v2515, 0.0
    %v2524 = vmax.f32 %v2516, 0.0
    %v2525 = vmax.f32 %v2517, 0.0
    %v2526 = vmax.f32 %v2518, 0.0
    %v2527 = vmax.f32 %v2519, 0.0
    %v2528 = vmax.f32 %v2520, 0.0
    %v2529 = vand.u32 2147483647, %v2513
    %v2530 = vand.u32 2147483647, %v2514
    %v2531 = vand.u32 2147483647, %v2515
    %v2532 = vand.u32 2147483647, %v2516
    %v2533 = vand.u32 2147483647, %v2517
    %v2534 = vand.u32 2147483647, %v2518
    %v2535 = vand.u32 2147483647, %v2519
    %v2536 = vand.u32 2147483647, %v2520
    %v2537 = vsub.f32 0.0, %v2529
    %v2538 = vsub.f32 0.0, %v2530
    %v2539 = vsub.f32 0.0, %v2531
    %v2540 = vsub.f32 0.0, %v2532
    %v2541 = vsub.f32 0.0, %v2533
    %v2542 = vsub.f32 0.0, %v2534
    %v2543 = vsub.f32 0.0, %v2535
    %v2544 = vsub.f32 0.0, %v2536
    %v2545 = vmul.f32 %v2537, 1.442695
    %v2546 = vpow.pop %v2545
    %v2547 = vmul.f32 %v2538, 1.442695
    %v2548 = vpow.pop %v2547
    %v2549 = vmul.f32 %v2539, 1.442695
    %v2550 = vpow.pop %v2549
    %v2551 = vmul.f32 %v2540, 1.442695
    %v2552 = vpow.pop %v2551
    %v2553 = vmul.f32 %v2541, 1.442695
    %v2554 = vpow.pop %v2553
    %v2555 = vmul.f32 %v2542, 1.442695
    %v2556 = vpow.pop %v2555
    %v2557 = vmul.f32 %v2543, 1.442695
    %v2558 = vpow.pop %v2557
    %v2559 = vmul.f32 %v2544, 1.442695
    %v2560 = vpow.pop %v2559
    %v2561 = vadd.f32 %v2546, 1.0
    %v2562 = vadd.f32 %v2548, 1.0
    %v2563 = vadd.f32 %v2550, 1.0
    %v2564 = vadd.f32 %v2552, 1.0
    %v2565 = vadd.f32 %v2554, 1.0
    %v2566 = vadd.f32 %v2556, 1.0
    %v2567 = vadd.f32 %v2558, 1.0
    %v2568 = vadd.f32 %v2560, 1.0
    %v2569 = vlog2.pop %v2561
    %v2570 = vmul.f32 %v2569, 0.6931472
    %v2571 = vlog2.pop %v2562
    %v2572 = vmul.f32 %v2571, 0.6931472
    %v2573 = vlog2.pop %v2563
    %v2574 = vmul.f32 %v2573, 0.6931472
    %v2575 = vlog2.pop %v2564
    %v2576 = vmul.f32 %v2575, 0.6931472
    %v2577 = vlog2.pop %v2565
    %v2578 = vmul.f32 %v2577, 0.6931472
    %v2579 = vlog2.pop %v2566
    %v2580 = vmul.f32 %v2579, 0.6931472
    %v2581 = vlog2.pop %v2567
    %v2582 = vmul.f32 %v2581, 0.6931472
    %v2583 = vlog2.pop %v2568
    %v2584 = vmul.f32 %v2583, 0.6931472
    %v2585 = vadd.f32 %v2521, %v2570
    %v2586 = vadd.f32 %v2522, %v2572
    %v2587 = vadd.f32 %v2523, %v2574
    %v2588 = vadd.f32 %v2524, %v2576
    %v2589 = vadd.f32 %v2525, %v2578
    %v2590 = vadd.f32 %v2526, %v2580
    %v2591 = vadd.f32 %v2527, %v2582
    %v2592 = vadd.f32 %v2528, %v2584
    %v2593 = vmul.f32 %v2585, %v2391
    %v2594 = vmul.f32 %v2586, %v2392
    %v2595 = vmul.f32 %v2587, %v2393
    %v2596 = vmul.f32 %v2588, %v2394
    %v2597 = vmul.f32 %v2589, %v2395
    %v2598 = vmul.f32 %v2590, %v2396
    %v2599 = vmul.f32 %v2591, %v2397
    %v2600 = vmul.f32 %v2592, %v2398
    %v2601 = vld [vmem:[%s2 + $0x42] ss:$0 sm:$0xff]
    %v2602 = vmul.f32 %v2601, %v2391
    %v2603 = vmul.f32 %v2601, %v2392
    %v2604 = vmul.f32 %v2601, %v2393
    %v2605 = vmul.f32 %v2601, %v2394
    %v2606 = vmul.f32 %v2601, %v2395
    %v2607 = vmul.f32 %v2601, %v2396
    %v2608 = vmul.f32 %v2601, %v2397
    %v2609 = vmul.f32 %v2601, %v2398
    %2610 = vst.msk [vmem:[#allocation4] sm:$0xff] %vm29, %v2602
    %2611 = vst.msk [vmem:[#allocation4 + $0x8] sm:$0xff] %vm29, %v2603
    %2612 = vst.msk [vmem:[#allocation4 + $0x10] sm:$0xff] %vm29, %v2604
    %2613 = vst.msk [vmem:[#allocation4 + $0x18] sm:$0xff] %vm29, %v2605
    %2614 = vst.msk [vmem:[#allocation4 + $0x20] sm:$0xff] %vm29, %v2606
    %2615 = vst.msk [vmem:[#allocation4 + $0x28] sm:$0xff] %vm29, %v2607
    %2616 = vst.msk [vmem:[#allocation4 + $0x30] sm:$0xff] %vm29, %v2608
    %2617 = vst.msk [vmem:[#allocation4 + $0x38] sm:$0xff] %vm29, %v2609
    %2626 = vrot.lane.b32.xlu0 %v2585, 64
    %v2627 = vpop.permute.xlu0 %2626
    %2628 = vrot.lane.b32.xlu0 %v2586, 64
    %v2629 = vpop.permute.xlu0 %2628
    %2630 = vrot.lane.b32.xlu0 %v2587, 64
    %v2631 = vpop.permute.xlu0 %2630
    %2632 = vrot.lane.b32.xlu0 %v2588, 64
    %v2633 = vpop.permute.xlu0 %2632
    %2634 = vrot.lane.b32.xlu0 %v2589, 64
    %v2635 = vpop.permute.xlu0 %2634
    %2636 = vrot.lane.b32.xlu0 %v2590, 64
    %v2637 = vpop.permute.xlu0 %2636
    %2638 = vrot.lane.b32.xlu0 %v2591, 64
    %v2639 = vpop.permute.xlu0 %2638
    %2640 = vrot.lane.b32.xlu0 %v2592, 64
    %v2641 = vpop.permute.xlu0 %2640
    %v2650 = vsel %vm29, %v2585, %v2627
    %v2651 = vsel %vm29, %v2586, %v2629
    %v2652 = vsel %vm29, %v2587, %v2631
    %v2653 = vsel %vm29, %v2588, %v2633
    %v2654 = vsel %vm29, %v2589, %v2635
    %v2655 = vsel %vm29, %v2590, %v2637
    %v2656 = vsel %vm29, %v2591, %v2639
    %v2657 = vsel %vm29, %v2592, %v2641
    %2666 = vrot.lane.b32.xlu0 %v2593, 64
    %v2667 = vpop.permute.xlu0 %2666
    %2668 = vrot.lane.b32.xlu0 %v2594, 64
    %v2669 = vpop.permute.xlu0 %2668
    %2670 = vrot.lane.b32.xlu0 %v2595, 64
    %v2671 = vpop.permute.xlu0 %2670
    %2672 = vrot.lane.b32.xlu0 %v2596, 64
    %v2673 = vpop.permute.xlu0 %2672
    %2674 = vrot.lane.b32.xlu0 %v2597, 64
    %v2675 = vpop.permute.xlu0 %2674
    %2676 = vrot.lane.b32.xlu0 %v2598, 64
    %v2677 = vpop.permute.xlu0 %2676
    %2678 = vrot.lane.b32.xlu0 %v2599, 64
    %v2679 = vpop.permute.xlu0 %2678
    %2680 = vrot.lane.b32.xlu0 %v2600, 64
    %v2681 = vpop.permute.xlu0 %2680
    %v2690 = vsel %vm29, %v2593, %v2667
    %v2691 = vsel %vm29, %v2594, %v2669
    %v2692 = vsel %vm29, %v2595, %v2671
    %v2693 = vsel %vm29, %v2596, %v2673
    %v2694 = vsel %vm29, %v2597, %v2675
    %v2695 = vsel %vm29, %v2598, %v2677
    %v2696 = vsel %vm29, %v2599, %v2679
    %v2697 = vsel %vm29, %v2600, %v2681
    %v2698 = vld [vmem:[#allocation7 + $0x30] sm:$0xf]
    %v2699 = vld [vmem:[#allocation7 + $0x8c] sm:$0xf]
    %v2700 = vld [vmem:[#allocation7 + $0xe8] sm:$0xf]
    %v2701 = vld [vmem:[#allocation7 + $0x144] sm:$0xf]
    %v2702 = vld [vmem:[#allocation7 + $0x1a0] sm:$0xf]
    %v2703 = vld [vmem:[#allocation7 + $0x1fc] sm:$0xf]
    %v2704 = vld [vmem:[#allocation7 + $0x258] sm:$0xf]
    %v2705 = vld [vmem:[#allocation7 + $0x2b4] sm:$0xf]
    %v2714 = vunpack.c.l.b16 %v2698
    %v2715 = vunpack.c.l.b16 %v2699
    %v2716 = vunpack.c.l.b16 %v2700
    %v2717 = vunpack.c.l.b16 %v2701
    %v2718 = vunpack.c.l.b16 %v2702
    %v2719 = vunpack.c.l.b16 %v2703
    %v2720 = vunpack.c.l.b16 %v2704
    %v2721 = vunpack.c.l.b16 %v2705
    %v2722 = vpack.c.b16 %v2715, %v2714
    %v2723 = vpack.c.b16 %v2717, %v2716
    %v2724 = vpack.c.b16 %v2719, %v2718
    %v2725 = vpack.c.b16 %v2721, %v2720
    %2730 = vmatprep.subr.bf16.mxu0 0
    %2731 = vmatpush1.bf16.msra.mxu0 %v2722
    %2732 = vmatprep.subr.bf16.mxu0 0
    %2733 = vmatpush1.bf16.msra.mxu0 %v2723
    %2734 = vmatprep.subr.bf16.mxu0 0
    %2735 = vmatpush1.bf16.msra.mxu0 %v2724
    %2736 = vmatprep.subr.bf16.mxu0 0
    %2737 = vmatpush1.bf16.msra.mxu0 %v2725
    %2738 = vmatprep.subr.bf16.mxu0 0
    %2739 = vmatpush1.bf16.msra.mxu0 0
    %2740 = vmatprep.subr.bf16.mxu0 0
    %2741 = vmatpush1.bf16.msra.mxu0 0
    %2742 = vmatprep.subr.bf16.mxu0 0
    %2743 = vmatpush1.bf16.msra.mxu0 0
    %2744 = vmatprep.subr.bf16.mxu0 0
    %2745 = vmatpush1.bf16.msra.mxu0 0
    %2746 = vmatprep.subr.bf16.mxu0 0
    %2747 = vmatpush1.bf16.msra.mxu0 0
    %2748 = vmatprep.subr.bf16.mxu0 0
    %2749 = vmatpush1.bf16.msra.mxu0 0
    %2750 = vmatprep.subr.bf16.mxu0 0
    %2751 = vmatpush1.bf16.msra.mxu0 0
    %2752 = vmatprep.subr.bf16.mxu0 0
    %2753 = vmatpush1.bf16.msra.mxu0 0
    %2754 = vmatprep.subr.bf16.mxu0 0
    %2755 = vmatpush1.bf16.msra.mxu0 0
    %2756 = vmatprep.subr.bf16.mxu0 0
    %2757 = vmatpush1.bf16.msra.mxu0 0
    %2758 = vmatprep.subr.bf16.mxu0 0
    %2759 = vmatpush1.bf16.msra.mxu0 0
    %2760 = vmatprep.subr.bf16.mxu0 0
    %2761 = vmatpush1.bf16.msra.mxu0 0
    %2762 = vmatprep.mubr.bf16.mxu0 0
    %2763 = vmatmul.mubr.bf16.gmra.mrb[0].mxu0 %v2436
    %v2764 = vpop.f32.mrb[0].mxu0
    %v2765 = vadd.f32 0.0, %v2764
    %v2766 = vpop.f32.mrb[0].mxu0
    %v2767 = vpop.f32.mrb[0].mxu0
    %v2768 = vadd.f32 0.0, %v2767
    %v2769 = vpop.f32.mrb[0].mxu0
    %2770 = vmatprep.mubr.bf16.mxu0 0
    %2771 = vmatmul.mubr.bf16.gmra.mrb[0].mxu0 %v2439
    %v2772 = vpop.f32.mrb[0].mxu0
    %v2773 = vadd.f32 0.0, %v2772
    %v2774 = vpop.f32.mrb[0].mxu0
    %v2775 = vpop.f32.mrb[0].mxu0
    %v2776 = vadd.f32 0.0, %v2775
    %v2777 = vpop.f32.mrb[0].mxu0
    %2778 = vmatprep.mubr.bf16.mxu0 0
    %2779 = vmatmul.mubr.bf16.gmra.mrb[0].mxu0 %v2442
    %v2780 = vpop.f32.mrb[0].mxu0
    %v2781 = vadd.f32 0.0, %v2780
    %v2782 = vpop.f32.mrb[0].mxu0
    %v2783 = vpop.f32.mrb[0].mxu0
    %v2784 = vadd.f32 0.0, %v2783
    %v2785 = vpop.f32.mrb[0].mxu0
    %2786 = vmatprep.mubr.bf16.mxu0 0
    %2787 = vmatmul.mubr.bf16.gmra.mrb[0].mxu0 %v2445
    %v2788 = vpop.f32.mrb[0].mxu0
    %v2789 = vadd.f32 0.0, %v2788
    %v2790 = vpop.f32.mrb[0].mxu0
    %v2791 = vpop.f32.mrb[0].mxu0
    %v2792 = vadd.f32 0.0, %v2791
    %v2793 = vpop.f32.mrb[0].mxu0
    %2794 = vdwg.mxu0
    %v2795 = vmul.f32 %v2765, %v2690
    %v2796 = vmul.f32 %v2768, %v2691
    %v2797 = vmul.f32 %v2773, %v2692
    %v2798 = vmul.f32 %v2776, %v2693
    %v2799 = vmul.f32 %v2781, %v2694
    %v2800 = vmul.f32 %v2784, %v2695
    %v2801 = vmul.f32 %v2789, %v2696
    %v2802 = vmul.f32 %v2792, %v2697
    %2803 = vst [vmem:[#allocation5] sm:$0xff] %v2795
    %2804 = vst [vmem:[#allocation5 + $0x40] sm:$0xff] %v2796
    %2805 = vst [vmem:[#allocation5 + $0x80] sm:$0xff] %v2797
    %2806 = vst [vmem:[#allocation5 + $0xc0] sm:$0xff] %v2798
    %2807 = vst [vmem:[#allocation5 + $0x100] sm:$0xff] %v2799
    %2808 = vst [vmem:[#allocation5 + $0x140] sm:$0xff] %v2800
    %2809 = vst [vmem:[#allocation5 + $0x180] sm:$0xff] %v2801
    %2810 = vst [vmem:[#allocation5 + $0x1c0] sm:$0xff] %v2802
    %v2811 = vld [vmem:[%s2 + $0x41] ss:$0 sm:$0xff]
    %v2812 = vmul.f32 %v2650, %v2811
    %v2813 = vmul.f32 %v2651, %v2811
    %v2814 = vmul.f32 %v2652, %v2811
    %v2815 = vmul.f32 %v2653, %v2811
    %v2816 = vmul.f32 %v2654, %v2811
    %v2817 = vmul.f32 %v2655, %v2811
    %v2818 = vmul.f32 %v2656, %v2811
    %v2819 = vmul.f32 %v2657, %v2811
    %v2820 = vmul.f32 %v2812, 1.442695
    %v2821 = vpow.pop %v2820
    %v2822 = vmul.f32 %v2813, 1.442695
    %v2823 = vpow.pop %v2822
    %v2824 = vmul.f32 %v2814, 1.442695
    %v2825 = vpow.pop %v2824
    %v2826 = vmul.f32 %v2815, 1.442695
    %v2827 = vpow.pop %v2826
    %v2828 = vmul.f32 %v2816, 1.442695
    %v2829 = vpow.pop %v2828
    %v2830 = vmul.f32 %v2817, 1.442695
    %v2831 = vpow.pop %v2830
    %v2832 = vmul.f32 %v2818, 1.442695
    %v2833 = vpow.pop %v2832
    %v2834 = vmul.f32 %v2819, 1.442695
    %v2835 = vpow.pop %v2834
    %2836 = vst [vmem:[#allocation6] sm:$0xff] %v2821
    %2837 = vst [vmem:[#allocation6 + $0x20] sm:$0xff] %v2823
    %2838 = vst [vmem:[#allocation6 + $0x40] sm:$0xff] %v2825
    %2839 = vst [vmem:[#allocation6 + $0x60] sm:$0xff] %v2827
    %2840 = vst [vmem:[#allocation6 + $0x80] sm:$0xff] %v2829
    %2841 = vst [vmem:[#allocation6 + $0xa0] sm:$0xff] %v2831
    %2842 = vst [vmem:[#allocation6 + $0xc0] sm:$0xff] %v2833
    %2843 = vst [vmem:[#allocation6 + $0xe0] sm:$0xff] %v2835
    %v2844 = vld [vmem:[#allocation7 + $0x34] sm:$0xf]
    %v2845 = vld [vmem:[#allocation7 + $0x90] sm:$0xf]
    %v2846 = vld [vmem:[#allocation7 + $0xec] sm:$0xf]
    %v2847 = vld [vmem:[#allocation7 + $0x148] sm:$0xf]
    %v2848 = vld [vmem:[#allocation7 + $0x1a4] sm:$0xf]
    %v2849 = vld [vmem:[#allocation7 + $0x200] sm:$0xf]
    %v2850 = vld [vmem:[#allocation7 + $0x25c] sm:$0xf]
    %v2851 = vld [vmem:[#allocation7 + $0x2b8] sm:$0xf]
    %v2860 = vunpack.c.l.b16 %v2844
    %v2861 = vunpack.c.l.b16 %v2845
    %v2862 = vunpack.c.l.b16 %v2846
    %v2863 = vunpack.c.l.b16 %v2847
    %v2864 = vunpack.c.l.b16 %v2848
    %v2865 = vunpack.c.l.b16 %v2849
    %v2866 = vunpack.c.l.b16 %v2850
    %v2867 = vunpack.c.l.b16 %v2851
    %v2868 = vpack.c.b16 %v2861, %v2860
    %v2869 = vpack.c.b16 %v2863, %v2862
    %v2870 = vpack.c.b16 %v2865, %v2864
    %v2871 = vpack.c.b16 %v2867, %v2866
    %2876 = vmatprep.subr.bf16.mxu0 0
    %2877 = vmatpush1.bf16.msra.mxu0 %v2868
    %2878 = vmatprep.subr.bf16.mxu0 0
    %2879 = vmatpush1.bf16.msra.mxu0 %v2869
    %2880 = vmatprep.subr.bf16.mxu0 0
    %2881 = vmatpush1.bf16.msra.mxu0 %v2870
    %2882 = vmatprep.subr.bf16.mxu0 0
    %2883 = vmatpush1.bf16.msra.mxu0 %v2871
    %2884 = vmatprep.subr.bf16.mxu0 0
    %2885 = vmatpush1.bf16.msra.mxu0 0
    %2886 = vmatprep.subr.bf16.mxu0 0
    %2887 = vmatpush1.bf16.msra.mxu0 0
    %2888 = vmatprep.subr.bf16.mxu0 0
    %2889 = vmatpush1.bf16.msra.mxu0 0
    %2890 = vmatprep.subr.bf16.mxu0 0
    %2891 = vmatpush1.bf16.msra.mxu0 0
    %2892 = vmatprep.subr.bf16.mxu0 0
    %2893 = vmatpush1.bf16.msra.mxu0 0
    %2894 = vmatprep.subr.bf16.mxu0 0
    %2895 = vmatpush1.bf16.msra.mxu0 0
    %2896 = vmatprep.subr.bf16.mxu0 0
    %2897 = vmatpush1.bf16.msra.mxu0 0
    %2898 = vmatprep.subr.bf16.mxu0 0
    %2899 = vmatpush1.bf16.msra.mxu0 0
    %2900 = vmatprep.subr.bf16.mxu0 0
    %2901 = vmatpush1.bf16.msra.mxu0 0
    %2902 = vmatprep.subr.bf16.mxu0 0
    %2903 = vmatpush1.bf16.msra.mxu0 0
    %2904 = vmatprep.subr.bf16.mxu0 0
    %2905 = vmatpush1.bf16.msra.mxu0 0
    %2906 = vmatprep.subr.bf16.mxu0 0
    %2907 = vmatpush1.bf16.msra.mxu0 0
    %2908 = vmatprep.mubr.bf16.mxu0 0
    %2909 = vmatmul.mubr.bf16.gmra.mrb[0].mxu0 %v2436
    %v2910 = vpop.f32.mrb[0].mxu0
    %v2911 = vadd.f32 0.0, %v2910
    %v2912 = vpop.f32.mrb[0].mxu0
    %v2913 = vpop.f32.mrb[0].mxu0
    %v2914 = vadd.f32 0.0, %v2913
    %v2915 = vpop.f32.mrb[0].mxu0
    %2916 = vmatprep.mubr.bf16.mxu0 0
    %2917 = vmatmul.mubr.bf16.gmra.mrb[0].mxu0 %v2439
    %v2918 = vpop.f32.mrb[0].mxu0
    %v2919 = vadd.f32 0.0, %v2918
    %v2920 = vpop.f32.mrb[0].mxu0
    %v2921 = vpop.f32.mrb[0].mxu0
    %v2922 = vadd.f32 0.0, %v2921
    %v2923 = vpop.f32.mrb[0].mxu0
    %2924 = vmatprep.mubr.bf16.mxu0 0
    %2925 = vmatmul.mubr.bf16.gmra.mrb[0].mxu0 %v2442
    %v2926 = vpop.f32.mrb[0].mxu0
    %v2927 = vadd.f32 0.0, %v2926
    %v2928 = vpop.f32.mrb[0].mxu0
    %v2929 = vpop.f32.mrb[0].mxu0
    %v2930 = vadd.f32 0.0, %v2929
    %v2931 = vpop.f32.mrb[0].mxu0
    %2932 = vmatprep.mubr.bf16.mxu0 0
    %2933 = vmatmul.mubr.bf16.gmra.mrb[0].mxu0 %v2445
    %v2934 = vpop.f32.mrb[0].mxu0
    %v2935 = vadd.f32 0.0, %v2934
    %v2936 = vpop.f32.mrb[0].mxu0
    %v2937 = vpop.f32.mrb[0].mxu0
    %v2938 = vadd.f32 0.0, %v2937
    %v2939 = vpop.f32.mrb[0].mxu0
    %2940 = vdwg.mxu0
    %v2941 = vmul.f32 %v2911, %v2690
    %v2942 = vmul.f32 %v2914, %v2691
    %v2943 = vmul.f32 %v2919, %v2692
    %v2944 = vmul.f32 %v2922, %v2693
    %v2945 = vmul.f32 %v2927, %v2694
    %v2946 = vmul.f32 %v2930, %v2695
    %v2947 = vmul.f32 %v2935, %v2696
    %v2948 = vmul.f32 %v2938, %v2697
    %2949 = vst [vmem:[#allocation5 + $0x8] sm:$0xff] %v2941
    %2950 = vst [vmem:[#allocation5 + $0x48] sm:$0xff] %v2942
    %2951 = vst [vmem:[#allocation5 + $0x88] sm:$0xff] %v2943
    %2952 = vst [vmem:[#allocation5 + $0xc8] sm:$0xff] %v2944
    %2953 = vst [vmem:[#allocation5 + $0x108] sm:$0xff] %v2945
    %2954 = vst [vmem:[#allocation5 + $0x148] sm:$0xff] %v2946
    %2955 = vst [vmem:[#allocation5 + $0x188] sm:$0xff] %v2947
    %2956 = vst [vmem:[#allocation5 + $0x1c8] sm:$0xff] %v2948
    %v2957 = vld [vmem:[%s2 + $0x49] ss:$0 sm:$0xff]
    %v2958 = vmul.f32 %v2650, %v2957
    %v2959 = vmul.f32 %v2651, %v2957
    %v2960 = vmul.f32 %v2652, %v2957
    %v2961 = vmul.f32 %v2653, %v2957
    %v2962 = vmul.f32 %v2654, %v2957
    %v2963 = vmul.f32 %v2655, %v2957
    %v2964 = vmul.f32 %v2656, %v2957
    %v2965 = vmul.f32 %v2657, %v2957
    %v2966 = vmul.f32 %v2958, 1.442695
    %v2967 = vpow.pop %v2966
    %v2968 = vmul.f32 %v2959, 1.442695
    %v2969 = vpow.pop %v2968
    %v2970 = vmul.f32 %v2960, 1.442695
    %v2971 = vpow.pop %v2970
    %v2972 = vmul.f32 %v2961, 1.442695
    %v2973 = vpow.pop %v2972
    %v2974 = vmul.f32 %v2962, 1.442695
    %v2975 = vpow.pop %v2974
    %v2976 = vmul.f32 %v2963, 1.442695
    %v2977 = vpow.pop %v2976
    %v2978 = vmul.f32 %v2964, 1.442695
    %v2979 = vpow.pop %v2978
    %v2980 = vmul.f32 %v2965, 1.442695
    %v2981 = vpow.pop %v2980
    %2982 = vst [vmem:[#allocation6 + $0x8] sm:$0xff] %v2967
    %2983 = vst [vmem:[#allocation6 + $0x28] sm:$0xff] %v2969
    %2984 = vst [vmem:[#allocation6 + $0x48] sm:$0xff] %v2971
    %2985 = vst [vmem:[#allocation6 + $0x68] sm:$0xff] %v2973
    %2986 = vst [vmem:[#allocation6 + $0x88] sm:$0xff] %v2975
    %2987 = vst [vmem:[#allocation6 + $0xa8] sm:$0xff] %v2977
    %2988 = vst [vmem:[#allocation6 + $0xc8] sm:$0xff] %v2979
    %2989 = vst [vmem:[#allocation6 + $0xe8] sm:$0xff] %v2981
    %v2990 = vld [vmem:[#allocation7 + $0x38] sm:$0xf]
    %v2991 = vld [vmem:[#allocation7 + $0x94] sm:$0xf]
    %v2992 = vld [vmem:[#allocation7 + $0xf0] sm:$0xf]
    %v2993 = vld [vmem:[#allocation7 + $0x14c] sm:$0xf]
    %v2994 = vld [vmem:[#allocation7 + $0x1a8] sm:$0xf]
    %v2995 = vld [vmem:[#allocation7 + $0x204] sm:$0xf]
    %v2996 = vld [vmem:[#allocation7 + $0x260] sm:$0xf]
    %v2997 = vld [vmem:[#allocation7 + $0x2bc] sm:$0xf]
    %v3006 = vunpack.c.l.b16 %v2990
    %v3007 = vunpack.c.l.b16 %v2991
    %v3008 = vunpack.c.l.b16 %v2992
    %v3009 = vunpack.c.l.b16 %v2993
    %v3010 = vunpack.c.l.b16 %v2994
    %v3011 = vunpack.c.l.b16 %v2995
    %v3012 = vunpack.c.l.b16 %v2996
    %v3013 = vunpack.c.l.b16 %v2997
    %v3014 = vpack.c.b16 %v3007, %v3006
    %v3015 = vpack.c.b16 %v3009, %v3008
    %v3016 = vpack.c.b16 %v3011, %v3010
    %v3017 = vpack.c.b16 %v3013, %v3012
    %3022 = vmatprep.subr.bf16.mxu0 0
    %3023 = vmatpush1.bf16.msra.mxu0 %v3014
    %3024 = vmatprep.subr.bf16.mxu0 0
    %3025 = vmatpush1.bf16.msra.mxu0 %v3015
    %3026 = vmatprep.subr.bf16.mxu0 0
    %3027 = vmatpush1.bf16.msra.mxu0 %v3016
    %3028 = vmatprep.subr.bf16.mxu0 0
    %3029 = vmatpush1.bf16.msra.mxu0 %v3017
    %3030 = vmatprep.subr.bf16.mxu0 0
    %3031 = vmatpush1.bf16.msra.mxu0 0
    %3032 = vmatprep.subr.bf16.mxu0 0
    %3033 = vmatpush1.bf16.msra.mxu0 0
    %3034 = vmatprep.subr.bf16.mxu0 0
    %3035 = vmatpush1.bf16.msra.mxu0 0
    %3036 = vmatprep.subr.bf16.mxu0 0
    %3037 = vmatpush1.bf16.msra.mxu0 0
    %3038 = vmatprep.subr.bf16.mxu0 0
    %3039 = vmatpush1.bf16.msra.mxu0 0
    %3040 = vmatprep.subr.bf16.mxu0 0
    %3041 = vmatpush1.bf16.msra.mxu0 0
    %3042 = vmatprep.subr.bf16.mxu0 0
    %3043 = vmatpush1.bf16.msra.mxu0 0
    %3044 = vmatprep.subr.bf16.mxu0 0
    %3045 = vmatpush1.bf16.msra.mxu0 0
    %3046 = vmatprep.subr.bf16.mxu0 0
    %3047 = vmatpush1.bf16.msra.mxu0 0
    %3048 = vmatprep.subr.bf16.mxu0 0
    %3049 = vmatpush1.bf16.msra.mxu0 0
    %3050 = vmatprep.subr.bf16.mxu0 0
    %3051 = vmatpush1.bf16.msra.mxu0 0
    %3052 = vmatprep.subr.bf16.mxu0 0
    %3053 = vmatpush1.bf16.msra.mxu0 0
    %3054 = vmatprep.mubr.bf16.mxu0 0
    %3055 = vmatmul.mubr.bf16.gmra.mrb[0].mxu0 %v2436
    %v3056 = vpop.f32.mrb[0].mxu0
    %v3057 = vadd.f32 0.0, %v3056
    %v3058 = vpop.f32.mrb[0].mxu0
    %v3059 = vpop.f32.mrb[0].mxu0
    %v3060 = vadd.f32 0.0, %v3059
    %v3061 = vpop.f32.mrb[0].mxu0
    %3062 = vmatprep.mubr.bf16.mxu0 0
    %3063 = vmatmul.mubr.bf16.gmra.mrb[0].mxu0 %v2439
    %v3064 = vpop.f32.mrb[0].mxu0
    %v3065 = vadd.f32 0.0, %v3064
    %v3066 = vpop.f32.mrb[0].mxu0
    %v3067 = vpop.f32.mrb[0].mxu0
    %v3068 = vadd.f32 0.0, %v3067
    %v3069 = vpop.f32.mrb[0].mxu0
    %3070 = vmatprep.mubr.bf16.mxu0 0
    %3071 = vmatmul.mubr.bf16.gmra.mrb[0].mxu0 %v2442
    %v3072 = vpop.f32.mrb[0].mxu0
    %v3073 = vadd.f32 0.0, %v3072
    %v3074 = vpop.f32.mrb[0].mxu0
    %v3075 = vpop.f32.mrb[0].mxu0
    %v3076 = vadd.f32 0.0, %v3075
    %v3077 = vpop.f32.mrb[0].mxu0
    %3078 = vmatprep.mubr.bf16.mxu0 0
    %3079 = vmatmul.mubr.bf16.gmra.mrb[0].mxu0 %v2445
    %v3080 = vpop.f32.mrb[0].mxu0
    %v3081 = vadd.f32 0.0, %v3080
    %v3082 = vpop.f32.mrb[0].mxu0
    %v3083 = vpop.f32.mrb[0].mxu0
    %v3084 = vadd.f32 0.0, %v3083
    %v3085 = vpop.f32.mrb[0].mxu0
    %3086 = vdwg.mxu0
    %v3087 = vmul.f32 %v3057, %v2690
    %v3088 = vmul.f32 %v3060, %v2691
    %v3089 = vmul.f32 %v3065, %v2692
    %v3090 = vmul.f32 %v3068, %v2693
    %v3091 = vmul.f32 %v3073, %v2694
    %v3092 = vmul.f32 %v3076, %v2695
    %v3093 = vmul.f32 %v3081, %v2696
    %v3094 = vmul.f32 %v3084, %v2697
    %3095 = vst [vmem:[#allocation5 + $0x10] sm:$0xff] %v3087
    %3096 = vst [vmem:[#allocation5 + $0x50] sm:$0xff] %v3088
    %3097 = vst [vmem:[#allocation5 + $0x90] sm:$0xff] %v3089
    %3098 = vst [vmem:[#allocation5 + $0xd0] sm:$0xff] %v3090
    %3099 = vst [vmem:[#allocation5 + $0x110] sm:$0xff] %v3091
    %3100 = vst [vmem:[#allocation5 + $0x150] sm:$0xff] %v3092
    %3101 = vst [vmem:[#allocation5 + $0x190] sm:$0xff] %v3093
    %3102 = vst [vmem:[#allocation5 + $0x1d0] sm:$0xff] %v3094
    %v3103 = vld [vmem:[%s2 + $0x51] ss:$0 sm:$0xff]
    %v3104 = vmul.f32 %v2650, %v3103
    %v3105 = vmul.f32 %v2651, %v3103
    %v3106 = vmul.f32 %v2652, %v3103
    %v3107 = vmul.f32 %v2653, %v3103
    %v3108 = vmul.f32 %v2654, %v3103
    %v3109 = vmul.f32 %v2655, %v3103
    %v3110 = vmul.f32 %v2656, %v3103
    %v3111 = vmul.f32 %v2657, %v3103
    %v3112 = vmul.f32 %v3104, 1.442695
    %v3113 = vpow.pop %v3112
    %v3114 = vmul.f32 %v3105, 1.442695
    %v3115 = vpow.pop %v3114
    %v3116 = vmul.f32 %v3106, 1.442695
    %v3117 = vpow.pop %v3116
    %v3118 = vmul.f32 %v3107, 1.442695
    %v3119 = vpow.pop %v3118
    %v3120 = vmul.f32 %v3108, 1.442695
    %v3121 = vpow.pop %v3120
    %v3122 = vmul.f32 %v3109, 1.442695
    %v3123 = vpow.pop %v3122
    %v3124 = vmul.f32 %v3110, 1.442695
    %v3125 = vpow.pop %v3124
    %v3126 = vmul.f32 %v3111, 1.442695
    %v3127 = vpow.pop %v3126
    %3128 = vst [vmem:[#allocation6 + $0x10] sm:$0xff] %v3113
    %3129 = vst [vmem:[#allocation6 + $0x30] sm:$0xff] %v3115
    %3130 = vst [vmem:[#allocation6 + $0x50] sm:$0xff] %v3117
    %3131 = vst [vmem:[#allocation6 + $0x70] sm:$0xff] %v3119
    %3132 = vst [vmem:[#allocation6 + $0x90] sm:$0xff] %v3121
    %3133 = vst [vmem:[#allocation6 + $0xb0] sm:$0xff] %v3123
    %3134 = vst [vmem:[#allocation6 + $0xd0] sm:$0xff] %v3125
    %3135 = vst [vmem:[#allocation6 + $0xf0] sm:$0xff] %v3127
    %v3136 = vld [vmem:[#allocation7 + $0x3c] sm:$0xf]
    %v3137 = vld [vmem:[#allocation7 + $0x98] sm:$0xf]
    %v3138 = vld [vmem:[#allocation7 + $0xf4] sm:$0xf]
    %v3139 = vld [vmem:[#allocation7 + $0x150] sm:$0xf]
    %v3140 = vld [vmem:[#allocation7 + $0x1ac] sm:$0xf]
    %v3141 = vld [vmem:[#allocation7 + $0x208] sm:$0xf]
    %v3142 = vld [vmem:[#allocation7 + $0x264] sm:$0xf]
    %v3143 = vld [vmem:[#allocation7 + $0x2c0] sm:$0xf]
    %v3152 = vunpack.c.l.b16 %v3136
    %v3153 = vunpack.c.l.b16 %v3137
    %v3154 = vunpack.c.l.b16 %v3138
    %v3155 = vunpack.c.l.b16 %v3139
    %v3156 = vunpack.c.l.b16 %v3140
    %v3157 = vunpack.c.l.b16 %v3141
    %v3158 = vunpack.c.l.b16 %v3142
    %v3159 = vunpack.c.l.b16 %v3143
    %v3160 = vpack.c.b16 %v3153, %v3152
    %v3161 = vpack.c.b16 %v3155, %v3154
    %v3162 = vpack.c.b16 %v3157, %v3156
    %v3163 = vpack.c.b16 %v3159, %v3158
    %3168 = vmatprep.subr.bf16.mxu0 0
    %3169 = vmatpush1.bf16.msra.mxu0 %v3160
    %3170 = vmatprep.subr.bf16.mxu0 0
    %3171 = vmatpush1.bf16.msra.mxu0 %v3161
    %3172 = vmatprep.subr.bf16.mxu0 0
    %3173 = vmatpush1.bf16.msra.mxu0 %v3162
    %3174 = vmatprep.subr.bf16.mxu0 0
    %3175 = vmatpush1.bf16.msra.mxu0 %v3163
    %3176 = vmatprep.subr.bf16.mxu0 0
    %3177 = vmatpush1.bf16.msra.mxu0 0
    %3178 = vmatprep.subr.bf16.mxu0 0
    %3179 = vmatpush1.bf16.msra.mxu0 0
    %3180 = vmatprep.subr.bf16.mxu0 0
    %3181 = vmatpush1.bf16.msra.mxu0 0
    %3182 = vmatprep.subr.bf16.mxu0 0
    %3183 = vmatpush1.bf16.msra.mxu0 0
    %3184 = vmatprep.subr.bf16.mxu0 0
    %3185 = vmatpush1.bf16.msra.mxu0 0
    %3186 = vmatprep.subr.bf16.mxu0 0
    %3187 = vmatpush1.bf16.msra.mxu0 0
    %3188 = vmatprep.subr.bf16.mxu0 0
    %3189 = vmatpush1.bf16.msra.mxu0 0
    %3190 = vmatprep.subr.bf16.mxu0 0
    %3191 = vmatpush1.bf16.msra.mxu0 0
    %3192 = vmatprep.subr.bf16.mxu0 0
    %3193 = vmatpush1.bf16.msra.mxu0 0
    %3194 = vmatprep.subr.bf16.mxu0 0
    %3195 = vmatpush1.bf16.msra.mxu0 0
    %3196 = vmatprep.subr.bf16.mxu0 0
    %3197 = vmatpush1.bf16.msra.mxu0 0
    %3198 = vmatprep.subr.bf16.mxu0 0
    %3199 = vmatpush1.bf16.msra.mxu0 0
    %3200 = vmatprep.mubr.bf16.mxu0 0
    %3201 = vmatmul.mubr.bf16.gmra.mrb[0].mxu0 %v2436
    %v3202 = vpop.f32.mrb[0].mxu0
    %v3203 = vadd.f32 0.0, %v3202
    %v3204 = vpop.f32.mrb[0].mxu0
    %v3205 = vpop.f32.mrb[0].mxu0
    %v3206 = vadd.f32 0.0, %v3205
    %v3207 = vpop.f32.mrb[0].mxu0
    %3208 = vmatprep.mubr.bf16.mxu0 0
    %3209 = vmatmul.mubr.bf16.gmra.mrb[0].mxu0 %v2439
    %v3210 = vpop.f32.mrb[0].mxu0
    %v3211 = vadd.f32 0.0, %v3210
    %v3212 = vpop.f32.mrb[0].mxu0
    %v3213 = vpop.f32.mrb[0].mxu0
    %v3214 = vadd.f32 0.0, %v3213
    %v3215 = vpop.f32.mrb[0].mxu0
    %3216 = vmatprep.mubr.bf16.mxu0 0
    %3217 = vmatmul.mubr.bf16.gmra.mrb[0].mxu0 %v2442
    %v3218 = vpop.f32.mrb[0].mxu0
    %v3219 = vadd.f32 0.0, %v3218
    %v3220 = vpop.f32.mrb[0].mxu0
    %v3221 = vpop.f32.mrb[0].mxu0
    %v3222 = vadd.f32 0.0, %v3221
    %v3223 = vpop.f32.mrb[0].mxu0
    %3224 = vmatprep.mubr.bf16.mxu0 0
    %3225 = vmatmul.mubr.bf16.gmra.mrb[0].mxu0 %v2445
    %v3226 = vpop.f32.mrb[0].mxu0
    %v3227 = vadd.f32 0.0, %v3226
    %v3228 = vpop.f32.mrb[0].mxu0
    %v3229 = vpop.f32.mrb[0].mxu0
    %v3230 = vadd.f32 0.0, %v3229
    %v3231 = vpop.f32.mrb[0].mxu0
    %3232 = vdwg.mxu0
    %v3233 = vmul.f32 %v3203, %v2690
    %v3234 = vmul.f32 %v3206, %v2691
    %v3235 = vmul.f32 %v3211, %v2692
    %v3236 = vmul.f32 %v3214, %v2693
    %v3237 = vmul.f32 %v3219, %v2694
    %v3238 = vmul.f32 %v3222, %v2695
    %v3239 = vmul.f32 %v3227, %v2696
    %v3240 = vmul.f32 %v3230, %v2697
    %3241 = vst [vmem:[#allocation5 + $0x18] sm:$0xff] %v3233
    %3242 = vst [vmem:[#allocation5 + $0x58] sm:$0xff] %v3234
    %3243 = vst [vmem:[#allocation5 + $0x98] sm:$0xff] %v3235
    %3244 = vst [vmem:[#allocation5 + $0xd8] sm:$0xff] %v3236
    %3245 = vst [vmem:[#allocation5 + $0x118] sm:$0xff] %v3237
    %3246 = vst [vmem:[#allocation5 + $0x158] sm:$0xff] %v3238
    %3247 = vst [vmem:[#allocation5 + $0x198] sm:$0xff] %v3239
    %3248 = vst [vmem:[#allocation5 + $0x1d8] sm:$0xff] %v3240
    %v3249 = vld [vmem:[%s2 + $0x59] ss:$0 sm:$0xff]
    %v3250 = vmul.f32 %v2650, %v3249
    %v3251 = vmul.f32 %v2651, %v3249
    %v3252 = vmul.f32 %v2652, %v3249
    %v3253 = vmul.f32 %v2653, %v3249
    %v3254 = vmul.f32 %v2654, %v3249
    %v3255 = vmul.f32 %v2655, %v3249
    %v3256 = vmul.f32 %v2656, %v3249
    %v3257 = vmul.f32 %v2657, %v3249
    %v3258 = vmul.f32 %v3250, 1.442695
    %v3259 = vpow.pop %v3258
    %v3260 = vmul.f32 %v3251, 1.442695
    %v3261 = vpow.pop %v3260
    %v3262 = vmul.f32 %v3252, 1.442695
    %v3263 = vpow.pop %v3262
    %v3264 = vmul.f32 %v3253, 1.442695
    %v3265 = vpow.pop %v3264
    %v3266 = vmul.f32 %v3254, 1.442695
    %v3267 = vpow.pop %v3266
    %v3268 = vmul.f32 %v3255, 1.442695
    %v3269 = vpow.pop %v3268
    %v3270 = vmul.f32 %v3256, 1.442695
    %v3271 = vpow.pop %v3270
    %v3272 = vmul.f32 %v3257, 1.442695
    %v3273 = vpow.pop %v3272
    %3274 = vst [vmem:[#allocation6 + $0x18] sm:$0xff] %v3259
    %3275 = vst [vmem:[#allocation6 + $0x38] sm:$0xff] %v3261
    %3276 = vst [vmem:[#allocation6 + $0x58] sm:$0xff] %v3263
    %3277 = vst [vmem:[#allocation6 + $0x78] sm:$0xff] %v3265
    %3278 = vst [vmem:[#allocation6 + $0x98] sm:$0xff] %v3267
    %3279 = vst [vmem:[#allocation6 + $0xb8] sm:$0xff] %v3269
    %3280 = vst [vmem:[#allocation6 + $0xd8] sm:$0xff] %v3271
    %3281 = vst [vmem:[#allocation6 + $0xf8] sm:$0xff] %v3273
    %v3282 = vld [vmem:[#allocation7 + $0x40] sm:$0xf]
    %v3283 = vld [vmem:[#allocation7 + $0x9c] sm:$0xf]
    %v3284 = vld [vmem:[#allocation7 + $0xf8] sm:$0xf]
    %v3285 = vld [vmem:[#allocation7 + $0x154] sm:$0xf]
    %v3286 = vld [vmem:[#allocation7 + $0x1b0] sm:$0xf]
    %v3287 = vld [vmem:[#allocation7 + $0x20c] sm:$0xf]
    %v3288 = vld [vmem:[#allocation7 + $0x268] sm:$0xf]
    %v3289 = vld [vmem:[#allocation7 + $0x2c4] sm:$0xf]
    %v3298 = vunpack.c.l.b16 %v3282
    %v3299 = vunpack.c.l.b16 %v3283
    %v3300 = vunpack.c.l.b16 %v3284
    %v3301 = vunpack.c.l.b16 %v3285
    %v3302 = vunpack.c.l.b16 %v3286
    %v3303 = vunpack.c.l.b16 %v3287
    %v3304 = vunpack.c.l.b16 %v3288
    %v3305 = vunpack.c.l.b16 %v3289
    %v3306 = vpack.c.b16 %v3299, %v3298
    %v3307 = vpack.c.b16 %v3301, %v3300
    %v3308 = vpack.c.b16 %v3303, %v3302
    %v3309 = vpack.c.b16 %v3305, %v3304
    %3314 = vmatprep.subr.bf16.mxu0 0
    %3315 = vmatpush1.bf16.msra.mxu0 %v3306
    %3316 = vmatprep.subr.bf16.mxu0 0
    %3317 = vmatpush1.bf16.msra.mxu0 %v3307
    %3318 = vmatprep.subr.bf16.mxu0 0
    %3319 = vmatpush1.bf16.msra.mxu0 %v3308
    %3320 = vmatprep.subr.bf16.mxu0 0
    %3321 = vmatpush1.bf16.msra.mxu0 %v3309
    %3322 = vmatprep.subr.bf16.mxu0 0
    %3323 = vmatpush1.bf16.msra.mxu0 0
    %3324 = vmatprep.subr.bf16.mxu0 0
    %3325 = vmatpush1.bf16.msra.mxu0 0
    %3326 = vmatprep.subr.bf16.mxu0 0
    %3327 = vmatpush1.bf16.msra.mxu0 0
    %3328 = vmatprep.subr.bf16.mxu0 0
    %3329 = vmatpush1.bf16.msra.mxu0 0
    %3330 = vmatprep.subr.bf16.mxu0 0
    %3331 = vmatpush1.bf16.msra.mxu0 0
    %3332 = vmatprep.subr.bf16.mxu0 0
    %3333 = vmatpush1.bf16.msra.mxu0 0
    %3334 = vmatprep.subr.bf16.mxu0 0
    %3335 = vmatpush1.bf16.msra.mxu0 0
    %3336 = vmatprep.subr.bf16.mxu0 0
    %3337 = vmatpush1.bf16.msra.mxu0 0
    %3338 = vmatprep.subr.bf16.mxu0 0
    %3339 = vmatpush1.bf16.msra.mxu0 0
    %3340 = vmatprep.subr.bf16.mxu0 0
    %3341 = vmatpush1.bf16.msra.mxu0 0
    %3342 = vmatprep.subr.bf16.mxu0 0
    %3343 = vmatpush1.bf16.msra.mxu0 0
    %3344 = vmatprep.subr.bf16.mxu0 0
    %3345 = vmatpush1.bf16.msra.mxu0 0
    %3346 = vmatprep.mubr.bf16.mxu0 0
    %3347 = vmatmul.mubr.bf16.gmra.mrb[0].mxu0 %v2436
    %v3348 = vpop.f32.mrb[0].mxu0
    %v3349 = vadd.f32 0.0, %v3348
    %v3350 = vpop.f32.mrb[0].mxu0
    %v3351 = vpop.f32.mrb[0].mxu0
    %v3352 = vadd.f32 0.0, %v3351
    %v3353 = vpop.f32.mrb[0].mxu0
    %3354 = vmatprep.mubr.bf16.mxu0 0
    %3355 = vmatmul.mubr.bf16.gmra.mrb[0].mxu0 %v2439
    %v3356 = vpop.f32.mrb[0].mxu0
    %v3357 = vadd.f32 0.0, %v3356
    %v3358 = vpop.f32.mrb[0].mxu0
    %v3359 = vpop.f32.mrb[0].mxu0
    %v3360 = vadd.f32 0.0, %v3359
    %v3361 = vpop.f32.mrb[0].mxu0
    %3362 = vmatprep.mubr.bf16.mxu0 0
    %3363 = vmatmul.mubr.bf16.gmra.mrb[0].mxu0 %v2442
    %v3364 = vpop.f32.mrb[0].mxu0
    %v3365 = vadd.f32 0.0, %v3364
    %v3366 = vpop.f32.mrb[0].mxu0
    %v3367 = vpop.f32.mrb[0].mxu0
    %v3368 = vadd.f32 0.0, %v3367
    %v3369 = vpop.f32.mrb[0].mxu0
    %3370 = vmatprep.mubr.bf16.mxu0 0
    %3371 = vmatmul.mubr.bf16.gmra.mrb[0].mxu0 %v2445
    %v3372 = vpop.f32.mrb[0].mxu0
    %v3373 = vadd.f32 0.0, %v3372
    %v3374 = vpop.f32.mrb[0].mxu0
    %v3375 = vpop.f32.mrb[0].mxu0
    %v3376 = vadd.f32 0.0, %v3375
    %v3377 = vpop.f32.mrb[0].mxu0
    %3378 = vdwg.mxu0
    %3379 = vst [vmem:[#allocation5 + $0x20] sm:$0xff] %v3349
    %3380 = vst [vmem:[#allocation5 + $0x60] sm:$0xff] %v3352
    %3381 = vst [vmem:[#allocation5 + $0xa0] sm:$0xff] %v3357
    %3382 = vst [vmem:[#allocation5 + $0xe0] sm:$0xff] %v3360
    %3383 = vst [vmem:[#allocation5 + $0x120] sm:$0xff] %v3365
    %3384 = vst [vmem:[#allocation5 + $0x160] sm:$0xff] %v3368
    %3385 = vst [vmem:[#allocation5 + $0x1a0] sm:$0xff] %v3373
    %3386 = vst [vmem:[#allocation5 + $0x1e0] sm:$0xff] %v3376
    %v3387 = vld [vmem:[#allocation7 + $0x44] sm:$0xf]
    %v3388 = vld [vmem:[#allocation7 + $0xa0] sm:$0xf]
    %v3389 = vld [vmem:[#allocation7 + $0xfc] sm:$0xf]
    %v3390 = vld [vmem:[#allocation7 + $0x158] sm:$0xf]
    %v3391 = vld [vmem:[#allocation7 + $0x1b4] sm:$0xf]
    %v3392 = vld [vmem:[#allocation7 + $0x210] sm:$0xf]
    %v3393 = vld [vmem:[#allocation7 + $0x26c] sm:$0xf]
    %v3394 = vld [vmem:[#allocation7 + $0x2c8] sm:$0xf]
    %v3403 = vunpack.c.l.b16 %v3387
    %v3404 = vunpack.c.l.b16 %v3388
    %v3405 = vunpack.c.l.b16 %v3389
    %v3406 = vunpack.c.l.b16 %v3390
    %v3407 = vunpack.c.l.b16 %v3391
    %v3408 = vunpack.c.l.b16 %v3392
    %v3409 = vunpack.c.l.b16 %v3393
    %v3410 = vunpack.c.l.b16 %v3394
    %v3411 = vpack.c.b16 %v3404, %v3403
    %v3412 = vpack.c.b16 %v3406, %v3405
    %v3413 = vpack.c.b16 %v3408, %v3407
    %v3414 = vpack.c.b16 %v3410, %v3409
    %3419 = vmatprep.subr.bf16.mxu0 0
    %3420 = vmatpush1.bf16.msra.mxu0 %v3411
    %3421 = vmatprep.subr.bf16.mxu0 0
    %3422 = vmatpush1.bf16.msra.mxu0 %v3412
    %3423 = vmatprep.subr.bf16.mxu0 0
    %3424 = vmatpush1.bf16.msra.mxu0 %v3413
    %3425 = vmatprep.subr.bf16.mxu0 0
    %3426 = vmatpush1.bf16.msra.mxu0 %v3414
    %3427 = vmatprep.subr.bf16.mxu0 0
    %3428 = vmatpush1.bf16.msra.mxu0 0
    %3429 = vmatprep.subr.bf16.mxu0 0
    %3430 = vmatpush1.bf16.msra.mxu0 0
    %3431 = vmatprep.subr.bf16.mxu0 0
    %3432 = vmatpush1.bf16.msra.mxu0 0
    %3433 = vmatprep.subr.bf16.mxu0 0
    %3434 = vmatpush1.bf16.msra.mxu0 0
    %3435 = vmatprep.subr.bf16.mxu0 0
    %3436 = vmatpush1.bf16.msra.mxu0 0
    %3437 = vmatprep.subr.bf16.mxu0 0
    %3438 = vmatpush1.bf16.msra.mxu0 0
    %3439 = vmatprep.subr.bf16.mxu0 0
    %3440 = vmatpush1.bf16.msra.mxu0 0
    %3441 = vmatprep.subr.bf16.mxu0 0
    %3442 = vmatpush1.bf16.msra.mxu0 0
    %3443 = vmatprep.subr.bf16.mxu0 0
    %3444 = vmatpush1.bf16.msra.mxu0 0
    %3445 = vmatprep.subr.bf16.mxu0 0
    %3446 = vmatpush1.bf16.msra.mxu0 0
    %3447 = vmatprep.subr.bf16.mxu0 0
    %3448 = vmatpush1.bf16.msra.mxu0 0
    %3449 = vmatprep.subr.bf16.mxu0 0
    %3450 = vmatpush1.bf16.msra.mxu0 0
    %3451 = vmatprep.mubr.bf16.mxu0 0
    %3452 = vmatmul.mubr.bf16.gmra.mrb[0].mxu0 %v2436
    %v3453 = vpop.f32.mrb[0].mxu0
    %v3454 = vadd.f32 0.0, %v3453
    %v3455 = vpop.f32.mrb[0].mxu0
    %v3456 = vpop.f32.mrb[0].mxu0
    %v3457 = vadd.f32 0.0, %v3456
    %v3458 = vpop.f32.mrb[0].mxu0
    %3459 = vmatprep.mubr.bf16.mxu0 0
    %3460 = vmatmul.mubr.bf16.gmra.mrb[0].mxu0 %v2439
    %v3461 = vpop.f32.mrb[0].mxu0
    %v3462 = vadd.f32 0.0, %v3461
    %v3463 = vpop.f32.mrb[0].mxu0
    %v3464 = vpop.f32.mrb[0].mxu0
    %v3465 = vadd.f32 0.0, %v3464
    %v3466 = vpop.f32.mrb[0].mxu0
    %3467 = vmatprep.mubr.bf16.mxu0 0
    %3468 = vmatmul.mubr.bf16.gmra.mrb[0].mxu0 %v2442
    %v3469 = vpop.f32.mrb[0].mxu0
    %v3470 = vadd.f32 0.0, %v3469
    %v3471 = vpop.f32.mrb[0].mxu0
    %v3472 = vpop.f32.mrb[0].mxu0
    %v3473 = vadd.f32 0.0, %v3472
    %v3474 = vpop.f32.mrb[0].mxu0
    %3475 = vmatprep.mubr.bf16.mxu0 0
    %3476 = vmatmul.mubr.bf16.gmra.mrb[0].mxu0 %v2445
    %v3477 = vpop.f32.mrb[0].mxu0
    %v3478 = vadd.f32 0.0, %v3477
    %v3479 = vpop.f32.mrb[0].mxu0
    %v3480 = vpop.f32.mrb[0].mxu0
    %v3481 = vadd.f32 0.0, %v3480
    %v3482 = vpop.f32.mrb[0].mxu0
    %3483 = vdwg.mxu0
    %3484 = vst [vmem:[#allocation5 + $0x28] sm:$0xff] %v3454
    %3485 = vst [vmem:[#allocation5 + $0x68] sm:$0xff] %v3457
    %3486 = vst [vmem:[#allocation5 + $0xa8] sm:$0xff] %v3462
    %3487 = vst [vmem:[#allocation5 + $0xe8] sm:$0xff] %v3465
    %3488 = vst [vmem:[#allocation5 + $0x128] sm:$0xff] %v3470
    %3489 = vst [vmem:[#allocation5 + $0x168] sm:$0xff] %v3473
    %3490 = vst [vmem:[#allocation5 + $0x1a8] sm:$0xff] %v3478
    %3491 = vst [vmem:[#allocation5 + $0x1e8] sm:$0xff] %v3481
    %v3492 = vld [vmem:[#allocation7 + $0x48] sm:$0xf]
    %v3493 = vld [vmem:[#allocation7 + $0xa4] sm:$0xf]
    %v3494 = vld [vmem:[#allocation7 + $0x100] sm:$0xf]
    %v3495 = vld [vmem:[#allocation7 + $0x15c] sm:$0xf]
    %v3496 = vld [vmem:[#allocation7 + $0x1b8] sm:$0xf]
    %v3497 = vld [vmem:[#allocation7 + $0x214] sm:$0xf]
    %v3498 = vld [vmem:[#allocation7 + $0x270] sm:$0xf]
    %v3499 = vld [vmem:[#allocation7 + $0x2cc] sm:$0xf]
    %v3508 = vunpack.c.l.b16 %v3492
    %v3509 = vunpack.c.l.b16 %v3493
    %v3510 = vunpack.c.l.b16 %v3494
    %v3511 = vunpack.c.l.b16 %v3495
    %v3512 = vunpack.c.l.b16 %v3496
    %v3513 = vunpack.c.l.b16 %v3497
    %v3514 = vunpack.c.l.b16 %v3498
    %v3515 = vunpack.c.l.b16 %v3499
    %v3516 = vpack.c.b16 %v3509, %v3508
    %v3517 = vpack.c.b16 %v3511, %v3510
    %v3518 = vpack.c.b16 %v3513, %v3512
    %v3519 = vpack.c.b16 %v3515, %v3514
    %3524 = vmatprep.subr.bf16.mxu0 0
    %3525 = vmatpush1.bf16.msra.mxu0 %v3516
    %3526 = vmatprep.subr.bf16.mxu0 0
    %3527 = vmatpush1.bf16.msra.mxu0 %v3517
    %3528 = vmatprep.subr.bf16.mxu0 0
    %3529 = vmatpush1.bf16.msra.mxu0 %v3518
    %3530 = vmatprep.subr.bf16.mxu0 0
    %3531 = vmatpush1.bf16.msra.mxu0 %v3519
    %3532 = vmatprep.subr.bf16.mxu0 0
    %3533 = vmatpush1.bf16.msra.mxu0 0
    %3534 = vmatprep.subr.bf16.mxu0 0
    %3535 = vmatpush1.bf16.msra.mxu0 0
    %3536 = vmatprep.subr.bf16.mxu0 0
    %3537 = vmatpush1.bf16.msra.mxu0 0
    %3538 = vmatprep.subr.bf16.mxu0 0
    %3539 = vmatpush1.bf16.msra.mxu0 0
    %3540 = vmatprep.subr.bf16.mxu0 0
    %3541 = vmatpush1.bf16.msra.mxu0 0
    %3542 = vmatprep.subr.bf16.mxu0 0
    %3543 = vmatpush1.bf16.msra.mxu0 0
    %3544 = vmatprep.subr.bf16.mxu0 0
    %3545 = vmatpush1.bf16.msra.mxu0 0
    %3546 = vmatprep.subr.bf16.mxu0 0
    %3547 = vmatpush1.bf16.msra.mxu0 0
    %3548 = vmatprep.subr.bf16.mxu0 0
    %3549 = vmatpush1.bf16.msra.mxu0 0
    %3550 = vmatprep.subr.bf16.mxu0 0
    %3551 = vmatpush1.bf16.msra.mxu0 0
    %3552 = vmatprep.subr.bf16.mxu0 0
    %3553 = vmatpush1.bf16.msra.mxu0 0
    %3554 = vmatprep.subr.bf16.mxu0 0
    %3555 = vmatpush1.bf16.msra.mxu0 0
    %3556 = vmatprep.mubr.bf16.mxu0 0
    %3557 = vmatmul.mubr.bf16.gmra.mrb[0].mxu0 %v2436
    %v3558 = vpop.f32.mrb[0].mxu0
    %v3559 = vadd.f32 0.0, %v3558
    %v3560 = vpop.f32.mrb[0].mxu0
    %v3561 = vpop.f32.mrb[0].mxu0
    %v3562 = vadd.f32 0.0, %v3561
    %v3563 = vpop.f32.mrb[0].mxu0
    %3564 = vmatprep.mubr.bf16.mxu0 0
    %3565 = vmatmul.mubr.bf16.gmra.mrb[0].mxu0 %v2439
    %v3566 = vpop.f32.mrb[0].mxu0
    %v3567 = vadd.f32 0.0, %v3566
    %v3568 = vpop.f32.mrb[0].mxu0
    %v3569 = vpop.f32.mrb[0].mxu0
    %v3570 = vadd.f32 0.0, %v3569
    %v3571 = vpop.f32.mrb[0].mxu0
    %3572 = vmatprep.mubr.bf16.mxu0 0
    %3573 = vmatmul.mubr.bf16.gmra.mrb[0].mxu0 %v2442
    %v3574 = vpop.f32.mrb[0].mxu0
    %v3575 = vadd.f32 0.0, %v3574
    %v3576 = vpop.f32.mrb[0].mxu0
    %v3577 = vpop.f32.mrb[0].mxu0
    %v3578 = vadd.f32 0.0, %v3577
    %v3579 = vpop.f32.mrb[0].mxu0
    %3580 = vmatprep.mubr.bf16.mxu0 0
    %3581 = vmatmul.mubr.bf16.gmra.mrb[0].mxu0 %v2445
    %v3582 = vpop.f32.mrb[0].mxu0
    %v3583 = vadd.f32 0.0, %v3582
    %v3584 = vpop.f32.mrb[0].mxu0
    %v3585 = vpop.f32.mrb[0].mxu0
    %v3586 = vadd.f32 0.0, %v3585
    %v3587 = vpop.f32.mrb[0].mxu0
    %3588 = vdwg.mxu0
    %3589 = vst [vmem:[#allocation5 + $0x30] sm:$0xff] %v3559
    %3590 = vst [vmem:[#allocation5 + $0x70] sm:$0xff] %v3562
    %3591 = vst [vmem:[#allocation5 + $0xb0] sm:$0xff] %v3567
    %3592 = vst [vmem:[#allocation5 + $0xf0] sm:$0xff] %v3570
    %3593 = vst [vmem:[#allocation5 + $0x130] sm:$0xff] %v3575
    %3594 = vst [vmem:[#allocation5 + $0x170] sm:$0xff] %v3578
    %3595 = vst [vmem:[#allocation5 + $0x1b0] sm:$0xff] %v3583
    %3596 = vst [vmem:[#allocation5 + $0x1f0] sm:$0xff] %v3586
    %v3597 = vld [vmem:[#allocation7 + $0x4c] sm:$0xf]
    %v3598 = vld [vmem:[#allocation7 + $0xa8] sm:$0xf]
    %v3599 = vld [vmem:[#allocation7 + $0x104] sm:$0xf]
    %v3600 = vld [vmem:[#allocation7 + $0x160] sm:$0xf]
    %v3601 = vld [vmem:[#allocation7 + $0x1bc] sm:$0xf]
    %v3602 = vld [vmem:[#allocation7 + $0x218] sm:$0xf]
    %v3603 = vld [vmem:[#allocation7 + $0x274] sm:$0xf]
    %v3604 = vld [vmem:[#allocation7 + $0x2d0] sm:$0xf]
    %v3613 = vunpack.c.l.b16 %v3597
    %v3614 = vunpack.c.l.b16 %v3598
    %v3615 = vunpack.c.l.b16 %v3599
    %v3616 = vunpack.c.l.b16 %v3600
    %v3617 = vunpack.c.l.b16 %v3601
    %v3618 = vunpack.c.l.b16 %v3602
    %v3619 = vunpack.c.l.b16 %v3603
    %v3620 = vunpack.c.l.b16 %v3604
    %v3621 = vpack.c.b16 %v3614, %v3613
    %v3622 = vpack.c.b16 %v3616, %v3615
    %v3623 = vpack.c.b16 %v3618, %v3617
    %v3624 = vpack.c.b16 %v3620, %v3619
    %3629 = vmatprep.subr.bf16.mxu0 0
    %3630 = vmatpush1.bf16.msra.mxu0 %v3621
    %3631 = vmatprep.subr.bf16.mxu0 0
    %3632 = vmatpush1.bf16.msra.mxu0 %v3622
    %3633 = vmatprep.subr.bf16.mxu0 0
    %3634 = vmatpush1.bf16.msra.mxu0 %v3623
    %3635 = vmatprep.subr.bf16.mxu0 0
    %3636 = vmatpush1.bf16.msra.mxu0 %v3624
    %3637 = vmatprep.subr.bf16.mxu0 0
    %3638 = vmatpush1.bf16.msra.mxu0 0
    %3639 = vmatprep.subr.bf16.mxu0 0
    %3640 = vmatpush1.bf16.msra.mxu0 0
    %3641 = vmatprep.subr.bf16.mxu0 0
    %3642 = vmatpush1.bf16.msra.mxu0 0
    %3643 = vmatprep.subr.bf16.mxu0 0
    %3644 = vmatpush1.bf16.msra.mxu0 0
    %3645 = vmatprep.subr.bf16.mxu0 0
    %3646 = vmatpush1.bf16.msra.mxu0 0
    %3647 = vmatprep.subr.bf16.mxu0 0
    %3648 = vmatpush1.bf16.msra.mxu0 0
    %3649 = vmatprep.subr.bf16.mxu0 0
    %3650 = vmatpush1.bf16.msra.mxu0 0
    %3651 = vmatprep.subr.bf16.mxu0 0
    %3652 = vmatpush1.bf16.msra.mxu0 0
    %3653 = vmatprep.subr.bf16.mxu0 0
    %3654 = vmatpush1.bf16.msra.mxu0 0
    %3655 = vmatprep.subr.bf16.mxu0 0
    %3656 = vmatpush1.bf16.msra.mxu0 0
    %3657 = vmatprep.subr.bf16.mxu0 0
    %3658 = vmatpush1.bf16.msra.mxu0 0
    %3659 = vmatprep.subr.bf16.mxu0 0
    %3660 = vmatpush1.bf16.msra.mxu0 0
    %3661 = vmatprep.mubr.bf16.mxu0 0
    %3662 = vmatmul.mubr.bf16.gmra.mrb[0].mxu0 %v2436
    %v3663 = vpop.f32.mrb[0].mxu0
    %v3664 = vadd.f32 0.0, %v3663
    %v3665 = vpop.f32.mrb[0].mxu0
    %v3666 = vpop.f32.mrb[0].mxu0
    %v3667 = vadd.f32 0.0, %v3666
    %v3668 = vpop.f32.mrb[0].mxu0
    %3669 = vmatprep.mubr.bf16.mxu0 0
    %3670 = vmatmul.mubr.bf16.gmra.mrb[0].mxu0 %v2439
    %v3671 = vpop.f32.mrb[0].mxu0
    %v3672 = vadd.f32 0.0, %v3671
    %v3673 = vpop.f32.mrb[0].mxu0
    %v3674 = vpop.f32.mrb[0].mxu0
    %v3675 = vadd.f32 0.0, %v3674
    %v3676 = vpop.f32.mrb[0].mxu0
    %3677 = vmatprep.mubr.bf16.mxu0 0
    %3678 = vmatmul.mubr.bf16.gmra.mrb[0].mxu0 %v2442
    %v3679 = vpop.f32.mrb[0].mxu0
    %v3680 = vadd.f32 0.0, %v3679
    %v3681 = vpop.f32.mrb[0].mxu0
    %v3682 = vpop.f32.mrb[0].mxu0
    %v3683 = vadd.f32 0.0, %v3682
    %v3684 = vpop.f32.mrb[0].mxu0
    %3685 = vmatprep.mubr.bf16.mxu0 0
    %3686 = vmatmul.mubr.bf16.gmra.mrb[0].mxu0 %v2445
    %v3687 = vpop.f32.mrb[0].mxu0
    %v3688 = vadd.f32 0.0, %v3687
    %v3689 = vpop.f32.mrb[0].mxu0
    %v3690 = vpop.f32.mrb[0].mxu0
    %v3691 = vadd.f32 0.0, %v3690
    %v3692 = vpop.f32.mrb[0].mxu0
    %3693 = vdwg.mxu0
    %3694 = vst [vmem:[#allocation5 + $0x38] sm:$0xff] %v3664
    %3695 = vst [vmem:[#allocation5 + $0x78] sm:$0xff] %v3667
    %3696 = vst [vmem:[#allocation5 + $0xb8] sm:$0xff] %v3672
    %3697 = vst [vmem:[#allocation5 + $0xf8] sm:$0xff] %v3675
    %3698 = vst [vmem:[#allocation5 + $0x138] sm:$0xff] %v3680
    %3699 = vst [vmem:[#allocation5 + $0x178] sm:$0xff] %v3683
    %3700 = vst [vmem:[#allocation5 + $0x1b8] sm:$0xff] %v3688
    %3701 = vst [vmem:[#allocation5 + $0x1f8] sm:$0xff] %v3691
    %v3702 = vld [vmem:[#allocation6] sm:$0xff]
    %v3703 = vld [vmem:[#allocation6 + $0x8] sm:$0xff]
    %v3704 = vld [vmem:[#allocation6 + $0x10] sm:$0xff]
    %v3705 = vld [vmem:[#allocation6 + $0x18] sm:$0xff]
    %v3706 = vmul.f32 %v3702, 0.0
    %v3707 = vmul.f32 %v3703, 0.0
    %v3708 = vmul.f32 %v3704, 0.0
    %v3709 = vmul.f32 %v3705, 0.0
    %v3710 = vld [vmem:[#allocation5] sm:$0xff]
    %v3711 = vld [vmem:[#allocation5 + $0x8] sm:$0xff]
    %v3712 = vld [vmem:[#allocation5 + $0x10] sm:$0xff]
    %v3713 = vld [vmem:[#allocation5 + $0x18] sm:$0xff]
    %v3714 = vadd.f32 %v3706, %v3710
    %v3715 = vadd.f32 %v3707, %v3711
    %v3716 = vadd.f32 %v3708, %v3712
    %v3717 = vadd.f32 %v3709, %v3713
    %v3718 = vld [vmem:[#allocation5 + $0x20] sm:$0xff]
    %v3719 = vld [vmem:[#allocation5 + $0x28] sm:$0xff]
    %v3720 = vld [vmem:[#allocation5 + $0x30] sm:$0xff]
    %v3721 = vld [vmem:[#allocation5 + $0x38] sm:$0xff]
    %v3722 = vmul.f32 %v3718, %v3714
    %v3723 = vmul.f32 %v3719, %v3715
    %v3724 = vmul.f32 %v3720, %v3716
    %v3725 = vmul.f32 %v3721, %v3717
    %v3726 = vadd.f32 %v3722, %v3724
    %v3727 = vadd.f32 %v3723, %v3725
    %v3728 = vadd.f32 %v3726, %v3727
    %3730 = vrot.lane.b32.xlu0 %v3728, 64
    %v3731 = vpop.permute.xlu0 %3730
    %v3733 = vadd.f32 %v3728, %v3731
    %v3734 = vld [vmem:[#allocation4] sm:$0xff]
    %v3735 = vadd.f32 %v3734, %v3733
    %3736 = vst.msk [vmem:[#allocation4] sm:$0xff] %vm29, %v3735
    %v3737 = vld [vmem:[#allocation6 + $0x20] sm:$0xff]
    %v3738 = vld [vmem:[#allocation6 + $0x28] sm:$0xff]
    %v3739 = vld [vmem:[#allocation6 + $0x30] sm:$0xff]
    %v3740 = vld [vmem:[#allocation6 + $0x38] sm:$0xff]
    %v3741 = vmul.f32 %v3737, %v3714
    %v3742 = vmul.f32 %v3738, %v3715
    %v3743 = vmul.f32 %v3739, %v3716
    %v3744 = vmul.f32 %v3740, %v3717
    %v3745 = vld [vmem:[#allocation5 + $0x40] sm:$0xff]
    %v3746 = vld [vmem:[#allocation5 + $0x48] sm:$0xff]
    %v3747 = vld [vmem:[#allocation5 + $0x50] sm:$0xff]
    %v3748 = vld [vmem:[#allocation5 + $0x58] sm:$0xff]
    %v3749 = vadd.f32 %v3741, %v3745
    %v3750 = vadd.f32 %v3742, %v3746
    %v3751 = vadd.f32 %v3743, %v3747
    %v3752 = vadd.f32 %v3744, %v3748
    %v3753 = vld [vmem:[#allocation5 + $0x60] sm:$0xff]
    %v3754 = vld [vmem:[#allocation5 + $0x68] sm:$0xff]
    %v3755 = vld [vmem:[#allocation5 + $0x70] sm:$0xff]
    %v3756 = vld [vmem:[#allocation5 + $0x78] sm:$0xff]
    %v3757 = vmul.f32 %v3753, %v3749
    %v3758 = vmul.f32 %v3754, %v3750
    %v3759 = vmul.f32 %v3755, %v3751
    %v3760 = vmul.f32 %v3756, %v3752
    %v3761 = vadd.f32 %v3757, %v3759
    %v3762 = vadd.f32 %v3758, %v3760
    %v3763 = vadd.f32 %v3761, %v3762
    %3765 = vrot.lane.b32.xlu0 %v3763, 64
    %v3766 = vpop.permute.xlu0 %3765
    %v3768 = vadd.f32 %v3763, %v3766
    %v3769 = vld [vmem:[#allocation4 + $0x8] sm:$0xff]
    %v3770 = vadd.f32 %v3769, %v3768
    %3771 = vst.msk [vmem:[#allocation4 + $0x8] sm:$0xff] %vm29, %v3770
    %v3772 = vld [vmem:[#allocation6 + $0x40] sm:$0xff]
    %v3773 = vld [vmem:[#allocation6 + $0x48] sm:$0xff]
    %v3774 = vld [vmem:[#allocation6 + $0x50] sm:$0xff]
    %v3775 = vld [vmem:[#allocation6 + $0x58] sm:$0xff]
    %v3776 = vmul.f32 %v3772, %v3749
    %v3777 = vmul.f32 %v3773, %v3750
    %v3778 = vmul.f32 %v3774, %v3751
    %v3779 = vmul.f32 %v3775, %v3752
    %v3780 = vld [vmem:[#allocation5 + $0x80] sm:$0xff]
    %v3781 = vld [vmem:[#allocation5 + $0x88] sm:$0xff]
    %v3782 = vld [vmem:[#allocation5 + $0x90] sm:$0xff]
    %v3783 = vld [vmem:[#allocation5 + $0x98] sm:$0xff]
    %v3784 = vadd.f32 %v3776, %v3780
    %v3785 = vadd.f32 %v3777, %v3781
    %v3786 = vadd.f32 %v3778, %v3782
    %v3787 = vadd.f32 %v3779, %v3783
    %v3788 = vld [vmem:[#allocation5 + $0xa0] sm:$0xff]
    %v3789 = vld [vmem:[#allocation5 + $0xa8] sm:$0xff]
    %v3790 = vld [vmem:[#allocation5 + $0xb0] sm:$0xff]
    %v3791 = vld [vmem:[#allocation5 + $0xb8] sm:$0xff]
    %v3792 = vmul.f32 %v3788, %v3784
    %v3793 = vmul.f32 %v3789, %v3785
    %v3794 = vmul.f32 %v3790, %v3786
    %v3795 = vmul.f32 %v3791, %v3787
    %v3796 = vadd.f32 %v3792, %v3794
    %v3797 = vadd.f32 %v3793, %v3795
    %v3798 = vadd.f32 %v3796, %v3797
    %3800 = vrot.lane.b32.xlu0 %v3798, 64
    %v3801 = vpop.permute.xlu0 %3800
    %v3803 = vadd.f32 %v3798, %v3801
    %v3804 = vld [vmem:[#allocation4 + $0x10] sm:$0xff]
    %v3805 = vadd.f32 %v3804, %v3803
    %3806 = vst.msk [vmem:[#allocation4 + $0x10] sm:$0xff] %vm29, %v3805
    %v3807 = vld [vmem:[#allocation6 + $0x60] sm:$0xff]
    %v3808 = vld [vmem:[#allocation6 + $0x68] sm:$0xff]
    %v3809 = vld [vmem:[#allocation6 + $0x70] sm:$0xff]
    %v3810 = vld [vmem:[#allocation6 + $0x78] sm:$0xff]
    %v3811 = vmul.f32 %v3807, %v3784
    %v3812 = vmul.f32 %v3808, %v3785
    %v3813 = vmul.f32 %v3809, %v3786
    %v3814 = vmul.f32 %v3810, %v3787
    %v3815 = vld [vmem:[#allocation5 + $0xc0] sm:$0xff]
    %v3816 = vld [vmem:[#allocation5 + $0xc8] sm:$0xff]
    %v3817 = vld [vmem:[#allocation5 + $0xd0] sm:$0xff]
    %v3818 = vld [vmem:[#allocation5 + $0xd8] sm:$0xff]
    %v3819 = vadd.f32 %v3811, %v3815
    %v3820 = vadd.f32 %v3812, %v3816
    %v3821 = vadd.f32 %v3813, %v3817
    %v3822 = vadd.f32 %v3814, %v3818
    %v3823 = vld [vmem:[#allocation5 + $0xe0] sm:$0xff]
    %v3824 = vld [vmem:[#allocation5 + $0xe8] sm:$0xff]
    %v3825 = vld [vmem:[#allocation5 + $0xf0] sm:$0xff]
    %v3826 = vld [vmem:[#allocation5 + $0xf8] sm:$0xff]
    %v3827 = vmul.f32 %v3823, %v3819
    %v3828 = vmul.f32 %v3824, %v3820
    %v3829 = vmul.f32 %v3825, %v3821
    %v3830 = vmul.f32 %v3826, %v3822
    %v3831 = vadd.f32 %v3827, %v3829
    %v3832 = vadd.f32 %v3828, %v3830
    %v3833 = vadd.f32 %v3831, %v3832
    %3835 = vrot.lane.b32.xlu0 %v3833, 64
    %v3836 = vpop.permute.xlu0 %3835
    %v3838 = vadd.f32 %v3833, %v3836
    %v3839 = vld [vmem:[#allocation4 + $0x18] sm:$0xff]
    %v3840 = vadd.f32 %v3839, %v3838
    %3841 = vst.msk [vmem:[#allocation4 + $0x18] sm:$0xff] %vm29, %v3840
    %v3842 = vld [vmem:[#allocation6 + $0x80] sm:$0xff]
    %v3843 = vld [vmem:[#allocation6 + $0x88] sm:$0xff]
    %v3844 = vld [vmem:[#allocation6 + $0x90] sm:$0xff]
    %v3845 = vld [vmem:[#allocation6 + $0x98] sm:$0xff]
    %v3846 = vmul.f32 %v3842, %v3819
    %v3847 = vmul.f32 %v3843, %v3820
    %v3848 = vmul.f32 %v3844, %v3821
    %v3849 = vmul.f32 %v3845, %v3822
    %v3850 = vld [vmem:[#allocation5 + $0x100] sm:$0xff]
    %v3851 = vld [vmem:[#allocation5 + $0x108] sm:$0xff]
    %v3852 = vld [vmem:[#allocation5 + $0x110] sm:$0xff]
    %v3853 = vld [vmem:[#allocation5 + $0x118] sm:$0xff]
    %v3854 = vadd.f32 %v3846, %v3850
    %v3855 = vadd.f32 %v3847, %v3851
    %v3856 = vadd.f32 %v3848, %v3852
    %v3857 = vadd.f32 %v3849, %v3853
    %v3858 = vld [vmem:[#allocation5 + $0x120] sm:$0xff]
    %v3859 = vld [vmem:[#allocation5 + $0x128] sm:$0xff]
    %v3860 = vld [vmem:[#allocation5 + $0x130] sm:$0xff]
    %v3861 = vld [vmem:[#allocation5 + $0x138] sm:$0xff]
    %v3862 = vmul.f32 %v3858, %v3854
    %v3863 = vmul.f32 %v3859, %v3855
    %v3864 = vmul.f32 %v3860, %v3856
    %v3865 = vmul.f32 %v3861, %v3857
    %v3866 = vadd.f32 %v3862, %v3864
    %v3867 = vadd.f32 %v3863, %v3865
    %v3868 = vadd.f32 %v3866, %v3867
    %3870 = vrot.lane.b32.xlu0 %v3868, 64
    %v3871 = vpop.permute.xlu0 %3870
    %v3873 = vadd.f32 %v3868, %v3871
    %v3874 = vld [vmem:[#allocation4 + $0x20] sm:$0xff]
    %v3875 = vadd.f32 %v3874, %v3873
    %3876 = vst.msk [vmem:[#allocation4 + $0x20] sm:$0xff] %vm29, %v3875
    %v3877 = vld [vmem:[#allocation6 + $0xa0] sm:$0xff]
    %v3878 = vld [vmem:[#allocation6 + $0xa8] sm:$0xff]
    %v3879 = vld [vmem:[#allocation6 + $0xb0] sm:$0xff]
    %v3880 = vld [vmem:[#allocation6 + $0xb8] sm:$0xff]
    %v3881 = vmul.f32 %v3877, %v3854
    %v3882 = vmul.f32 %v3878, %v3855
    %v3883 = vmul.f32 %v3879, %v3856
    %v3884 = vmul.f32 %v3880, %v3857
    %v3885 = vld [vmem:[#allocation5 + $0x140] sm:$0xff]
    %v3886 = vld [vmem:[#allocation5 + $0x148] sm:$0xff]
    %v3887 = vld [vmem:[#allocation5 + $0x150] sm:$0xff]
    %v3888 = vld [vmem:[#allocation5 + $0x158] sm:$0xff]
    %v3889 = vadd.f32 %v3881, %v3885
    %v3890 = vadd.f32 %v3882, %v3886
    %v3891 = vadd.f32 %v3883, %v3887
    %v3892 = vadd.f32 %v3884, %v3888
    %v3893 = vld [vmem:[#allocation5 + $0x160] sm:$0xff]
    %v3894 = vld [vmem:[#allocation5 + $0x168] sm:$0xff]
    %v3895 = vld [vmem:[#allocation5 + $0x170] sm:$0xff]
    %v3896 = vld [vmem:[#allocation5 + $0x178] sm:$0xff]
    %v3897 = vmul.f32 %v3893, %v3889
    %v3898 = vmul.f32 %v3894, %v3890
    %v3899 = vmul.f32 %v3895, %v3891
    %v3900 = vmul.f32 %v3896, %v3892
    %v3901 = vadd.f32 %v3897, %v3899
    %v3902 = vadd.f32 %v3898, %v3900
    %v3903 = vadd.f32 %v3901, %v3902
    %3905 = vrot.lane.b32.xlu0 %v3903, 64
    %v3906 = vpop.permute.xlu0 %3905
    %v3908 = vadd.f32 %v3903, %v3906
    %v3909 = vld [vmem:[#allocation4 + $0x28] sm:$0xff]
    %v3910 = vadd.f32 %v3909, %v3908
    %3911 = vst.msk [vmem:[#allocation4 + $0x28] sm:$0xff] %vm29, %v3910
    %v3912 = vld [vmem:[#allocation6 + $0xc0] sm:$0xff]
    %v3913 = vld [vmem:[#allocation6 + $0xc8] sm:$0xff]
    %v3914 = vld [vmem:[#allocation6 + $0xd0] sm:$0xff]
    %v3915 = vld [vmem:[#allocation6 + $0xd8] sm:$0xff]
    %v3916 = vmul.f32 %v3912, %v3889
    %v3917 = vmul.f32 %v3913, %v3890
    %v3918 = vmul.f32 %v3914, %v3891
    %v3919 = vmul.f32 %v3915, %v3892
    %v3920 = vld [vmem:[#allocation5 + $0x180] sm:$0xff]
    %v3921 = vld [vmem:[#allocation5 + $0x188] sm:$0xff]
    %v3922 = vld [vmem:[#allocation5 + $0x190] sm:$0xff]
    %v3923 = vld [vmem:[#allocation5 + $0x198] sm:$0xff]
    %v3924 = vadd.f32 %v3916, %v3920
    %v3925 = vadd.f32 %v3917, %v3921
    %v3926 = vadd.f32 %v3918, %v3922
    %v3927 = vadd.f32 %v3919, %v3923
    %v3928 = vld [vmem:[#allocation5 + $0x1a0] sm:$0xff]
    %v3929 = vld [vmem:[#allocation5 + $0x1a8] sm:$0xff]
    %v3930 = vld [vmem:[#allocation5 + $0x1b0] sm:$0xff]
    %v3931 = vld [vmem:[#allocation5 + $0x1b8] sm:$0xff]
    %v3932 = vmul.f32 %v3928, %v3924
    %v3933 = vmul.f32 %v3929, %v3925
    %v3934 = vmul.f32 %v3930, %v3926
    %v3935 = vmul.f32 %v3931, %v3927
    %v3936 = vadd.f32 %v3932, %v3934
    %v3937 = vadd.f32 %v3933, %v3935
    %v3938 = vadd.f32 %v3936, %v3937
    %3940 = vrot.lane.b32.xlu0 %v3938, 64
    %v3941 = vpop.permute.xlu0 %3940
    %v3943 = vadd.f32 %v3938, %v3941
    %v3944 = vld [vmem:[#allocation4 + $0x30] sm:$0xff]
    %v3945 = vadd.f32 %v3944, %v3943
    %3946 = vst.msk [vmem:[#allocation4 + $0x30] sm:$0xff] %vm29, %v3945
    %v3947 = vld [vmem:[#allocation6 + $0xe0] sm:$0xff]
    %v3948 = vld [vmem:[#allocation6 + $0xe8] sm:$0xff]
    %v3949 = vld [vmem:[#allocation6 + $0xf0] sm:$0xff]
    %v3950 = vld [vmem:[#allocation6 + $0xf8] sm:$0xff]
    %v3951 = vmul.f32 %v3947, %v3924
    %v3952 = vmul.f32 %v3948, %v3925
    %v3953 = vmul.f32 %v3949, %v3926
    %v3954 = vmul.f32 %v3950, %v3927
    %v3955 = vld [vmem:[#allocation5 + $0x1c0] sm:$0xff]
    %v3956 = vld [vmem:[#allocation5 + $0x1c8] sm:$0xff]
    %v3957 = vld [vmem:[#allocation5 + $0x1d0] sm:$0xff]
    %v3958 = vld [vmem:[#allocation5 + $0x1d8] sm:$0xff]
    %v3959 = vadd.f32 %v3951, %v3955
    %v3960 = vadd.f32 %v3952, %v3956
    %v3961 = vadd.f32 %v3953, %v3957
    %v3962 = vadd.f32 %v3954, %v3958
    %v3963 = vld [vmem:[#allocation5 + $0x1e0] sm:$0xff]
    %v3964 = vld [vmem:[#allocation5 + $0x1e8] sm:$0xff]
    %v3965 = vld [vmem:[#allocation5 + $0x1f0] sm:$0xff]
    %v3966 = vld [vmem:[#allocation5 + $0x1f8] sm:$0xff]
    %v3967 = vmul.f32 %v3963, %v3959
    %v3968 = vmul.f32 %v3964, %v3960
    %v3969 = vmul.f32 %v3965, %v3961
    %v3970 = vmul.f32 %v3966, %v3962
    %v3971 = vadd.f32 %v3967, %v3969
    %v3972 = vadd.f32 %v3968, %v3970
    %v3973 = vadd.f32 %v3971, %v3972
    %3975 = vrot.lane.b32.xlu0 %v3973, 64
    %v3976 = vpop.permute.xlu0 %3975
    %v3978 = vadd.f32 %v3973, %v3976
    %v3979 = vld [vmem:[#allocation4 + $0x38] sm:$0xff]
    %v3980 = vadd.f32 %v3979, %v3978
    %3981 = vst.msk [vmem:[#allocation4 + $0x38] sm:$0xff] %vm29, %v3980
    %v3982 = vld [vmem:[#allocation4] sm:$0xff]
    %v3983 = vld [vmem:[#allocation4 + $0x8] sm:$0xff]
    %v3984 = vld [vmem:[#allocation4 + $0x10] sm:$0xff]
    %v3985 = vld [vmem:[#allocation4 + $0x18] sm:$0xff]
    %v3986 = vld [vmem:[#allocation4 + $0x20] sm:$0xff]
    %v3987 = vld [vmem:[#allocation4 + $0x28] sm:$0xff]
    %v3988 = vld [vmem:[#allocation4 + $0x30] sm:$0xff]
    %v3989 = vld [vmem:[#allocation4 + $0x38] sm:$0xff]
    %v3990 = vld [vmem:[#allocation3] sm:$0xff]
    %v3991 = vld [vmem:[#allocation3 + $0x8] sm:$0xff]
    %v3992 = vld [vmem:[#allocation3 + $0x10] sm:$0xff]
    %v3993 = vld [vmem:[#allocation3 + $0x18] sm:$0xff]
    %v3994 = vld [vmem:[#allocation3 + $0x20] sm:$0xff]
    %v3995 = vld [vmem:[#allocation3 + $0x28] sm:$0xff]
    %v3996 = vld [vmem:[#allocation3 + $0x30] sm:$0xff]
    %v3997 = vld [vmem:[#allocation3 + $0x38] sm:$0xff]
    %v3998 = vmul.f32 %v3982, %v3990
    %v3999 = vmul.f32 %v3983, %v3991
    %v4000 = vmul.f32 %v3984, %v3992
    %v4001 = vmul.f32 %v3985, %v3993
    %v4002 = vmul.f32 %v3986, %v3994
    %v4003 = vmul.f32 %v3987, %v3995
    %v4004 = vmul.f32 %v3988, %v3996
    %v4005 = vmul.f32 %v3989, %v3997
    %v4006 = vpack.c.bf16 %v3999, %v3998
    %v4007 = vpack.c.bf16 %v4001, %v4000
    %v4008 = vpack.c.bf16 %v4003, %v4002
    %v4009 = vpack.c.bf16 %v4005, %v4004
    %v4010 = vld [vmem:[#allocation7 + $0x54] sm:$0xf]
    %v4011 = vld [vmem:[#allocation7 + $0xb0] sm:$0xf]
    %v4012 = vld [vmem:[#allocation7 + $0x10c] sm:$0xf]
    %v4013 = vld [vmem:[#allocation7 + $0x168] sm:$0xf]
    %v4014 = vld [vmem:[#allocation7 + $0x1c4] sm:$0xf]
    %v4015 = vld [vmem:[#allocation7 + $0x220] sm:$0xf]
    %v4016 = vld [vmem:[#allocation7 + $0x27c] sm:$0xf]
    %v4017 = vld [vmem:[#allocation7 + $0x2d8] sm:$0xf]
    %v4026 = vunpack.c.l.b16 %v4010
    %v4027 = vunpack.c.l.b16 %v4011
    %v4028 = vunpack.c.l.b16 %v4012
    %v4029 = vunpack.c.l.b16 %v4013
    %v4030 = vunpack.c.l.b16 %v4014
    %v4031 = vunpack.c.l.b16 %v4015
    %v4032 = vunpack.c.l.b16 %v4016
    %v4033 = vunpack.c.l.b16 %v4017
    %v4034 = vpack.c.b16 %v4027, %v4026
    %v4035 = vpack.c.b16 %v4029, %v4028
    %v4036 = vpack.c.b16 %v4031, %v4030
    %v4037 = vpack.c.b16 %v4033, %v4032
    %v4043 = vsel %vm29, %v4006, 0
    %v4046 = vsel %vm29, %v4007, 0
    %v4049 = vsel %vm29, %v4008, 0
    %v4052 = vsel %vm29, %v4009, 0
    %4054 = vmatprep.subr.bf16.mxu0 0
    %4055 = vmatpush1.bf16.msra.mxu0 %v4034
    %4056 = vmatprep.subr.bf16.mxu0 0
    %4057 = vmatpush1.bf16.msra.mxu0 %v4035
    %4058 = vmatprep.subr.bf16.mxu0 0
    %4059 = vmatpush1.bf16.msra.mxu0 %v4036
    %4060 = vmatprep.subr.bf16.mxu0 0
    %4061 = vmatpush1.bf16.msra.mxu0 %v4037
    %4062 = vmatprep.subr.bf16.mxu0 0
    %4063 = vmatpush1.bf16.msra.mxu0 0
    %4064 = vmatprep.subr.bf16.mxu0 0
    %4065 = vmatpush1.bf16.msra.mxu0 0
    %4066 = vmatprep.subr.bf16.mxu0 0
    %4067 = vmatpush1.bf16.msra.mxu0 0
    %4068 = vmatprep.subr.bf16.mxu0 0
    %4069 = vmatpush1.bf16.msra.mxu0 0
    %4070 = vmatprep.subr.bf16.mxu0 0
    %4071 = vmatpush1.bf16.msra.mxu0 0
    %4072 = vmatprep.subr.bf16.mxu0 0
    %4073 = vmatpush1.bf16.msra.mxu0 0
    %4074 = vmatprep.subr.bf16.mxu0 0
    %4075 = vmatpush1.bf16.msra.mxu0 0
    %4076 = vmatprep.subr.bf16.mxu0 0
    %4077 = vmatpush1.bf16.msra.mxu0 0
    %4078 = vmatprep.subr.bf16.mxu0 0
    %4079 = vmatpush1.bf16.msra.mxu0 0
    %4080 = vmatprep.subr.bf16.mxu0 0
    %4081 = vmatpush1.bf16.msra.mxu0 0
    %4082 = vmatprep.subr.bf16.mxu0 0
    %4083 = vmatpush1.bf16.msra.mxu0 0
    %4084 = vmatprep.subr.bf16.mxu0 0
    %4085 = vmatpush1.bf16.msra.mxu0 0
    %4086 = vmatprep.mubr.bf16.mxu0 0
    %4087 = vmatmul.mubr.bf16.gmra.mrb[0].mxu0 %v4043
    %v4088 = vpop.f32.mrb[0].mxu0
    %v4089 = vadd.f32 0.0, %v4088
    %v4090 = vpop.f32.mrb[0].mxu0
    %v4091 = vpop.f32.mrb[0].mxu0
    %v4092 = vadd.f32 0.0, %v4091
    %v4093 = vpop.f32.mrb[0].mxu0
    %4094 = vmatprep.mubr.bf16.mxu0 0
    %4095 = vmatmul.mubr.bf16.gmra.mrb[0].mxu0 %v4046
    %v4096 = vpop.f32.mrb[0].mxu0
    %v4097 = vadd.f32 0.0, %v4096
    %v4098 = vpop.f32.mrb[0].mxu0
    %v4099 = vpop.f32.mrb[0].mxu0
    %v4100 = vadd.f32 0.0, %v4099
    %v4101 = vpop.f32.mrb[0].mxu0
    %4102 = vmatprep.mubr.bf16.mxu0 0
    %4103 = vmatmul.mubr.bf16.gmra.mrb[0].mxu0 %v4049
    %v4104 = vpop.f32.mrb[0].mxu0
    %v4105 = vadd.f32 0.0, %v4104
    %v4106 = vpop.f32.mrb[0].mxu0
    %v4107 = vpop.f32.mrb[0].mxu0
    %v4108 = vadd.f32 0.0, %v4107
    %v4109 = vpop.f32.mrb[0].mxu0
    %4110 = vmatprep.mubr.bf16.mxu0 0
    %4111 = vmatmul.mubr.bf16.gmra.mrb[0].mxu0 %v4052
    %v4112 = vpop.f32.mrb[0].mxu0
    %v4113 = vadd.f32 0.0, %v4112
    %v4114 = vpop.f32.mrb[0].mxu0
    %v4115 = vpop.f32.mrb[0].mxu0
    %v4116 = vadd.f32 0.0, %v4115
    %v4117 = vpop.f32.mrb[0].mxu0
    %4118 = vdwg.mxu0
    %v4119 = vld [vmem:[%s2 + $0x43] ss:$0 sm:$0xff]
    %v4120 = vadd.f32 %v4089, %v4119
    %v4121 = vadd.f32 %v4092, %v4119
    %v4122 = vadd.f32 %v4097, %v4119
    %v4123 = vadd.f32 %v4100, %v4119
    %v4124 = vadd.f32 %v4105, %v4119
    %v4125 = vadd.f32 %v4108, %v4119
    %v4126 = vadd.f32 %v4113, %v4119
    %v4127 = vadd.f32 %v4116, %v4119
    %v4128 = vmax.f32 %v4120, 0.0
    %v4129 = vmax.f32 %v4121, 0.0
    %v4130 = vmax.f32 %v4122, 0.0
    %v4131 = vmax.f32 %v4123, 0.0
    %v4132 = vmax.f32 %v4124, 0.0
    %v4133 = vmax.f32 %v4125, 0.0
    %v4134 = vmax.f32 %v4126, 0.0
    %v4135 = vmax.f32 %v4127, 0.0
    %v4136 = vpack.c.bf16 %v4129, %v4128
    %v4137 = vpack.c.bf16 %v4131, %v4130
    %v4138 = vpack.c.bf16 %v4133, %v4132
    %v4139 = vpack.c.bf16 %v4135, %v4134
    %v4140 = vld [vmem:[#allocation7 + $0x58] sm:$0xf]
    %v4141 = vld [vmem:[#allocation7 + $0xb4] sm:$0xf]
    %v4142 = vld [vmem:[#allocation7 + $0x110] sm:$0xf]
    %v4143 = vld [vmem:[#allocation7 + $0x16c] sm:$0xf]
    %v4144 = vld [vmem:[#allocation7 + $0x1c8] sm:$0xf]
    %v4145 = vld [vmem:[#allocation7 + $0x224] sm:$0xf]
    %v4146 = vld [vmem:[#allocation7 + $0x280] sm:$0xf]
    %v4147 = vld [vmem:[#allocation7 + $0x2dc] sm:$0xf]
    %v4148 = vld [vmem:[%s2 + $0x44] ss:$0 sm:$0xff]
    %v4157 = vunpack.c.l.b16 %v4140
    %v4158 = vunpack.c.l.b16 %v4141
    %v4159 = vunpack.c.l.b16 %v4142
    %v4160 = vunpack.c.l.b16 %v4143
    %v4161 = vunpack.c.l.b16 %v4144
    %v4162 = vunpack.c.l.b16 %v4145
    %v4163 = vunpack.c.l.b16 %v4146
    %v4164 = vunpack.c.l.b16 %v4147
    %v4165 = vpack.c.b16 %v4158, %v4157
    %v4166 = vpack.c.b16 %v4160, %v4159
    %v4167 = vpack.c.b16 %v4162, %v4161
    %v4168 = vpack.c.b16 %v4164, %v4163
    %v4174 = vsel %vm29, %v4136, 0
    %v4177 = vsel %vm29, %v4137, 0
    %v4180 = vsel %vm29, %v4138, 0
    %v4183 = vsel %vm29, %v4139, 0
    %4185 = vmatprep.subr.bf16.mxu0 0
    %4186 = vmatpush1.bf16.msra.mxu0 %v4165
    %4187 = vmatprep.subr.bf16.mxu0 0
    %4188 = vmatpush1.bf16.msra.mxu0 %v4166
    %4189 = vmatprep.subr.bf16.mxu0 0
    %4190 = vmatpush1.bf16.msra.mxu0 %v4167
    %4191 = vmatprep.subr.bf16.mxu0 0
    %4192 = vmatpush1.bf16.msra.mxu0 %v4168
    %4193 = vmatprep.subr.bf16.mxu0 0
    %4194 = vmatpush1.bf16.msra.mxu0 0
    %4195 = vmatprep.subr.bf16.mxu0 0
    %4196 = vmatpush1.bf16.msra.mxu0 0
    %4197 = vmatprep.subr.bf16.mxu0 0
    %4198 = vmatpush1.bf16.msra.mxu0 0
    %4199 = vmatprep.subr.bf16.mxu0 0
    %4200 = vmatpush1.bf16.msra.mxu0 0
    %4201 = vmatprep.subr.bf16.mxu0 0
    %4202 = vmatpush1.bf16.msra.mxu0 0
    %4203 = vmatprep.subr.bf16.mxu0 0
    %4204 = vmatpush1.bf16.msra.mxu0 0
    %4205 = vmatprep.subr.bf16.mxu0 0
    %4206 = vmatpush1.bf16.msra.mxu0 0
    %4207 = vmatprep.subr.bf16.mxu0 0
    %4208 = vmatpush1.bf16.msra.mxu0 0
    %4209 = vmatprep.subr.bf16.mxu0 0
    %4210 = vmatpush1.bf16.msra.mxu0 0
    %4211 = vmatprep.subr.bf16.mxu0 0
    %4212 = vmatpush1.bf16.msra.mxu0 0
    %4213 = vmatprep.subr.bf16.mxu0 0
    %4214 = vmatpush1.bf16.msra.mxu0 0
    %4215 = vmatprep.subr.bf16.mxu0 0
    %4216 = vmatpush1.bf16.msra.mxu0 0
    %4217 = vmatprep.mubr.bf16.mxu0 0
    %4218 = vmatmul.mubr.bf16.gmra.mrb[0].mxu0 %v4174
    %v4219 = vpop.f32.mrb[0].mxu0
    %v4220 = vadd.f32 %v4148, %v4219
    %v4221 = vpop.f32.mrb[0].mxu0
    %v4222 = vpop.f32.mrb[0].mxu0
    %v4223 = vadd.f32 %v4148, %v4222
    %v4224 = vpop.f32.mrb[0].mxu0
    %4225 = vmatprep.mubr.bf16.mxu0 0
    %4226 = vmatmul.mubr.bf16.gmra.mrb[0].mxu0 %v4177
    %v4227 = vpop.f32.mrb[0].mxu0
    %v4228 = vadd.f32 %v4148, %v4227
    %v4229 = vpop.f32.mrb[0].mxu0
    %v4230 = vpop.f32.mrb[0].mxu0
    %v4231 = vadd.f32 %v4148, %v4230
    %v4232 = vpop.f32.mrb[0].mxu0
    %4233 = vmatprep.mubr.bf16.mxu0 0
    %4234 = vmatmul.mubr.bf16.gmra.mrb[0].mxu0 %v4180
    %v4235 = vpop.f32.mrb[0].mxu0
    %v4236 = vadd.f32 %v4148, %v4235
    %v4237 = vpop.f32.mrb[0].mxu0
    %v4238 = vpop.f32.mrb[0].mxu0
    %v4239 = vadd.f32 %v4148, %v4238
    %v4240 = vpop.f32.mrb[0].mxu0
    %4241 = vmatprep.mubr.bf16.mxu0 0
    %4242 = vmatmul.mubr.bf16.gmra.mrb[0].mxu0 %v4183
    %v4243 = vpop.f32.mrb[0].mxu0
    %v4244 = vadd.f32 %v4148, %v4243
    %v4245 = vpop.f32.mrb[0].mxu0
    %v4246 = vpop.f32.mrb[0].mxu0
    %v4247 = vadd.f32 %v4148, %v4246
    %v4248 = vpop.f32.mrb[0].mxu0
    %4249 = vdwg.mxu0
    %vm4250 = vcmask 261120
    %4251 = vst.msk [vmem:[%s3] sm:$0xff] %vm4250, %v4220
    %4252 = vst.msk [vmem:[%s3 + $0x8] sm:$0xff] %vm4250, %v4223
    %4253 = vst.msk [vmem:[%s3 + $0x10] sm:$0xff] %vm4250, %v4228
    %4254 = vst.msk [vmem:[%s3 + $0x18] sm:$0xff] %vm4250, %v4231
    %4255 = vst.msk [vmem:[%s3 + $0x20] sm:$0xff] %vm4250, %v4236
    %4256 = vst.msk [vmem:[%s3 + $0x28] sm:$0xff] %vm4250, %v4239
    %4257 = vst.msk [vmem:[%s3 + $0x30] sm:$0xff] %vm4250, %v4244
    %4258 = vst.msk [vmem:[%s3 + $0x38] sm:$0xff] %vm4250, %v4247
    // Predicated region
    $region18: #{mamba_encoder_forward.1} parent=1 // pred_check
      _
    $region19: #{mamba_encoder_forward.1} parent=1 // pred_check_branch
      %4260 = sbr.rel (0) target = $region21
    $region20: #{mamba_encoder_forward.1} parent=1 // pred_region
      _
    $region21: #{mamba_encoder_forward.1} parent=1 // pred_fallthru
      _
    // Predicated region
    $region22: #{mamba_encoder_forward.1} parent=1 // pred_check
      _
    $region23: #{mamba_encoder_forward.1} parent=1 // pred_check_branch
      %4262 = sbr.rel (0) target = $region25
    $region24: #{mamba_encoder_forward.1} parent=1 // pred_region
      _
    $region25: #{mamba_encoder_forward.1} parent=1 // pred_fallthru
      _
    %4263 = vsyncpa [#allocation8], 1

</llo_original>
